<compile_context>
chip_gen: v7x
topology: tpu7x:2x2x1
jax: 0.10.0
libtpu: 0.0.40
codegen_flags: <defaults>
</compile_context>

<pallas_src>
import functools
import math

import numpy as np

import jax
import jax.numpy as jnp
from jax.experimental import pallas as pl
from jax.experimental.pallas import tpu as pltpu

_MM_DT = jnp.bfloat16   # MXU input dtype; accumulation is f32.


# ---------------------------------------------------------------------------
# small in-kernel helpers
# ---------------------------------------------------------------------------
def _dot(a, w):
    return jnp.dot(a.astype(_MM_DT), w.astype(_MM_DT),
                   preferred_element_type=jnp.float32)


def _leaky(y):
    return jnp.where(y >= 0.0, y, 0.2 * y)           # LeakyReLU(0.2)


def _layer_norm(x, g, b, eps=1e-5):
    mu = jnp.mean(x, axis=-1, keepdims=True)
    xc = x - mu
    var = jnp.mean(xc * xc, axis=-1, keepdims=True)
    return xc * jax.lax.rsqrt(var + eps) * g + b


def _erf(x):
    # Abramowitz & Stegun 7.1.26, |err| <= 1.5e-7; uses only exp/mul/add/div so it
    # lowers on any Mosaic version (no lax.erf dependency inside the kernel).
    a1, a2, a3, a4, a5 = 0.254829592, -0.284496736, 1.421413741, -1.453152027, 1.061405429
    p = 0.3275911
    sgn = jnp.where(x >= 0.0, 1.0, -1.0)
    ax = jnp.abs(x)
    t = 1.0 / (1.0 + p * ax)
    poly = ((((a5 * t + a4) * t + a3) * t + a2) * t + a1) * t
    return sgn * (1.0 - poly * jnp.exp(-ax * ax))


def _gelu(x):
    return 0.5 * x * (1.0 + _erf(x * 0.7071067811865476))   # exact-GELU (PyTorch default)


def _interleave_rows(even, odd):
    """Rows [e0, o0, e1, o1, ...] via exact 0/1 selection matmuls (idle MXU slot)."""
    T, _ = even.shape
    r = jax.lax.broadcasted_iota(jnp.int32, (2 * T, T), 0)
    c = jax.lax.broadcasted_iota(jnp.int32, (2 * T, T), 1)
    se = jnp.where(r == 2 * c, 1.0, 0.0).astype(_MM_DT)
    so = jnp.where(r == 2 * c + 1, 1.0, 0.0).astype(_MM_DT)
    return (jnp.dot(se, even.astype(_MM_DT), preferred_element_type=jnp.float32)
            + jnp.dot(so, odd.astype(_MM_DT), preferred_element_type=jnp.float32))


def _repeat2_rows(y):
    """repeat_interleave(2, dim=time) in-register via a 0/1 selection matmul."""
    T, _ = y.shape
    r = jax.lax.broadcasted_iota(jnp.int32, (2 * T, T), 0)
    c = jax.lax.broadcasted_iota(jnp.int32, (2 * T, T), 1)
    sel = jnp.where((r == 2 * c) | (r == 2 * c + 1), 1.0, 0.0).astype(_MM_DT)
    return jnp.dot(sel, y.astype(_MM_DT), preferred_element_type=jnp.float32)


def _split_heads(z, nhead, dh):
    """(T, nhead*dh) -> (nhead, T, dh): lane slices stacked on a new leading (batch)
    axis so attention runs as ONE batched dot_general over heads."""
    return jnp.stack([z[:, h * dh:(h + 1) * dh] for h in range(nhead)], axis=0)


# ---------------------------------------------------------------------------
# the single fused decoder kernel (one grid step == one batch element)
# ---------------------------------------------------------------------------
def _decoder_kernel(x_ref,
                    t_we, t_wo, t_b, t_sc, t_sh,            # ConvTranspose stage
                    c_w, c_b, c_sc, c_sh,                    # stacked Conv stages
                    e_w, e_b,                                # decoder_linear_embedding
                    wqkv, bqkv, wo, bo,                      # stacked attention weights
                    ln1_g, ln1_b, w1, fb1, w2, fb2,          # stacked FFN / LN weights
                    ln2_g, ln2_b,
                    o_ref, *, nhead, num_layers, num_conv):
    C = x_ref.shape[-1]
    x = x_ref[0].astype(jnp.float32)                         # (T0, C)

    # ---- expander[0]: ConvTranspose1d(k=5, s=2, p=2, out_pad=1) + LeakyReLU + BN(eval)
    # even output 2t uses taps (t-1, t, t+1) with kernel slices (4, 2, 0);
    # odd  output 2t+1 uses taps (t, t+1) with kernel slices (3, 1); zero padding.
    T = x.shape[0]
    zero = jnp.zeros((1, C), jnp.float32)
    x_m1 = jnp.concatenate([zero, x[:T - 1]], axis=0)
    x_p1 = jnp.concatenate([x[1:], zero], axis=0)
    even = _dot(jnp.concatenate([x_m1, x, x_p1], axis=-1), t_we[...]) + t_b[...]
    odd = _dot(jnp.concatenate([x, x_p1], axis=-1), t_wo[...]) + t_b[...]
    even = _leaky(even) * t_sc[...] + t_sh[...]              # Conv -> LeakyReLU -> BN
    odd = _leaky(odd) * t_sc[...] + t_sh[...]
    x = _interleave_rows(even, odd)                          # (2*T0, C)

    # ---- expander[1:]: Conv1d(k=5, p=2, replicate) + LeakyReLU + BN + repeat_interleave(2)
    for si in range(num_conv):
        T = x.shape[0]
        first, last = x[0:1], x[T - 1:T]
        x_m2 = jnp.concatenate([first, first, x[:T - 2]], axis=0)   # replicate pad
        x_m1 = jnp.concatenate([first, x[:T - 1]], axis=0)
        x_p1 = jnp.concatenate([x[1:], last], axis=0)
        x_p2 = jnp.concatenate([x[2:], last, last], axis=0)
        cols = jnp.concatenate([x_m2, x_m1, x, x_p1, x_p2], axis=-1)  # (T, 5C) im2col, VMEM only
        y = _dot(cols, c_w[si]) + c_b[si]
        y = _leaky(y) * c_sc[si] + c_sh[si]
        x = _repeat2_rows(y)                                 # (2T, C)

    # ---- decoder_linear_embedding ----
    x = _dot(x, e_w[...]) + e_b[...]                         # (T_out, E)

    # ---- TransformerEncoder: post-norm layers, batched-head attention, eval dropout ----
    E = C
    Dh = E // nhead
    scale = 1.0 / math.sqrt(Dh)
    for l in range(num_layers):                              # static unroll over layers
        qkv = _dot(x, wqkv[l]) + bqkv[l]                     # (T, 3E), packed QKV
        q = _split_heads(qkv[:, 0:E], nhead, Dh)             # (H, T, Dh)
        k = _split_heads(qkv[:, E:2 * E], nhead, Dh)
        v = _split_heads(qkv[:, 2 * E:3 * E], nhead, Dh)
        s = jnp.einsum("hqd,hkd->hqk", q.astype(_MM_DT), k.astype(_MM_DT),
                       preferred_element_type=jnp.float32) * scale          # (H, T, T)
        m = jnp.max(s, axis=-1, keepdims=True)
        p = jnp.exp(s - m)
        p = p * pl.reciprocal(jnp.sum(p, axis=-1, keepdims=True), approx=True)
        ctx = jnp.einsum("hqk,hkd->hqd", p.astype(_MM_DT), v.astype(_MM_DT),
                         preferred_element_type=jnp.float32)                # (H, T, Dh)
        attn = jnp.concatenate([ctx[h] for h in range(nhead)], axis=-1)     # (T, E)
        attn = _dot(attn, wo[l]) + bo[l]
        x = _layer_norm(x + attn, ln1_g[l], ln1_b[l])        # post-norm residual
        ff = _dot(x, w1[l]) + fb1[l]
        ff = _gelu(ff)
        ff = _dot(ff, w2[l]) + fb2[l]
        x = _layer_norm(x + ff, ln2_g[l], ln2_b[l])

    # NOTE: the only HBM store left after fusion is this 4 KiB (T_out, C) block per batch
    # element, so the lane-dense (multiple-of-128) store reshape is not worth its relayout.
    o_ref[0] = x.astype(o_ref.dtype)


# ---------------------------------------------------------------------------
# wrapper: one pallas_call for the whole decoder
# ---------------------------------------------------------------------------
_WEIGHT_ORDER = (
    "t_we", "t_wo", "t_b", "t_sc", "t_sh",
    "c_w", "c_b", "c_sc", "c_sh",
    "e_w", "e_b",
    "wqkv", "bqkv", "wo", "bo",
    "ln1_g", "ln1_b", "w1", "fb1", "w2", "fb2", "ln2_g", "ln2_b",
)


def _zero_index(*_, ndim):
    return (0,) * ndim


def vqvae2_decoder_forward(x, pp, config):
    B, T0, C = x.shape
    qf = config["quant_factor"]
    num_conv = max(qf - 1, 0)
    num_layers = config["num_hidden_layers"]
    nhead = config["num_attention_heads"]
    t_out = T0 * (2 ** qf)

    weight_args = [pp[k] for k in _WEIGHT_ORDER]
    kernel = functools.partial(_decoder_kernel, nhead=nhead,
                               num_layers=num_layers, num_conv=num_conv)
    return pl.pallas_call(
        kernel,
        out_shape=jax.ShapeDtypeStruct((B, t_out, C), jnp.float32),
        grid=(B,),
        in_specs=[pl.BlockSpec((1, T0, C), lambda b: (b, 0, 0))]
                 + [pl.BlockSpec(a.shape, functools.partial(_zero_index, ndim=a.ndim))
                    for a in weight_args],
        out_specs=pl.BlockSpec((1, t_out, C), lambda b: (b, 0, 0)),
        compiler_params=pltpu.CompilerParams(dimension_semantics=("parallel",)),
    )(x, *weight_args)


# ---------------------------------------------------------------------------
# parameter preprocessing (hoisted out of the forward path, done once)
# ---------------------------------------------------------------------------
def _bn_fold(bn, eps=1e-5):
    scale = bn["gamma"] / jnp.sqrt(bn["var"] + eps)
    shift = bn["beta"] - bn["mean"] * scale
    return scale, shift


def prepare_params(params, config):
    """Pre-reshape conv weights, fold eval-BatchNorm, concat QKV, stack per-layer
    transformer weights along a leading layer axis, cast matmul weights to bf16."""
    C = config["hidden_size"]
    pp = {}

    # expander[0]: ConvTranspose1d weight (C_in, C_out, 5) -> even/odd phase matrices.
    p0 = params["expander"][0]
    w = p0["w"]
    sc, sh = _bn_fold(p0["bn"])
    pp["t_we"] = jnp.concatenate([w[:, :, 4], w[:, :, 2], w[:, :, 0]], axis=0).astype(_MM_DT)
    pp["t_wo"] = jnp.concatenate([w[:, :, 3], w[:, :, 1]], axis=0).astype(_MM_DT)
    pp["t_b"] = p0["b"].reshape(1, C)
    pp["t_sc"] = sc.reshape(1, C)
    pp["t_sh"] = sh.reshape(1, C)

    conv_ps = params["expander"][1:]
    if conv_ps:
        cw, cb, csc, csh = [], [], [], []
        for p in conv_ps:
            cw.append(jnp.transpose(p["w"], (2, 1, 0)).reshape(5 * C, C))  # tap-major rows
            cb.append(p["b"].reshape(1, C))
            s_, h_ = _bn_fold(p["bn"])
            csc.append(s_.reshape(1, C))
            csh.append(h_.reshape(1, C))
        pp["c_w"] = jnp.stack(cw).astype(_MM_DT)
        pp["c_b"] = jnp.stack(cb)
        pp["c_sc"] = jnp.stack(csc)
        pp["c_sh"] = jnp.stack(csh)
    else:  # quant_factor == 1: unused dummies (never indexed by the kernel)
        pp["c_w"] = jnp.zeros((1, 5 * C, C), _MM_DT)
        pp["c_b"] = jnp.zeros((1, 1, C), jnp.float32)
        pp["c_sc"] = jnp.zeros((1, 1, C), jnp.float32)
        pp["c_sh"] = jnp.zeros((1, 1, C), jnp.float32)

    pp["e_w"] = params["emb_w"].astype(_MM_DT)
    pp["e_b"] = params["emb_b"].reshape(1, C)

    layers = params["layers"]
    pp["wqkv"] = jnp.stack([jnp.concatenate([lp["wq"], lp["wk"], lp["wv"]], axis=1)
                            for lp in layers]).astype(_MM_DT)
    pp["bqkv"] = jnp.stack([jnp.concatenate([lp["bq"], lp["bk"], lp["bv"]]).reshape(1, 3 * C)
                            for lp in layers])
    pp["wo"] = jnp.stack([lp["wo"] for lp in layers]).astype(_MM_DT)
    pp["bo"] = jnp.stack([lp["bo"].reshape(1, C) for lp in layers])
    pp["ln1_g"] = jnp.stack([lp["ln1_g"].reshape(1, C) for lp in layers])
    pp["ln1_b"] = jnp.stack([lp["ln1_b"].reshape(1, C) for lp in layers])
    pp["w1"] = jnp.stack([lp["w1"] for lp in layers]).astype(_MM_DT)
    pp["fb1"] = jnp.stack([lp["b1"].reshape(1, -1) for lp in layers])
    pp["w2"] = jnp.stack([lp["w2"] for lp in layers]).astype(_MM_DT)
    pp["fb2"] = jnp.stack([lp["b2"].reshape(1, C) for lp in layers])
    pp["ln2_g"] = jnp.stack([lp["ln2_g"].reshape(1, C) for lp in layers])
    pp["ln2_b"] = jnp.stack([lp["ln2_b"].reshape(1, C) for lp in layers])
    return pp


# ---------------------------------------------------------------------------
# deterministic parameter init (PyTorch-module-shaped weights)
# ---------------------------------------------------------------------------
def init_params(key, config):
    C = config["hidden_size"]
    Fd = config["intermediate_size"]
    K = 5

    def nrm(k, shape, s=0.05):
        return s * jax.random.normal(k, shape, jnp.float32)

    keys = iter(jax.random.split(key, 256))

    def bn_params():
        return {"gamma": 1.0 + nrm(next(keys), (C,)), "beta": nrm(next(keys), (C,)),
                "mean": nrm(next(keys), (C,)), "var": 1.0 + jnp.abs(nrm(next(keys), (C,)))}

    params = {"expander": []}
    params["expander"].append({"w": nrm(next(keys), (C, C, K)),      # ConvTranspose1d (Cin,Cout,K)
                               "b": nrm(next(keys), (C,)), "bn": bn_params()})
    for _ in range(1, config["quant_factor"]):
        params["expander"].append({"w": nrm(next(keys), (C, C, K)),  # Conv1d (Cout,Cin,K)
                                   "b": nrm(next(keys), (C,)), "bn": bn_params()})
    params["emb_w"] = nrm(next(keys), (C, C))
    params["emb_b"] = nrm(next(keys), (C,))
    params["layers"] = []
    for _ in range(config["num_hidden_layers"]):
        params["layers"].append({
            "wq": nrm(next(keys), (C, C)), "bq": nrm(next(keys), (C,)),
            "wk": nrm(next(keys), (C, C)), "bk": nrm(next(keys), (C,)),
            "wv": nrm(next(keys), (C, C)), "bv": nrm(next(keys), (C,)),
            "wo": nrm(next(keys), (C, C)), "bo": nrm(next(keys), (C,)),
            "ln1_g": 1.0 + nrm(next(keys), (C,)), "ln1_b": nrm(next(keys), (C,)),
            "w1": nrm(next(keys), (C, Fd)), "b1": nrm(next(keys), (Fd,)),
            "w2": nrm(next(keys), (Fd, C)), "b2": nrm(next(keys), (C,)),
            "ln2_g": 1.0 + nrm(next(keys), (C,)), "ln2_b": nrm(next(keys), (C,))})
    return params


# ---------------------------------------------------------------------------
# pure-JAX reference (mirrors the PyTorch forward; for in-script validation)
# ---------------------------------------------------------------------------
def _reference_forward(x, params, config):
    C = config["hidden_size"]
    H = config["num_attention_heads"]

    def mm(a, w):
        return jnp.dot(a.astype(_MM_DT), w.astype(_MM_DT),
                       preferred_element_type=jnp.float32)

    def bn(y, p, eps=1e-5):
        return (y - p["mean"]) / jnp.sqrt(p["var"] + eps) * p["gamma"] + p["beta"]

    # expander[0]: ConvTranspose1d(k=5, stride=2, padding=2, output_padding=1), zero pad.
    p0 = params["expander"][0]
    w = p0["w"]                                              # (C_in, C_out, 5)
    B, T, _ = x.shape
    t_out = 2 * T
    y = jnp.zeros((B, t_out, C), jnp.float32)
    for k in range(5):
        contrib = jnp.einsum("btc,cd->btd", x.astype(_MM_DT), w[:, :, k].astype(_MM_DT),
                             preferred_element_type=jnp.float32)
        for i in range(T):
            o = 2 * i - 2 + k                                # o = i*stride - padding + k
            if 0 <= o < t_out:
                y = y.at[:, o].add(contrib[:, i])
    y = y + p0["b"]
    y = jnp.where(y >= 0.0, y, 0.2 * y)
    h = bn(y, p0["bn"])

    # expander[1:]: Conv1d(k=5, padding=2, replicate) + LeakyReLU + BN, then repeat x2.
    for p in params["expander"][1:]:
        w = p["w"]                                           # (C_out, C_in, 5)
        B, T, _ = h.shape
        hp = jnp.concatenate([h[:, :1], h[:, :1], h, h[:, -1:], h[:, -1:]], axis=1)
        y = jnp.zeros((B, T, C), jnp.float32)
        for k in range(5):
            y = y + jnp.einsum("btc,dc->btd", hp[:, k:k + T].astype(_MM_DT),
                               w[:, :, k].astype(_MM_DT),
                               preferred_element_type=jnp.float32)
        y = y + p["b"]
        y = jnp.where(y >= 0.0, y, 0.2 * y)
        y = bn(y, p["bn"])
        h = jnp.repeat(y, 2, axis=1)

    h = mm(h, params["emb_w"]) + params["emb_b"]             # decoder_linear_embedding

    for lp in params["layers"]:                              # post-norm transformer layers
        B, T, E = h.shape
        Dh = E // H
        q = mm(h, lp["wq"]) + lp["bq"]
        k_ = mm(h, lp["wk"]) + lp["bk"]
        v = mm(h, lp["wv"]) + lp["bv"]
        qh = q.reshape(B, T, H, Dh).transpose(0, 2, 1, 3)
        kh = k_.reshape(B, T, H, Dh).transpose(0, 2, 1, 3)
        vh = v.reshape(B, T, H, Dh).transpose(0, 2, 1, 3)
        s = jnp.einsum("bhqd,bhkd->bhqk", qh.astype(_MM_DT), kh.astype(_MM_DT),
                       preferred_element_type=jnp.float32) / math.sqrt(Dh)
        p_ = jax.nn.softmax(s, axis=-1)
        ctx = jnp.einsum("bhqk,bhkd->bhqd", p_.astype(_MM_DT), vh.astype(_MM_DT),
                         preferred_element_type=jnp.float32)
        ctx = ctx.transpose(0, 2, 1, 3).reshape(B, T, E)
        attn = mm(ctx, lp["wo"]) + lp["bo"]
        h = _layer_norm(h + attn, lp["ln1_g"], lp["ln1_b"])
        ff = mm(h, lp["w1"]) + lp["b1"]
        ff = jax.nn.gelu(ff, approximate=False)
        ff = mm(ff, lp["w2"]) + lp["b2"]
        h = _layer_norm(h + ff, lp["ln2_g"], lp["ln2_b"])
    return h


# ---------------------------------------------------------------------------
# main
# ---------------------------------------------------------------------------
if __name__ == "__main__":
    config = dict(
        quant_factor=2,
        hidden_size=32,
        out_dim=32,
        sequence_length=32,
        num_attention_heads=2,
        intermediate_size=64,
        num_hidden_layers=2,
        pos_encoding="none",
        temporal_bias="none",
        max_len=600,
    )
    key = jax.random.PRNGKey(0)
    pkey, xkey = jax.random.split(key)
    params = init_params(pkey, config)
    prepared = prepare_params(params, config)          # hoisted weight prep (once)
    # inputs: (B, T, hidden_size) -- the module permutes to NCL internally.
    x = jax.random.normal(xkey, (2, 8, config["hidden_size"]), jnp.float32)

    fwd = jax.jit(functools.partial(vqvae2_decoder_forward, config=config))
    out = fwd(x, prepared)
    jax.block_until_ready(out)
    assert out.shape == (2, 32, config["hidden_size"]), out.shape
    assert bool(jnp.all(jnp.isfinite(out)))

    # validate the fused kernel against a straightforward pure-JAX reference
    ref = _reference_forward(x, params, config)
    np.testing.assert_allclose(np.asarray(out, np.float32), np.asarray(ref, np.float32),
                               rtol=2e-2, atol=2e-2)
    print("KERNEL_OK")
</pallas_src>

<mosaic_0001>
module attributes {stable_mosaic.version = 11 : i64} {
  func.func @_decoder_kernel(%arg0: i32, %arg1: memref<1x8x32xf32, #tpu.memory_space<vmem>>, %arg2: memref<96x32xbf16, #tpu.memory_space<vmem>>, %arg3: memref<64x32xbf16, #tpu.memory_space<vmem>>, %arg4: memref<1x32xf32, #tpu.memory_space<vmem>>, %arg5: memref<1x32xf32, #tpu.memory_space<vmem>>, %arg6: memref<1x32xf32, #tpu.memory_space<vmem>>, %arg7: memref<1x160x32xbf16, #tpu.memory_space<vmem>>, %arg8: memref<1x1x32xf32, #tpu.memory_space<vmem>>, %arg9: memref<1x1x32xf32, #tpu.memory_space<vmem>>, %arg10: memref<1x1x32xf32, #tpu.memory_space<vmem>>, %arg11: memref<32x32xbf16, #tpu.memory_space<vmem>>, %arg12: memref<1x32xf32, #tpu.memory_space<vmem>>, %arg13: memref<2x32x96xbf16, #tpu.memory_space<vmem>>, %arg14: memref<2x1x96xf32, #tpu.memory_space<vmem>>, %arg15: memref<2x32x32xbf16, #tpu.memory_space<vmem>>, %arg16: memref<2x1x32xf32, #tpu.memory_space<vmem>>, %arg17: memref<2x1x32xf32, #tpu.memory_space<vmem>>, %arg18: memref<2x1x32xf32, #tpu.memory_space<vmem>>, %arg19: memref<2x32x64xbf16, #tpu.memory_space<vmem>>, %arg20: memref<2x1x64xf32, #tpu.memory_space<vmem>>, %arg21: memref<2x64x32xbf16, #tpu.memory_space<vmem>>, %arg22: memref<2x1x32xf32, #tpu.memory_space<vmem>>, %arg23: memref<2x1x32xf32, #tpu.memory_space<vmem>>, %arg24: memref<2x1x32xf32, #tpu.memory_space<vmem>>, %arg25: memref<1x32x32xf32, #tpu.memory_space<vmem>>) attributes {dimension_semantics = [#tpu.dimension_semantics<parallel>], iteration_bounds = array<i64: 2>, scalar_prefetch = 0 : i64, scratch_operands = 0 : i64, tpu.core_type = #tpu.core_type<tc>, window_params = [{transform_indices = @transform_0, window_bounds = array<i64: 1, 8, 32>}, {pipeline_mode = #tpu.pipeline_mode<synchronous>, transform_indices = @transform_1, window_bounds = array<i64: 96, 32>}, {pipeline_mode = #tpu.pipeline_mode<synchronous>, transform_indices = @transform_2, window_bounds = array<i64: 64, 32>}, {pipeline_mode = #tpu.pipeline_mode<synchronous>, transform_indices = @transform_3, window_bounds = array<i64: 1, 32>}, {pipeline_mode = #tpu.pipeline_mode<synchronous>, transform_indices = @transform_4, window_bounds = array<i64: 1, 32>}, {pipeline_mode = #tpu.pipeline_mode<synchronous>, transform_indices = @transform_5, window_bounds = array<i64: 1, 32>}, {pipeline_mode = #tpu.pipeline_mode<synchronous>, transform_indices = @transform_6, window_bounds = array<i64: 1, 160, 32>}, {pipeline_mode = #tpu.pipeline_mode<synchronous>, transform_indices = @transform_7, window_bounds = array<i64: 1, 1, 32>}, {pipeline_mode = #tpu.pipeline_mode<synchronous>, transform_indices = @transform_8, window_bounds = array<i64: 1, 1, 32>}, {pipeline_mode = #tpu.pipeline_mode<synchronous>, transform_indices = @transform_9, window_bounds = array<i64: 1, 1, 32>}, {pipeline_mode = #tpu.pipeline_mode<synchronous>, transform_indices = @transform_10, window_bounds = array<i64: 32, 32>}, {pipeline_mode = #tpu.pipeline_mode<synchronous>, transform_indices = @transform_11, window_bounds = array<i64: 1, 32>}, {pipeline_mode = #tpu.pipeline_mode<synchronous>, transform_indices = @transform_12, window_bounds = array<i64: 2, 32, 96>}, {pipeline_mode = #tpu.pipeline_mode<synchronous>, transform_indices = @transform_13, window_bounds = array<i64: 2, 1, 96>}, {pipeline_mode = #tpu.pipeline_mode<synchronous>, transform_indices = @transform_14, window_bounds = array<i64: 2, 32, 32>}, {pipeline_mode = #tpu.pipeline_mode<synchronous>, transform_indices = @transform_15, window_bounds = array<i64: 2, 1, 32>}, {pipeline_mode = #tpu.pipeline_mode<synchronous>, transform_indices = @transform_16, window_bounds = array<i64: 2, 1, 32>}, {pipeline_mode = #tpu.pipeline_mode<synchronous>, transform_indices = @transform_17, window_bounds = array<i64: 2, 1, 32>}, {pipeline_mode = #tpu.pipeline_mode<synchronous>, transform_indices = @transform_18, window_bounds = array<i64: 2, 32, 64>}, {pipeline_mode = #tpu.pipeline_mode<synchronous>, transform_indices = @transform_19, window_bounds = array<i64: 2, 1, 64>}, {pipeline_mode = #tpu.pipeline_mode<synchronous>, transform_indices = @transform_20, window_bounds = array<i64: 2, 64, 32>}, {pipeline_mode = #tpu.pipeline_mode<synchronous>, transform_indices = @transform_21, window_bounds = array<i64: 2, 1, 32>}, {pipeline_mode = #tpu.pipeline_mode<synchronous>, transform_indices = @transform_22, window_bounds = array<i64: 2, 1, 32>}, {pipeline_mode = #tpu.pipeline_mode<synchronous>, transform_indices = @transform_23, window_bounds = array<i64: 2, 1, 32>}, {transform_indices = @transform_24, window_bounds = array<i64: 1, 32, 32>}]} {
    %c0 = arith.constant 0 : index
    %c0_0 = arith.constant 0 : index
    %c0_1 = arith.constant 0 : index
    %0 = vector.load %arg1[%c0, %c0_0, %c0_1] : memref<1x8x32xf32, #tpu.memory_space<vmem>>, vector<1x8x32xf32>
    %1 = vector.shape_cast %0 : vector<1x8x32xf32> to vector<8x32xf32>
    %cst = arith.constant 0.000000e+00 : f32
    %2 = vector.broadcast %cst : f32 to vector<1x32xf32>
    %3 = vector.extract_strided_slice %1 {offsets = [0, 0], sizes = [7, 32], strides = [1, 1]} : vector<8x32xf32> to vector<7x32xf32>
    %4 = tpu.concatenate %2, %3 in 0 : vector<1x32xf32>, vector<7x32xf32> -> vector<8x32xf32>
    %5 = vector.extract_strided_slice %1 {offsets = [1, 0], sizes = [7, 32], strides = [1, 1]} : vector<8x32xf32> to vector<7x32xf32>
    %6 = tpu.concatenate %5, %2 in 0 : vector<7x32xf32>, vector<1x32xf32> -> vector<8x32xf32>
    %7 = tpu.concatenate %4, %1, %6 in 1 : vector<8x32xf32>, vector<8x32xf32>, vector<8x32xf32> -> vector<8x96xf32>
    %c0_2 = arith.constant 0 : index
    %c0_3 = arith.constant 0 : index
    %8 = vector.load %arg2[%c0_2, %c0_3] : memref<96x32xbf16, #tpu.memory_space<vmem>>, vector<96x32xbf16>
    %9 = arith.truncf %7 : vector<8x96xf32> to vector<8x96xbf16>
    %cst_4 = arith.constant dense<0.000000e+00> : vector<8x32xf32>
    %10 = tpu.matmul %9, %8, %cst_4 {dimension_numbers = #tpu.dot_dimension_numbers<[1], [0], [0], [1], [0, 0, 1, 1], [], []>} : vector<8x96xbf16>, vector<96x32xbf16>, vector<8x32xf32> -> vector<8x32xf32>
    %c0_5 = arith.constant 0 : index
    %c0_6 = arith.constant 0 : index
    %11 = vector.load %arg4[%c0_5, %c0_6] : memref<1x32xf32, #tpu.memory_space<vmem>>, vector<1x32xf32>
    %12 = vector.broadcast %11 : vector<1x32xf32> to vector<8x32xf32>
    %13 = arith.addf %10, %12 : vector<8x32xf32>
    %14 = tpu.concatenate %1, %6 in 1 : vector<8x32xf32>, vector<8x32xf32> -> vector<8x64xf32>
    %c0_7 = arith.constant 0 : index
    %c0_8 = arith.constant 0 : index
    %15 = vector.load %arg3[%c0_7, %c0_8] : memref<64x32xbf16, #tpu.memory_space<vmem>>, vector<64x32xbf16>
    %16 = arith.truncf %14 : vector<8x64xf32> to vector<8x64xbf16>
    %cst_9 = arith.constant dense<0.000000e+00> : vector<8x32xf32>
    %17 = tpu.matmul %16, %15, %cst_9 {dimension_numbers = #tpu.dot_dimension_numbers<[1], [0], [0], [1], [0, 0, 1, 1], [], []>} : vector<8x64xbf16>, vector<64x32xbf16>, vector<8x32xf32> -> vector<8x32xf32>
    %c0_10 = arith.constant 0 : index
    %c0_11 = arith.constant 0 : index
    %18 = vector.load %arg4[%c0_10, %c0_11] : memref<1x32xf32, #tpu.memory_space<vmem>>, vector<1x32xf32>
    %19 = vector.broadcast %18 : vector<1x32xf32> to vector<8x32xf32>
    %20 = arith.addf %17, %19 : vector<8x32xf32>
    %cst_12 = arith.constant 0.000000e+00 : f32
    %21 = vector.broadcast %cst_12 : f32 to vector<8x32xf32>
    %22 = arith.cmpf oge, %13, %21 : vector<8x32xf32>
    %cst_13 = arith.constant 2.000000e-01 : f32
    %23 = vector.broadcast %cst_13 : f32 to vector<8x32xf32>
    %24 = arith.mulf %23, %13 : vector<8x32xf32>
    %25 = arith.select %22, %13, %24 : vector<8x32xi1>, vector<8x32xf32>
    %c0_14 = arith.constant 0 : index
    %c0_15 = arith.constant 0 : index
    %26 = vector.load %arg5[%c0_14, %c0_15] : memref<1x32xf32, #tpu.memory_space<vmem>>, vector<1x32xf32>
    %27 = vector.broadcast %26 : vector<1x32xf32> to vector<8x32xf32>
    %28 = arith.mulf %25, %27 : vector<8x32xf32>
    %c0_16 = arith.constant 0 : index
    %c0_17 = arith.constant 0 : index
    %29 = vector.load %arg6[%c0_16, %c0_17] : memref<1x32xf32, #tpu.memory_space<vmem>>, vector<1x32xf32>
    %30 = vector.broadcast %29 : vector<1x32xf32> to vector<8x32xf32>
    %31 = arith.addf %28, %30 : vector<8x32xf32>
    %cst_18 = arith.constant 0.000000e+00 : f32
    %32 = vector.broadcast %cst_18 : f32 to vector<8x32xf32>
    %33 = arith.cmpf oge, %20, %32 : vector<8x32xf32>
    %cst_19 = arith.constant 2.000000e-01 : f32
    %34 = vector.broadcast %cst_19 : f32 to vector<8x32xf32>
    %35 = arith.mulf %34, %20 : vector<8x32xf32>
    %36 = arith.select %33, %20, %35 : vector<8x32xi1>, vector<8x32xf32>
    %c0_20 = arith.constant 0 : index
    %c0_21 = arith.constant 0 : index
    %37 = vector.load %arg5[%c0_20, %c0_21] : memref<1x32xf32, #tpu.memory_space<vmem>>, vector<1x32xf32>
    %38 = vector.broadcast %37 : vector<1x32xf32> to vector<8x32xf32>
    %39 = arith.mulf %36, %38 : vector<8x32xf32>
    %c0_22 = arith.constant 0 : index
    %c0_23 = arith.constant 0 : index
    %40 = vector.load %arg6[%c0_22, %c0_23] : memref<1x32xf32, #tpu.memory_space<vmem>>, vector<1x32xf32>
    %41 = vector.broadcast %40 : vector<1x32xf32> to vector<8x32xf32>
    %42 = arith.addf %39, %41 : vector<8x32xf32>
    %43 = tpu.iota {dimensions = array<i32: 0>} : vector<16x8xi32>
    %44 = tpu.iota {dimensions = array<i32: 1>} : vector<16x8xi32>
    %c2_i32 = arith.constant 2 : i32
    %45 = vector.broadcast %c2_i32 : i32 to vector<16x8xi32>
    %46 = arith.muli %45, %44 : vector<16x8xi32>
    %47 = arith.cmpi eq, %43, %46 : vector<16x8xi32>
    %cst_24 = arith.constant 1.000000e+00 : f32
    %cst_25 = arith.constant 0.000000e+00 : f32
    %48 = vector.broadcast %cst_24 : f32 to vector<16x8xf32>
    %49 = vector.broadcast %cst_25 : f32 to vector<16x8xf32>
    %50 = arith.select %47, %48, %49 : vector<16x8xi1>, vector<16x8xf32>
    %51 = arith.truncf %50 : vector<16x8xf32> to vector<16x8xbf16>
    %c2_i32_26 = arith.constant 2 : i32
    %52 = vector.broadcast %c2_i32_26 : i32 to vector<16x8xi32>
    %53 = arith.muli %52, %44 : vector<16x8xi32>
    %c1_i32 = arith.constant 1 : i32
    %54 = vector.broadcast %c1_i32 : i32 to vector<16x8xi32>
    %55 = arith.addi %53, %54 : vector<16x8xi32>
    %56 = arith.cmpi eq, %43, %55 : vector<16x8xi32>
    %cst_27 = arith.constant 1.000000e+00 : f32
    %cst_28 = arith.constant 0.000000e+00 : f32
    %57 = vector.broadcast %cst_27 : f32 to vector<16x8xf32>
    %58 = vector.broadcast %cst_28 : f32 to vector<16x8xf32>
    %59 = arith.select %56, %57, %58 : vector<16x8xi1>, vector<16x8xf32>
    %60 = arith.truncf %59 : vector<16x8xf32> to vector<16x8xbf16>
    %61 = arith.truncf %31 : vector<8x32xf32> to vector<8x32xbf16>
    %cst_29 = arith.constant dense<0.000000e+00> : vector<16x32xf32>
    %62 = tpu.matmul %51, %61, %cst_29 {dimension_numbers = #tpu.dot_dimension_numbers<[1], [0], [0], [1], [0, 0, 1, 1], [], []>} : vector<16x8xbf16>, vector<8x32xbf16>, vector<16x32xf32> -> vector<16x32xf32>
    %63 = arith.truncf %42 : vector<8x32xf32> to vector<8x32xbf16>
    %cst_30 = arith.constant dense<0.000000e+00> : vector<16x32xf32>
    %64 = tpu.matmul %60, %63, %cst_30 {dimension_numbers = #tpu.dot_dimension_numbers<[1], [0], [0], [1], [0, 0, 1, 1], [], []>} : vector<16x8xbf16>, vector<8x32xbf16>, vector<16x32xf32> -> vector<16x32xf32>
    %65 = arith.addf %62, %64 : vector<16x32xf32>
    %66 = vector.extract_strided_slice %65 {offsets = [0, 0], sizes = [1, 32], strides = [1, 1]} : vector<16x32xf32> to vector<1x32xf32>
    %67 = vector.extract_strided_slice %65 {offsets = [15, 0], sizes = [1, 32], strides = [1, 1]} : vector<16x32xf32> to vector<1x32xf32>
    %68 = vector.extract_strided_slice %65 {offsets = [0, 0], sizes = [14, 32], strides = [1, 1]} : vector<16x32xf32> to vector<14x32xf32>
    %69 = tpu.concatenate %66, %66, %68 in 0 : vector<1x32xf32>, vector<1x32xf32>, vector<14x32xf32> -> vector<16x32xf32>
    %70 = vector.extract_strided_slice %65 {offsets = [0, 0], sizes = [15, 32], strides = [1, 1]} : vector<16x32xf32> to vector<15x32xf32>
    %71 = tpu.concatenate %66, %70 in 0 : vector<1x32xf32>, vector<15x32xf32> -> vector<16x32xf32>
    %72 = vector.extract_strided_slice %65 {offsets = [1, 0], sizes = [15, 32], strides = [1, 1]} : vector<16x32xf32> to vector<15x32xf32>
    %73 = tpu.concatenate %72, %67 in 0 : vector<15x32xf32>, vector<1x32xf32> -> vector<16x32xf32>
    %74 = vector.extract_strided_slice %65 {offsets = [2, 0], sizes = [14, 32], strides = [1, 1]} : vector<16x32xf32> to vector<14x32xf32>
    %75 = tpu.concatenate %74, %67, %67 in 0 : vector<14x32xf32>, vector<1x32xf32>, vector<1x32xf32> -> vector<16x32xf32>
    %76 = tpu.concatenate %69, %71, %65, %73, %75 in 1 : vector<16x32xf32>, vector<16x32xf32>, vector<16x32xf32>, vector<16x32xf32>, vector<16x32xf32> -> vector<16x160xf32>
    %c0_31 = arith.constant 0 : index
    %c0_32 = arith.constant 0 : index
    %c0_33 = arith.constant 0 : index
    %77 = vector.load %arg7[%c0_31, %c0_32, %c0_33] : memref<1x160x32xbf16, #tpu.memory_space<vmem>>, vector<1x160x32xbf16>
    %78 = vector.shape_cast %77 : vector<1x160x32xbf16> to vector<160x32xbf16>
    %79 = arith.truncf %76 : vector<16x160xf32> to vector<16x160xbf16>
    %cst_34 = arith.constant dense<0.000000e+00> : vector<16x32xf32>
    %80 = tpu.matmul %79, %78, %cst_34 {dimension_numbers = #tpu.dot_dimension_numbers<[1], [0], [0], [1], [0, 0, 1, 1], [], []>} : vector<16x160xbf16>, vector<160x32xbf16>, vector<16x32xf32> -> vector<16x32xf32>
    %c0_35 = arith.constant 0 : index
    %c0_36 = arith.constant 0 : index
    %c0_37 = arith.constant 0 : index
    %81 = vector.load %arg8[%c0_35, %c0_36, %c0_37] : memref<1x1x32xf32, #tpu.memory_space<vmem>>, vector<1x1x32xf32>
    %82 = vector.shape_cast %81 : vector<1x1x32xf32> to vector<1x32xf32>
    %83 = vector.broadcast %82 : vector<1x32xf32> to vector<16x32xf32>
    %84 = arith.addf %80, %83 : vector<16x32xf32>
    %cst_38 = arith.constant 0.000000e+00 : f32
    %85 = vector.broadcast %cst_38 : f32 to vector<16x32xf32>
    %86 = arith.cmpf oge, %84, %85 : vector<16x32xf32>
    %cst_39 = arith.constant 2.000000e-01 : f32
    %87 = vector.broadcast %cst_39 : f32 to vector<16x32xf32>
    %88 = arith.mulf %87, %84 : vector<16x32xf32>
    %89 = arith.select %86, %84, %88 : vector<16x32xi1>, vector<16x32xf32>
    %c0_40 = arith.constant 0 : index
    %c0_41 = arith.constant 0 : index
    %c0_42 = arith.constant 0 : index
    %90 = vector.load %arg9[%c0_40, %c0_41, %c0_42] : memref<1x1x32xf32, #tpu.memory_space<vmem>>, vector<1x1x32xf32>
    %91 = vector.shape_cast %90 : vector<1x1x32xf32> to vector<1x32xf32>
    %92 = vector.broadcast %91 : vector<1x32xf32> to vector<16x32xf32>
    %93 = arith.mulf %89, %92 : vector<16x32xf32>
    %c0_43 = arith.constant 0 : index
    %c0_44 = arith.constant 0 : index
    %c0_45 = arith.constant 0 : index
    %94 = vector.load %arg10[%c0_43, %c0_44, %c0_45] : memref<1x1x32xf32, #tpu.memory_space<vmem>>, vector<1x1x32xf32>
    %95 = vector.shape_cast %94 : vector<1x1x32xf32> to vector<1x32xf32>
    %96 = vector.broadcast %95 : vector<1x32xf32> to vector<16x32xf32>
    %97 = arith.addf %93, %96 : vector<16x32xf32>
    %98 = tpu.iota {dimensions = array<i32: 0>} : vector<32x16xi32>
    %99 = tpu.iota {dimensions = array<i32: 1>} : vector<32x16xi32>
    %c2_i32_46 = arith.constant 2 : i32
    %100 = vector.broadcast %c2_i32_46 : i32 to vector<32x16xi32>
    %101 = arith.muli %100, %99 : vector<32x16xi32>
    %102 = arith.cmpi eq, %98, %101 : vector<32x16xi32>
    %c2_i32_47 = arith.constant 2 : i32
    %103 = vector.broadcast %c2_i32_47 : i32 to vector<32x16xi32>
    %104 = arith.muli %103, %99 : vector<32x16xi32>
    %c1_i32_48 = arith.constant 1 : i32
    %105 = vector.broadcast %c1_i32_48 : i32 to vector<32x16xi32>
    %106 = arith.addi %104, %105 : vector<32x16xi32>
    %107 = arith.cmpi eq, %98, %106 : vector<32x16xi32>
    %108 = arith.ori %102, %107 : vector<32x16xi1>
    %cst_49 = arith.constant 1.000000e+00 : f32
    %cst_50 = arith.constant 0.000000e+00 : f32
    %109 = vector.broadcast %cst_49 : f32 to vector<32x16xf32>
    %110 = vector.broadcast %cst_50 : f32 to vector<32x16xf32>
    %111 = arith.select %108, %109, %110 : vector<32x16xi1>, vector<32x16xf32>
    %112 = arith.truncf %111 : vector<32x16xf32> to vector<32x16xbf16>
    %113 = arith.truncf %97 : vector<16x32xf32> to vector<16x32xbf16>
    %cst_51 = arith.constant dense<0.000000e+00> : vector<32x32xf32>
    %114 = tpu.matmul %112, %113, %cst_51 {dimension_numbers = #tpu.dot_dimension_numbers<[1], [0], [0], [1], [0, 0, 1, 1], [], []>} : vector<32x16xbf16>, vector<16x32xbf16>, vector<32x32xf32> -> vector<32x32xf32>
    %c0_52 = arith.constant 0 : index
    %c0_53 = arith.constant 0 : index
    %115 = vector.load %arg11[%c0_52, %c0_53] : memref<32x32xbf16, #tpu.memory_space<vmem>>, vector<32x32xbf16>
    %116 = arith.truncf %114 : vector<32x32xf32> to vector<32x32xbf16>
    %cst_54 = arith.constant dense<0.000000e+00> : vector<32x32xf32>
    %117 = tpu.matmul %116, %115, %cst_54 {dimension_numbers = #tpu.dot_dimension_numbers<[1], [0], [0], [1], [0, 0, 1, 1], [], []>} : vector<32x32xbf16>, vector<32x32xbf16>, vector<32x32xf32> -> vector<32x32xf32>
    %c0_55 = arith.constant 0 : index
    %c0_56 = arith.constant 0 : index
    %118 = vector.load %arg12[%c0_55, %c0_56] : memref<1x32xf32, #tpu.memory_space<vmem>>, vector<1x32xf32>
    %119 = vector.broadcast %118 : vector<1x32xf32> to vector<32x32xf32>
    %120 = arith.addf %117, %119 : vector<32x32xf32>
    %c0_57 = arith.constant 0 : index
    %c0_58 = arith.constant 0 : index
    %c0_59 = arith.constant 0 : index
    %121 = vector.load %arg13[%c0_57, %c0_58, %c0_59] : memref<2x32x96xbf16, #tpu.memory_space<vmem>>, vector<1x32x96xbf16>
    %122 = vector.shape_cast %121 : vector<1x32x96xbf16> to vector<32x96xbf16>
    %123 = arith.truncf %120 : vector<32x32xf32> to vector<32x32xbf16>
    %cst_60 = arith.constant dense<0.000000e+00> : vector<32x96xf32>
    %124 = tpu.matmul %123, %122, %cst_60 {dimension_numbers = #tpu.dot_dimension_numbers<[1], [0], [0], [1], [0, 0, 1, 1], [], []>} : vector<32x32xbf16>, vector<32x96xbf16>, vector<32x96xf32> -> vector<32x96xf32>
    %c0_61 = arith.constant 0 : index
    %c0_62 = arith.constant 0 : index
    %c0_63 = arith.constant 0 : index
    %125 = vector.load %arg14[%c0_61, %c0_62, %c0_63] : memref<2x1x96xf32, #tpu.memory_space<vmem>>, vector<1x1x96xf32>
    %126 = vector.shape_cast %125 : vector<1x1x96xf32> to vector<1x96xf32>
    %127 = vector.broadcast %126 : vector<1x96xf32> to vector<32x96xf32>
    %128 = arith.addf %124, %127 : vector<32x96xf32>
    %129 = vector.extract_strided_slice %128 {offsets = [0, 0], sizes = [32, 32], strides = [1, 1]} : vector<32x96xf32> to vector<32x32xf32>
    %130 = vector.extract_strided_slice %129 {offsets = [0, 0], sizes = [32, 16], strides = [1, 1]} : vector<32x32xf32> to vector<32x16xf32>
    %131 = vector.extract_strided_slice %129 {offsets = [0, 16], sizes = [32, 16], strides = [1, 1]} : vector<32x32xf32> to vector<32x16xf32>
    %132 = vector.shape_cast %130 : vector<32x16xf32> to vector<1x32x16xf32>
    %133 = vector.shape_cast %131 : vector<32x16xf32> to vector<1x32x16xf32>
    %134 = tpu.concatenate %132, %133 in 0 : vector<1x32x16xf32>, vector<1x32x16xf32> -> vector<2x32x16xf32>
    %135 = vector.extract_strided_slice %128 {offsets = [0, 32], sizes = [32, 32], strides = [1, 1]} : vector<32x96xf32> to vector<32x32xf32>
    %136 = vector.extract_strided_slice %135 {offsets = [0, 0], sizes = [32, 16], strides = [1, 1]} : vector<32x32xf32> to vector<32x16xf32>
    %137 = vector.extract_strided_slice %135 {offsets = [0, 16], sizes = [32, 16], strides = [1, 1]} : vector<32x32xf32> to vector<32x16xf32>
    %138 = vector.shape_cast %136 : vector<32x16xf32> to vector<1x32x16xf32>
    %139 = vector.shape_cast %137 : vector<32x16xf32> to vector<1x32x16xf32>
    %140 = tpu.concatenate %138, %139 in 0 : vector<1x32x16xf32>, vector<1x32x16xf32> -> vector<2x32x16xf32>
    %141 = vector.extract_strided_slice %128 {offsets = [0, 64], sizes = [32, 32], strides = [1, 1]} : vector<32x96xf32> to vector<32x32xf32>
    %142 = vector.extract_strided_slice %141 {offsets = [0, 0], sizes = [32, 16], strides = [1, 1]} : vector<32x32xf32> to vector<32x16xf32>
    %143 = vector.extract_strided_slice %141 {offsets = [0, 16], sizes = [32, 16], strides = [1, 1]} : vector<32x32xf32> to vector<32x16xf32>
    %144 = vector.shape_cast %142 : vector<32x16xf32> to vector<1x32x16xf32>
    %145 = vector.shape_cast %143 : vector<32x16xf32> to vector<1x32x16xf32>
    %146 = tpu.concatenate %144, %145 in 0 : vector<1x32x16xf32>, vector<1x32x16xf32> -> vector<2x32x16xf32>
    %147 = arith.truncf %134 : vector<2x32x16xf32> to vector<2x32x16xbf16>
    %148 = arith.truncf %140 : vector<2x32x16xf32> to vector<2x32x16xbf16>
    "tpu.trace_start"() <{level = 10 : i32, message = "hqd,hkd->hqk"}> : () -> ()
    %cst_64 = arith.constant dense<0.000000e+00> : vector<2x32x32xf32>
    %149 = tpu.matmul %147, %148, %cst_64 {dimension_numbers = #tpu.dot_dimension_numbers<[2], [2], [1], [1], [0, 0, 0, 1, 1, 1], [0], [0]>} : vector<2x32x16xbf16>, vector<2x32x16xbf16>, vector<2x32x32xf32> -> vector<2x32x32xf32>
    "tpu.trace_stop"() : () -> ()
    %cst_65 = arith.constant 2.500000e-01 : f32
    %150 = vector.broadcast %cst_65 : f32 to vector<2x32x32xf32>
    %151 = arith.mulf %149, %150 : vector<2x32x32xf32>
    %cst_66 = arith.constant dense<0xFF800000> : vector<2x32xf32>
    %152 = vector.multi_reduction <maximumf>, %151, %cst_66 [2] : vector<2x32x32xf32> to vector<2x32xf32>
    %153 = vector.shape_cast %152 : vector<2x32xf32> to vector<2x32x1xf32>
    %154 = vector.broadcast %153 : vector<2x32x1xf32> to vector<2x32x32xf32>
    %155 = arith.subf %151, %154 : vector<2x32x32xf32>
    %156 = math.exp %155 : vector<2x32x32xf32>
    %cst_67 = arith.constant dense<0.000000e+00> : vector<2x32xf32>
    %157 = vector.multi_reduction <add>, %156, %cst_67 [2] : vector<2x32x32xf32> to vector<2x32xf32>
    %158 = vector.shape_cast %157 : vector<2x32xf32> to vector<2x32x1xf32>
    %159 = tpu.reciprocal %158 {approx = true} : vector<2x32x1xf32> -> vector<2x32x1xf32>
    %160 = vector.broadcast %159 : vector<2x32x1xf32> to vector<2x32x32xf32>
    %161 = arith.mulf %156, %160 : vector<2x32x32xf32>
    %162 = arith.truncf %161 : vector<2x32x32xf32> to vector<2x32x32xbf16>
    %163 = arith.truncf %146 : vector<2x32x16xf32> to vector<2x32x16xbf16>
    "tpu.trace_start"() <{level = 10 : i32, message = "hqk,hkd->hqd"}> : () -> ()
    %cst_68 = arith.constant dense<0.000000e+00> : vector<2x32x16xf32>
    %164 = tpu.matmul %162, %163, %cst_68 {dimension_numbers = #tpu.dot_dimension_numbers<[2], [1], [1], [2], [0, 0, 0, 1, 1, 2], [0], [0]>} : vector<2x32x32xbf16>, vector<2x32x16xbf16>, vector<2x32x16xf32> -> vector<2x32x16xf32>
    "tpu.trace_stop"() : () -> ()
    %165 = vector.extract_strided_slice %164 {offsets = [0, 0, 0], sizes = [1, 32, 16], strides = [1, 1, 1]} : vector<2x32x16xf32> to vector<1x32x16xf32>
    %166 = vector.shape_cast %165 : vector<1x32x16xf32> to vector<32x16xf32>
    %167 = vector.extract_strided_slice %164 {offsets = [1, 0, 0], sizes = [1, 32, 16], strides = [1, 1, 1]} : vector<2x32x16xf32> to vector<1x32x16xf32>
    %168 = vector.shape_cast %167 : vector<1x32x16xf32> to vector<32x16xf32>
    %169 = tpu.concatenate %166, %168 in 1 : vector<32x16xf32>, vector<32x16xf32> -> vector<32x32xf32>
    %c0_69 = arith.constant 0 : index
    %c0_70 = arith.constant 0 : index
    %c0_71 = arith.constant 0 : index
    %170 = vector.load %arg15[%c0_69, %c0_70, %c0_71] : memref<2x32x32xbf16, #tpu.memory_space<vmem>>, vector<1x32x32xbf16>
    %171 = vector.shape_cast %170 : vector<1x32x32xbf16> to vector<32x32xbf16>
    %172 = arith.truncf %169 : vector<32x32xf32> to vector<32x32xbf16>
    %cst_72 = arith.constant dense<0.000000e+00> : vector<32x32xf32>
    %173 = tpu.matmul %172, %171, %cst_72 {dimension_numbers = #tpu.dot_dimension_numbers<[1], [0], [0], [1], [0, 0, 1, 1], [], []>} : vector<32x32xbf16>, vector<32x32xbf16>, vector<32x32xf32> -> vector<32x32xf32>
    %c0_73 = arith.constant 0 : index
    %c0_74 = arith.constant 0 : index
    %c0_75 = arith.constant 0 : index
    %174 = vector.load %arg16[%c0_73, %c0_74, %c0_75] : memref<2x1x32xf32, #tpu.memory_space<vmem>>, vector<1x1x32xf32>
    %175 = vector.shape_cast %174 : vector<1x1x32xf32> to vector<1x32xf32>
    %176 = vector.broadcast %175 : vector<1x32xf32> to vector<32x32xf32>
    %177 = arith.addf %173, %176 : vector<32x32xf32>
    %178 = arith.addf %120, %177 : vector<32x32xf32>
    %c0_76 = arith.constant 0 : index
    %c0_77 = arith.constant 0 : index
    %c0_78 = arith.constant 0 : index
    %179 = vector.load %arg17[%c0_76, %c0_77, %c0_78] : memref<2x1x32xf32, #tpu.memory_space<vmem>>, vector<1x1x32xf32>
    %180 = vector.shape_cast %179 : vector<1x1x32xf32> to vector<1x32xf32>
    %c0_79 = arith.constant 0 : index
    %c0_80 = arith.constant 0 : index
    %c0_81 = arith.constant 0 : index
    %181 = vector.load %arg18[%c0_79, %c0_80, %c0_81] : memref<2x1x32xf32, #tpu.memory_space<vmem>>, vector<1x1x32xf32>
    %182 = vector.shape_cast %181 : vector<1x1x32xf32> to vector<1x32xf32>
    %cst_82 = arith.constant dense<0.000000e+00> : vector<32xf32>
    %183 = vector.multi_reduction <add>, %178, %cst_82 [1] : vector<32x32xf32> to vector<32xf32>
    %184 = vector.shape_cast %183 : vector<32xf32> to vector<32x1xf32>
    %cst_83 = arith.constant 3.200000e+01 : f32
    %185 = vector.broadcast %cst_83 : f32 to vector<32x1xf32>
    %186 = arith.divf %184, %185 : vector<32x1xf32>
    %187 = vector.broadcast %186 : vector<32x1xf32> to vector<32x32xf32>
    %188 = arith.subf %178, %187 : vector<32x32xf32>
    %189 = arith.mulf %188, %188 : vector<32x32xf32>
    %cst_84 = arith.constant dense<0.000000e+00> : vector<32xf32>
    %190 = vector.multi_reduction <add>, %189, %cst_84 [1] : vector<32x32xf32> to vector<32xf32>
    %191 = vector.shape_cast %190 : vector<32xf32> to vector<32x1xf32>
    %cst_85 = arith.constant 3.200000e+01 : f32
    %192 = vector.broadcast %cst_85 : f32 to vector<32x1xf32>
    %193 = arith.divf %191, %192 : vector<32x1xf32>
    %cst_86 = arith.constant 9.99999974E-6 : f32
    %194 = vector.broadcast %cst_86 : f32 to vector<32x1xf32>
    %195 = arith.addf %193, %194 : vector<32x1xf32>
    %196 = math.rsqrt %195 : vector<32x1xf32>
    %197 = vector.broadcast %196 : vector<32x1xf32> to vector<32x32xf32>
    %198 = arith.mulf %188, %197 : vector<32x32xf32>
    %199 = vector.broadcast %180 : vector<1x32xf32> to vector<32x32xf32>
    %200 = arith.mulf %198, %199 : vector<32x32xf32>
    %201 = vector.broadcast %182 : vector<1x32xf32> to vector<32x32xf32>
    %202 = arith.addf %200, %201 : vector<32x32xf32>
    %c0_87 = arith.constant 0 : index
    %c0_88 = arith.constant 0 : index
    %c0_89 = arith.constant 0 : index
    %203 = vector.load %arg19[%c0_87, %c0_88, %c0_89] : memref<2x32x64xbf16, #tpu.memory_space<vmem>>, vector<1x32x64xbf16>
    %204 = vector.shape_cast %203 : vector<1x32x64xbf16> to vector<32x64xbf16>
    %205 = arith.truncf %202 : vector<32x32xf32> to vector<32x32xbf16>
    %cst_90 = arith.constant dense<0.000000e+00> : vector<32x64xf32>
    %206 = tpu.matmul %205, %204, %cst_90 {dimension_numbers = #tpu.dot_dimension_numbers<[1], [0], [0], [1], [0, 0, 1, 1], [], []>} : vector<32x32xbf16>, vector<32x64xbf16>, vector<32x64xf32> -> vector<32x64xf32>
    %c0_91 = arith.constant 0 : index
    %c0_92 = arith.constant 0 : index
    %c0_93 = arith.constant 0 : index
    %207 = vector.load %arg20[%c0_91, %c0_92, %c0_93] : memref<2x1x64xf32, #tpu.memory_space<vmem>>, vector<1x1x64xf32>
    %208 = vector.shape_cast %207 : vector<1x1x64xf32> to vector<1x64xf32>
    %209 = vector.broadcast %208 : vector<1x64xf32> to vector<32x64xf32>
    %210 = arith.addf %206, %209 : vector<32x64xf32>
    %cst_94 = arith.constant 5.000000e-01 : f32
    %211 = vector.broadcast %cst_94 : f32 to vector<32x64xf32>
    %212 = arith.mulf %211, %210 : vector<32x64xf32>
    %cst_95 = arith.constant 0.707106769 : f32
    %213 = vector.broadcast %cst_95 : f32 to vector<32x64xf32>
    %214 = arith.mulf %210, %213 : vector<32x64xf32>
    %cst_96 = arith.constant 0.000000e+00 : f32
    %215 = vector.broadcast %cst_96 : f32 to vector<32x64xf32>
    %216 = arith.cmpf oge, %214, %215 : vector<32x64xf32>
    %cst_97 = arith.constant 1.000000e+00 : f32
    %cst_98 = arith.constant -1.000000e+00 : f32
    %217 = vector.broadcast %cst_97 : f32 to vector<32x64xf32>
    %218 = vector.broadcast %cst_98 : f32 to vector<32x64xf32>
    %219 = arith.select %216, %217, %218 : vector<32x64xi1>, vector<32x64xf32>
    %220 = math.absf %214 : vector<32x64xf32>
    %cst_99 = arith.constant 0.327591091 : f32
    %221 = vector.broadcast %cst_99 : f32 to vector<32x64xf32>
    %222 = arith.mulf %221, %220 : vector<32x64xf32>
    %cst_100 = arith.constant 1.000000e+00 : f32
    %223 = vector.broadcast %cst_100 : f32 to vector<32x64xf32>
    %224 = arith.addf %223, %222 : vector<32x64xf32>
    %cst_101 = arith.constant 1.000000e+00 : f32
    %225 = vector.broadcast %cst_101 : f32 to vector<32x64xf32>
    %226 = arith.divf %225, %224 : vector<32x64xf32>
    %cst_102 = arith.constant 1.06140542 : f32
    %227 = vector.broadcast %cst_102 : f32 to vector<32x64xf32>
    %228 = arith.mulf %227, %226 : vector<32x64xf32>
    %cst_103 = arith.constant -1.45315206 : f32
    %229 = vector.broadcast %cst_103 : f32 to vector<32x64xf32>
    %230 = arith.addf %228, %229 : vector<32x64xf32>
    %231 = arith.mulf %230, %226 : vector<32x64xf32>
    %cst_104 = arith.constant 1.42141378 : f32
    %232 = vector.broadcast %cst_104 : f32 to vector<32x64xf32>
    %233 = arith.addf %231, %232 : vector<32x64xf32>
    %234 = arith.mulf %233, %226 : vector<32x64xf32>
    %cst_105 = arith.constant -0.284496725 : f32
    %235 = vector.broadcast %cst_105 : f32 to vector<32x64xf32>
    %236 = arith.addf %234, %235 : vector<32x64xf32>
    %237 = arith.mulf %236, %226 : vector<32x64xf32>
    %cst_106 = arith.constant 0.254829586 : f32
    %238 = vector.broadcast %cst_106 : f32 to vector<32x64xf32>
    %239 = arith.addf %237, %238 : vector<32x64xf32>
    %240 = arith.mulf %239, %226 : vector<32x64xf32>
    %cst_107 = arith.constant 0.000000e+00 : f32
    %241 = vector.broadcast %cst_107 : f32 to vector<32x64xf32>
    %242 = arith.subf %241, %220 : vector<32x64xf32>
    %243 = arith.mulf %242, %220 : vector<32x64xf32>
    %244 = math.exp %243 : vector<32x64xf32>
    %245 = arith.mulf %240, %244 : vector<32x64xf32>
    %cst_108 = arith.constant 1.000000e+00 : f32
    %246 = vector.broadcast %cst_108 : f32 to vector<32x64xf32>
    %247 = arith.subf %246, %245 : vector<32x64xf32>
    %248 = arith.mulf %219, %247 : vector<32x64xf32>
    %cst_109 = arith.constant 1.000000e+00 : f32
    %249 = vector.broadcast %cst_109 : f32 to vector<32x64xf32>
    %250 = arith.addf %249, %248 : vector<32x64xf32>
    %251 = arith.mulf %212, %250 : vector<32x64xf32>
    %c0_110 = arith.constant 0 : index
    %c0_111 = arith.constant 0 : index
    %c0_112 = arith.constant 0 : index
    %252 = vector.load %arg21[%c0_110, %c0_111, %c0_112] : memref<2x64x32xbf16, #tpu.memory_space<vmem>>, vector<1x64x32xbf16>
    %253 = vector.shape_cast %252 : vector<1x64x32xbf16> to vector<64x32xbf16>
    %254 = arith.truncf %251 : vector<32x64xf32> to vector<32x64xbf16>
    %cst_113 = arith.constant dense<0.000000e+00> : vector<32x32xf32>
    %255 = tpu.matmul %254, %253, %cst_113 {dimension_numbers = #tpu.dot_dimension_numbers<[1], [0], [0], [1], [0, 0, 1, 1], [], []>} : vector<32x64xbf16>, vector<64x32xbf16>, vector<32x32xf32> -> vector<32x32xf32>
    %c0_114 = arith.constant 0 : index
    %c0_115 = arith.constant 0 : index
    %c0_116 = arith.constant 0 : index
    %256 = vector.load %arg22[%c0_114, %c0_115, %c0_116] : memref<2x1x32xf32, #tpu.memory_space<vmem>>, vector<1x1x32xf32>
    %257 = vector.shape_cast %256 : vector<1x1x32xf32> to vector<1x32xf32>
    %258 = vector.broadcast %257 : vector<1x32xf32> to vector<32x32xf32>
    %259 = arith.addf %255, %258 : vector<32x32xf32>
    %260 = arith.addf %202, %259 : vector<32x32xf32>
    %c0_117 = arith.constant 0 : index
    %c0_118 = arith.constant 0 : index
    %c0_119 = arith.constant 0 : index
    %261 = vector.load %arg23[%c0_117, %c0_118, %c0_119] : memref<2x1x32xf32, #tpu.memory_space<vmem>>, vector<1x1x32xf32>
    %262 = vector.shape_cast %261 : vector<1x1x32xf32> to vector<1x32xf32>
    %c0_120 = arith.constant 0 : index
    %c0_121 = arith.constant 0 : index
    %c0_122 = arith.constant 0 : index
    %263 = vector.load %arg24[%c0_120, %c0_121, %c0_122] : memref<2x1x32xf32, #tpu.memory_space<vmem>>, vector<1x1x32xf32>
    %264 = vector.shape_cast %263 : vector<1x1x32xf32> to vector<1x32xf32>
    %cst_123 = arith.constant dense<0.000000e+00> : vector<32xf32>
    %265 = vector.multi_reduction <add>, %260, %cst_123 [1] : vector<32x32xf32> to vector<32xf32>
    %266 = vector.shape_cast %265 : vector<32xf32> to vector<32x1xf32>
    %cst_124 = arith.constant 3.200000e+01 : f32
    %267 = vector.broadcast %cst_124 : f32 to vector<32x1xf32>
    %268 = arith.divf %266, %267 : vector<32x1xf32>
    %269 = vector.broadcast %268 : vector<32x1xf32> to vector<32x32xf32>
    %270 = arith.subf %260, %269 : vector<32x32xf32>
    %271 = arith.mulf %270, %270 : vector<32x32xf32>
    %cst_125 = arith.constant dense<0.000000e+00> : vector<32xf32>
    %272 = vector.multi_reduction <add>, %271, %cst_125 [1] : vector<32x32xf32> to vector<32xf32>
    %273 = vector.shape_cast %272 : vector<32xf32> to vector<32x1xf32>
    %cst_126 = arith.constant 3.200000e+01 : f32
    %274 = vector.broadcast %cst_126 : f32 to vector<32x1xf32>
    %275 = arith.divf %273, %274 : vector<32x1xf32>
    %cst_127 = arith.constant 9.99999974E-6 : f32
    %276 = vector.broadcast %cst_127 : f32 to vector<32x1xf32>
    %277 = arith.addf %275, %276 : vector<32x1xf32>
    %278 = math.rsqrt %277 : vector<32x1xf32>
    %279 = vector.broadcast %278 : vector<32x1xf32> to vector<32x32xf32>
    %280 = arith.mulf %270, %279 : vector<32x32xf32>
    %281 = vector.broadcast %262 : vector<1x32xf32> to vector<32x32xf32>
    %282 = arith.mulf %280, %281 : vector<32x32xf32>
    %283 = vector.broadcast %264 : vector<1x32xf32> to vector<32x32xf32>
    %284 = arith.addf %282, %283 : vector<32x32xf32>
    %c1 = arith.constant 1 : index
    %c0_128 = arith.constant 0 : index
    %c0_129 = arith.constant 0 : index
    %285 = vector.load %arg13[%c1, %c0_128, %c0_129] : memref<2x32x96xbf16, #tpu.memory_space<vmem>>, vector<1x32x96xbf16>
    %286 = vector.shape_cast %285 : vector<1x32x96xbf16> to vector<32x96xbf16>
    %287 = arith.truncf %284 : vector<32x32xf32> to vector<32x32xbf16>
    %cst_130 = arith.constant dense<0.000000e+00> : vector<32x96xf32>
    %288 = tpu.matmul %287, %286, %cst_130 {dimension_numbers = #tpu.dot_dimension_numbers<[1], [0], [0], [1], [0, 0, 1, 1], [], []>} : vector<32x32xbf16>, vector<32x96xbf16>, vector<32x96xf32> -> vector<32x96xf32>
    %c1_131 = arith.constant 1 : index
    %c0_132 = arith.constant 0 : index
    %c0_133 = arith.constant 0 : index
    %289 = vector.load %arg14[%c1_131, %c0_132, %c0_133] : memref<2x1x96xf32, #tpu.memory_space<vmem>>, vector<1x1x96xf32>
    %290 = vector.shape_cast %289 : vector<1x1x96xf32> to vector<1x96xf32>
    %291 = vector.broadcast %290 : vector<1x96xf32> to vector<32x96xf32>
    %292 = arith.addf %288, %291 : vector<32x96xf32>
    %293 = vector.extract_strided_slice %292 {offsets = [0, 0], sizes = [32, 32], strides = [1, 1]} : vector<32x96xf32> to vector<32x32xf32>
    %294 = vector.extract_strided_slice %293 {offsets = [0, 0], sizes = [32, 16], strides = [1, 1]} : vector<32x32xf32> to vector<32x16xf32>
    %295 = vector.extract_strided_slice %293 {offsets = [0, 16], sizes = [32, 16], strides = [1, 1]} : vector<32x32xf32> to vector<32x16xf32>
    %296 = vector.shape_cast %294 : vector<32x16xf32> to vector<1x32x16xf32>
    %297 = vector.shape_cast %295 : vector<32x16xf32> to vector<1x32x16xf32>
    %298 = tpu.concatenate %296, %297 in 0 : vector<1x32x16xf32>, vector<1x32x16xf32> -> vector<2x32x16xf32>
    %299 = vector.extract_strided_slice %292 {offsets = [0, 32], sizes = [32, 32], strides = [1, 1]} : vector<32x96xf32> to vector<32x32xf32>
    %300 = vector.extract_strided_slice %299 {offsets = [0, 0], sizes = [32, 16], strides = [1, 1]} : vector<32x32xf32> to vector<32x16xf32>
    %301 = vector.extract_strided_slice %299 {offsets = [0, 16], sizes = [32, 16], strides = [1, 1]} : vector<32x32xf32> to vector<32x16xf32>
    %302 = vector.shape_cast %300 : vector<32x16xf32> to vector<1x32x16xf32>
    %303 = vector.shape_cast %301 : vector<32x16xf32> to vector<1x32x16xf32>
    %304 = tpu.concatenate %302, %303 in 0 : vector<1x32x16xf32>, vector<1x32x16xf32> -> vector<2x32x16xf32>
    %305 = vector.extract_strided_slice %292 {offsets = [0, 64], sizes = [32, 32], strides = [1, 1]} : vector<32x96xf32> to vector<32x32xf32>
    %306 = vector.extract_strided_slice %305 {offsets = [0, 0], sizes = [32, 16], strides = [1, 1]} : vector<32x32xf32> to vector<32x16xf32>
    %307 = vector.extract_strided_slice %305 {offsets = [0, 16], sizes = [32, 16], strides = [1, 1]} : vector<32x32xf32> to vector<32x16xf32>
    %308 = vector.shape_cast %306 : vector<32x16xf32> to vector<1x32x16xf32>
    %309 = vector.shape_cast %307 : vector<32x16xf32> to vector<1x32x16xf32>
    %310 = tpu.concatenate %308, %309 in 0 : vector<1x32x16xf32>, vector<1x32x16xf32> -> vector<2x32x16xf32>
    %311 = arith.truncf %298 : vector<2x32x16xf32> to vector<2x32x16xbf16>
    %312 = arith.truncf %304 : vector<2x32x16xf32> to vector<2x32x16xbf16>
    "tpu.trace_start"() <{level = 10 : i32, message = "hqd,hkd->hqk"}> : () -> ()
    %cst_134 = arith.constant dense<0.000000e+00> : vector<2x32x32xf32>
    %313 = tpu.matmul %311, %312, %cst_134 {dimension_numbers = #tpu.dot_dimension_numbers<[2], [2], [1], [1], [0, 0, 0, 1, 1, 1], [0], [0]>} : vector<2x32x16xbf16>, vector<2x32x16xbf16>, vector<2x32x32xf32> -> vector<2x32x32xf32>
    "tpu.trace_stop"() : () -> ()
    %cst_135 = arith.constant 2.500000e-01 : f32
    %314 = vector.broadcast %cst_135 : f32 to vector<2x32x32xf32>
    %315 = arith.mulf %313, %314 : vector<2x32x32xf32>
    %cst_136 = arith.constant dense<0xFF800000> : vector<2x32xf32>
    %316 = vector.multi_reduction <maximumf>, %315, %cst_136 [2] : vector<2x32x32xf32> to vector<2x32xf32>
    %317 = vector.shape_cast %316 : vector<2x32xf32> to vector<2x32x1xf32>
    %318 = vector.broadcast %317 : vector<2x32x1xf32> to vector<2x32x32xf32>
    %319 = arith.subf %315, %318 : vector<2x32x32xf32>
    %320 = math.exp %319 : vector<2x32x32xf32>
    %cst_137 = arith.constant dense<0.000000e+00> : vector<2x32xf32>
    %321 = vector.multi_reduction <add>, %320, %cst_137 [2] : vector<2x32x32xf32> to vector<2x32xf32>
    %322 = vector.shape_cast %321 : vector<2x32xf32> to vector<2x32x1xf32>
    %323 = tpu.reciprocal %322 {approx = true} : vector<2x32x1xf32> -> vector<2x32x1xf32>
    %324 = vector.broadcast %323 : vector<2x32x1xf32> to vector<2x32x32xf32>
    %325 = arith.mulf %320, %324 : vector<2x32x32xf32>
    %326 = arith.truncf %325 : vector<2x32x32xf32> to vector<2x32x32xbf16>
    %327 = arith.truncf %310 : vector<2x32x16xf32> to vector<2x32x16xbf16>
    "tpu.trace_start"() <{level = 10 : i32, message = "hqk,hkd->hqd"}> : () -> ()
    %cst_138 = arith.constant dense<0.000000e+00> : vector<2x32x16xf32>
    %328 = tpu.matmul %326, %327, %cst_138 {dimension_numbers = #tpu.dot_dimension_numbers<[2], [1], [1], [2], [0, 0, 0, 1, 1, 2], [0], [0]>} : vector<2x32x32xbf16>, vector<2x32x16xbf16>, vector<2x32x16xf32> -> vector<2x32x16xf32>
    "tpu.trace_stop"() : () -> ()
    %329 = vector.extract_strided_slice %328 {offsets = [0, 0, 0], sizes = [1, 32, 16], strides = [1, 1, 1]} : vector<2x32x16xf32> to vector<1x32x16xf32>
    %330 = vector.shape_cast %329 : vector<1x32x16xf32> to vector<32x16xf32>
    %331 = vector.extract_strided_slice %328 {offsets = [1, 0, 0], sizes = [1, 32, 16], strides = [1, 1, 1]} : vector<2x32x16xf32> to vector<1x32x16xf32>
    %332 = vector.shape_cast %331 : vector<1x32x16xf32> to vector<32x16xf32>
    %333 = tpu.concatenate %330, %332 in 1 : vector<32x16xf32>, vector<32x16xf32> -> vector<32x32xf32>
    %c1_139 = arith.constant 1 : index
    %c0_140 = arith.constant 0 : index
    %c0_141 = arith.constant 0 : index
    %334 = vector.load %arg15[%c1_139, %c0_140, %c0_141] : memref<2x32x32xbf16, #tpu.memory_space<vmem>>, vector<1x32x32xbf16>
    %335 = vector.shape_cast %334 : vector<1x32x32xbf16> to vector<32x32xbf16>
    %336 = arith.truncf %333 : vector<32x32xf32> to vector<32x32xbf16>
    %cst_142 = arith.constant dense<0.000000e+00> : vector<32x32xf32>
    %337 = tpu.matmul %336, %335, %cst_142 {dimension_numbers = #tpu.dot_dimension_numbers<[1], [0], [0], [1], [0, 0, 1, 1], [], []>} : vector<32x32xbf16>, vector<32x32xbf16>, vector<32x32xf32> -> vector<32x32xf32>
    %c1_143 = arith.constant 1 : index
    %c0_144 = arith.constant 0 : index
    %c0_145 = arith.constant 0 : index
    %338 = vector.load %arg16[%c1_143, %c0_144, %c0_145] : memref<2x1x32xf32, #tpu.memory_space<vmem>>, vector<1x1x32xf32>
    %339 = vector.shape_cast %338 : vector<1x1x32xf32> to vector<1x32xf32>
    %340 = vector.broadcast %339 : vector<1x32xf32> to vector<32x32xf32>
    %341 = arith.addf %337, %340 : vector<32x32xf32>
    %342 = arith.addf %284, %341 : vector<32x32xf32>
    %c1_146 = arith.constant 1 : index
    %c0_147 = arith.constant 0 : index
    %c0_148 = arith.constant 0 : index
    %343 = vector.load %arg17[%c1_146, %c0_147, %c0_148] : memref<2x1x32xf32, #tpu.memory_space<vmem>>, vector<1x1x32xf32>
    %344 = vector.shape_cast %343 : vector<1x1x32xf32> to vector<1x32xf32>
    %c1_149 = arith.constant 1 : index
    %c0_150 = arith.constant 0 : index
    %c0_151 = arith.constant 0 : index
    %345 = vector.load %arg18[%c1_149, %c0_150, %c0_151] : memref<2x1x32xf32, #tpu.memory_space<vmem>>, vector<1x1x32xf32>
    %346 = vector.shape_cast %345 : vector<1x1x32xf32> to vector<1x32xf32>
    %cst_152 = arith.constant dense<0.000000e+00> : vector<32xf32>
    %347 = vector.multi_reduction <add>, %342, %cst_152 [1] : vector<32x32xf32> to vector<32xf32>
    %348 = vector.shape_cast %347 : vector<32xf32> to vector<32x1xf32>
    %cst_153 = arith.constant 3.200000e+01 : f32
    %349 = vector.broadcast %cst_153 : f32 to vector<32x1xf32>
    %350 = arith.divf %348, %349 : vector<32x1xf32>
    %351 = vector.broadcast %350 : vector<32x1xf32> to vector<32x32xf32>
    %352 = arith.subf %342, %351 : vector<32x32xf32>
    %353 = arith.mulf %352, %352 : vector<32x32xf32>
    %cst_154 = arith.constant dense<0.000000e+00> : vector<32xf32>
    %354 = vector.multi_reduction <add>, %353, %cst_154 [1] : vector<32x32xf32> to vector<32xf32>
    %355 = vector.shape_cast %354 : vector<32xf32> to vector<32x1xf32>
    %cst_155 = arith.constant 3.200000e+01 : f32
    %356 = vector.broadcast %cst_155 : f32 to vector<32x1xf32>
    %357 = arith.divf %355, %356 : vector<32x1xf32>
    %cst_156 = arith.constant 9.99999974E-6 : f32
    %358 = vector.broadcast %cst_156 : f32 to vector<32x1xf32>
    %359 = arith.addf %357, %358 : vector<32x1xf32>
    %360 = math.rsqrt %359 : vector<32x1xf32>
    %361 = vector.broadcast %360 : vector<32x1xf32> to vector<32x32xf32>
    %362 = arith.mulf %352, %361 : vector<32x32xf32>
    %363 = vector.broadcast %344 : vector<1x32xf32> to vector<32x32xf32>
    %364 = arith.mulf %362, %363 : vector<32x32xf32>
    %365 = vector.broadcast %346 : vector<1x32xf32> to vector<32x32xf32>
    %366 = arith.addf %364, %365 : vector<32x32xf32>
    %c1_157 = arith.constant 1 : index
    %c0_158 = arith.constant 0 : index
    %c0_159 = arith.constant 0 : index
    %367 = vector.load %arg19[%c1_157, %c0_158, %c0_159] : memref<2x32x64xbf16, #tpu.memory_space<vmem>>, vector<1x32x64xbf16>
    %368 = vector.shape_cast %367 : vector<1x32x64xbf16> to vector<32x64xbf16>
    %369 = arith.truncf %366 : vector<32x32xf32> to vector<32x32xbf16>
    %cst_160 = arith.constant dense<0.000000e+00> : vector<32x64xf32>
    %370 = tpu.matmul %369, %368, %cst_160 {dimension_numbers = #tpu.dot_dimension_numbers<[1], [0], [0], [1], [0, 0, 1, 1], [], []>} : vector<32x32xbf16>, vector<32x64xbf16>, vector<32x64xf32> -> vector<32x64xf32>
    %c1_161 = arith.constant 1 : index
    %c0_162 = arith.constant 0 : index
    %c0_163 = arith.constant 0 : index
    %371 = vector.load %arg20[%c1_161, %c0_162, %c0_163] : memref<2x1x64xf32, #tpu.memory_space<vmem>>, vector<1x1x64xf32>
    %372 = vector.shape_cast %371 : vector<1x1x64xf32> to vector<1x64xf32>
    %373 = vector.broadcast %372 : vector<1x64xf32> to vector<32x64xf32>
    %374 = arith.addf %370, %373 : vector<32x64xf32>
    %cst_164 = arith.constant 5.000000e-01 : f32
    %375 = vector.broadcast %cst_164 : f32 to vector<32x64xf32>
    %376 = arith.mulf %375, %374 : vector<32x64xf32>
    %cst_165 = arith.constant 0.707106769 : f32
    %377 = vector.broadcast %cst_165 : f32 to vector<32x64xf32>
    %378 = arith.mulf %374, %377 : vector<32x64xf32>
    %cst_166 = arith.constant 0.000000e+00 : f32
    %379 = vector.broadcast %cst_166 : f32 to vector<32x64xf32>
    %380 = arith.cmpf oge, %378, %379 : vector<32x64xf32>
    %cst_167 = arith.constant 1.000000e+00 : f32
    %cst_168 = arith.constant -1.000000e+00 : f32
    %381 = vector.broadcast %cst_167 : f32 to vector<32x64xf32>
    %382 = vector.broadcast %cst_168 : f32 to vector<32x64xf32>
    %383 = arith.select %380, %381, %382 : vector<32x64xi1>, vector<32x64xf32>
    %384 = math.absf %378 : vector<32x64xf32>
    %cst_169 = arith.constant 0.327591091 : f32
    %385 = vector.broadcast %cst_169 : f32 to vector<32x64xf32>
    %386 = arith.mulf %385, %384 : vector<32x64xf32>
    %cst_170 = arith.constant 1.000000e+00 : f32
    %387 = vector.broadcast %cst_170 : f32 to vector<32x64xf32>
    %388 = arith.addf %387, %386 : vector<32x64xf32>
    %cst_171 = arith.constant 1.000000e+00 : f32
    %389 = vector.broadcast %cst_171 : f32 to vector<32x64xf32>
    %390 = arith.divf %389, %388 : vector<32x64xf32>
    %cst_172 = arith.constant 1.06140542 : f32
    %391 = vector.broadcast %cst_172 : f32 to vector<32x64xf32>
    %392 = arith.mulf %391, %390 : vector<32x64xf32>
    %cst_173 = arith.constant -1.45315206 : f32
    %393 = vector.broadcast %cst_173 : f32 to vector<32x64xf32>
    %394 = arith.addf %392, %393 : vector<32x64xf32>
    %395 = arith.mulf %394, %390 : vector<32x64xf32>
    %cst_174 = arith.constant 1.42141378 : f32
    %396 = vector.broadcast %cst_174 : f32 to vector<32x64xf32>
    %397 = arith.addf %395, %396 : vector<32x64xf32>
    %398 = arith.mulf %397, %390 : vector<32x64xf32>
    %cst_175 = arith.constant -0.284496725 : f32
    %399 = vector.broadcast %cst_175 : f32 to vector<32x64xf32>
    %400 = arith.addf %398, %399 : vector<32x64xf32>
    %401 = arith.mulf %400, %390 : vector<32x64xf32>
    %cst_176 = arith.constant 0.254829586 : f32
    %402 = vector.broadcast %cst_176 : f32 to vector<32x64xf32>
    %403 = arith.addf %401, %402 : vector<32x64xf32>
    %404 = arith.mulf %403, %390 : vector<32x64xf32>
    %cst_177 = arith.constant 0.000000e+00 : f32
    %405 = vector.broadcast %cst_177 : f32 to vector<32x64xf32>
    %406 = arith.subf %405, %384 : vector<32x64xf32>
    %407 = arith.mulf %406, %384 : vector<32x64xf32>
    %408 = math.exp %407 : vector<32x64xf32>
    %409 = arith.mulf %404, %408 : vector<32x64xf32>
    %cst_178 = arith.constant 1.000000e+00 : f32
    %410 = vector.broadcast %cst_178 : f32 to vector<32x64xf32>
    %411 = arith.subf %410, %409 : vector<32x64xf32>
    %412 = arith.mulf %383, %411 : vector<32x64xf32>
    %cst_179 = arith.constant 1.000000e+00 : f32
    %413 = vector.broadcast %cst_179 : f32 to vector<32x64xf32>
    %414 = arith.addf %413, %412 : vector<32x64xf32>
    %415 = arith.mulf %376, %414 : vector<32x64xf32>
    %c1_180 = arith.constant 1 : index
    %c0_181 = arith.constant 0 : index
    %c0_182 = arith.constant 0 : index
    %416 = vector.load %arg21[%c1_180, %c0_181, %c0_182] : memref<2x64x32xbf16, #tpu.memory_space<vmem>>, vector<1x64x32xbf16>
    %417 = vector.shape_cast %416 : vector<1x64x32xbf16> to vector<64x32xbf16>
    %418 = arith.truncf %415 : vector<32x64xf32> to vector<32x64xbf16>
    %cst_183 = arith.constant dense<0.000000e+00> : vector<32x32xf32>
    %419 = tpu.matmul %418, %417, %cst_183 {dimension_numbers = #tpu.dot_dimension_numbers<[1], [0], [0], [1], [0, 0, 1, 1], [], []>} : vector<32x64xbf16>, vector<64x32xbf16>, vector<32x32xf32> -> vector<32x32xf32>
    %c1_184 = arith.constant 1 : index
    %c0_185 = arith.constant 0 : index
    %c0_186 = arith.constant 0 : index
    %420 = vector.load %arg22[%c1_184, %c0_185, %c0_186] : memref<2x1x32xf32, #tpu.memory_space<vmem>>, vector<1x1x32xf32>
    %421 = vector.shape_cast %420 : vector<1x1x32xf32> to vector<1x32xf32>
    %422 = vector.broadcast %421 : vector<1x32xf32> to vector<32x32xf32>
    %423 = arith.addf %419, %422 : vector<32x32xf32>
    %424 = arith.addf %366, %423 : vector<32x32xf32>
    %c1_187 = arith.constant 1 : index
    %c0_188 = arith.constant 0 : index
    %c0_189 = arith.constant 0 : index
    %425 = vector.load %arg23[%c1_187, %c0_188, %c0_189] : memref<2x1x32xf32, #tpu.memory_space<vmem>>, vector<1x1x32xf32>
    %426 = vector.shape_cast %425 : vector<1x1x32xf32> to vector<1x32xf32>
    %c1_190 = arith.constant 1 : index
    %c0_191 = arith.constant 0 : index
    %c0_192 = arith.constant 0 : index
    %427 = vector.load %arg24[%c1_190, %c0_191, %c0_192] : memref<2x1x32xf32, #tpu.memory_space<vmem>>, vector<1x1x32xf32>
    %428 = vector.shape_cast %427 : vector<1x1x32xf32> to vector<1x32xf32>
    %cst_193 = arith.constant dense<0.000000e+00> : vector<32xf32>
    %429 = vector.multi_reduction <add>, %424, %cst_193 [1] : vector<32x32xf32> to vector<32xf32>
    %430 = vector.shape_cast %429 : vector<32xf32> to vector<32x1xf32>
    %cst_194 = arith.constant 3.200000e+01 : f32
    %431 = vector.broadcast %cst_194 : f32 to vector<32x1xf32>
    %432 = arith.divf %430, %431 : vector<32x1xf32>
    %433 = vector.broadcast %432 : vector<32x1xf32> to vector<32x32xf32>
    %434 = arith.subf %424, %433 : vector<32x32xf32>
    %435 = arith.mulf %434, %434 : vector<32x32xf32>
    %cst_195 = arith.constant dense<0.000000e+00> : vector<32xf32>
    %436 = vector.multi_reduction <add>, %435, %cst_195 [1] : vector<32x32xf32> to vector<32xf32>
    %437 = vector.shape_cast %436 : vector<32xf32> to vector<32x1xf32>
    %cst_196 = arith.constant 3.200000e+01 : f32
    %438 = vector.broadcast %cst_196 : f32 to vector<32x1xf32>
    %439 = arith.divf %437, %438 : vector<32x1xf32>
    %cst_197 = arith.constant 9.99999974E-6 : f32
    %440 = vector.broadcast %cst_197 : f32 to vector<32x1xf32>
    %441 = arith.addf %439, %440 : vector<32x1xf32>
    %442 = math.rsqrt %441 : vector<32x1xf32>
    %443 = vector.broadcast %442 : vector<32x1xf32> to vector<32x32xf32>
    %444 = arith.mulf %434, %443 : vector<32x32xf32>
    %445 = vector.broadcast %426 : vector<1x32xf32> to vector<32x32xf32>
    %446 = arith.mulf %444, %445 : vector<32x32xf32>
    %447 = vector.broadcast %428 : vector<1x32xf32> to vector<32x32xf32>
    %448 = arith.addf %446, %447 : vector<32x32xf32>
    %c0_198 = arith.constant 0 : index
    %c0_199 = arith.constant 0 : index
    %c0_200 = arith.constant 0 : index
    %449 = vector.load %arg25[%c0_198, %c0_199, %c0_200] : memref<1x32x32xf32, #tpu.memory_space<vmem>>, vector<1x32x32xf32>
    %450 = vector.shape_cast %449 : vector<1x32x32xf32> to vector<32x32xf32>
    %451 = vector.shape_cast %448 : vector<32x32xf32> to vector<1x32x32xf32>
    tpu.vector_store %arg25[%c0_198, %c0_199, %c0_200], %451 {strides = array<i32>} : memref<1x32x32xf32, #tpu.memory_space<vmem>>, vector<1x32x32xf32>,
    return
  }
  func.func @transform_0(%arg0: i32) -> (i32, i32, i32) {
    %c0_i32 = arith.constant 0 : i32
    %c0_i32_0 = arith.constant 0 : i32
    %c0_i32_1 = arith.constant 0 : i32
    return %arg0, %c0_i32, %c0_i32_0 : i32, i32, i32
  }
  func.func @transform_1(%arg0: i32) -> (i32, i32) {
    %c0_i32 = arith.constant 0 : i32
    %c0_i32_0 = arith.constant 0 : i32
    %c0_i32_1 = arith.constant 0 : i32
    return %c0_i32, %c0_i32_0 : i32, i32
  }
  func.func @transform_2(%arg0: i32) -> (i32, i32) {
    %c0_i32 = arith.constant 0 : i32
    %c0_i32_0 = arith.constant 0 : i32
    %c0_i32_1 = arith.constant 0 : i32
    return %c0_i32, %c0_i32_0 : i32, i32
  }
  func.func @transform_3(%arg0: i32) -> (i32, i32) {
    %c0_i32 = arith.constant 0 : i32
    %c0_i32_0 = arith.constant 0 : i32
    %c0_i32_1 = arith.constant 0 : i32
    return %c0_i32, %c0_i32_0 : i32, i32
  }
  func.func @transform_4(%arg0: i32) -> (i32, i32) {
    %c0_i32 = arith.constant 0 : i32
    %c0_i32_0 = arith.constant 0 : i32
    %c0_i32_1 = arith.constant 0 : i32
    return %c0_i32, %c0_i32_0 : i32, i32
  }
  func.func @transform_5(%arg0: i32) -> (i32, i32) {
    %c0_i32 = arith.constant 0 : i32
    %c0_i32_0 = arith.constant 0 : i32
    %c0_i32_1 = arith.constant 0 : i32
    return %c0_i32, %c0_i32_0 : i32, i32
  }
  func.func @transform_6(%arg0: i32) -> (i32, i32, i32) {
    %c0_i32 = arith.constant 0 : i32
    %c0_i32_0 = arith.constant 0 : i32
    %c0_i32_1 = arith.constant 0 : i32
    %c0_i32_2 = arith.constant 0 : i32
    return %c0_i32, %c0_i32_0, %c0_i32_1 : i32, i32, i32
  }
  func.func @transform_7(%arg0: i32) -> (i32, i32, i32) {
    %c0_i32 = arith.constant 0 : i32
    %c0_i32_0 = arith.constant 0 : i32
    %c0_i32_1 = arith.constant 0 : i32
    %c0_i32_2 = arith.constant 0 : i32
    return %c0_i32, %c0_i32_0, %c0_i32_1 : i32, i32, i32
  }
  func.func @transform_8(%arg0: i32) -> (i32, i32, i32) {
    %c0_i32 = arith.constant 0 : i32
    %c0_i32_0 = arith.constant 0 : i32
    %c0_i32_1 = arith.constant 0 : i32
    %c0_i32_2 = arith.constant 0 : i32
    return %c0_i32, %c0_i32_0, %c0_i32_1 : i32, i32, i32
  }
  func.func @transform_9(%arg0: i32) -> (i32, i32, i32) {
    %c0_i32 = arith.constant 0 : i32
    %c0_i32_0 = arith.constant 0 : i32
    %c0_i32_1 = arith.constant 0 : i32
    %c0_i32_2 = arith.constant 0 : i32
    return %c0_i32, %c0_i32_0, %c0_i32_1 : i32, i32, i32
  }
  func.func @transform_10(%arg0: i32) -> (i32, i32) {
    %c0_i32 = arith.constant 0 : i32
    %c0_i32_0 = arith.constant 0 : i32
    %c0_i32_1 = arith.constant 0 : i32
    return %c0_i32, %c0_i32_0 : i32, i32
  }
  func.func @transform_11(%arg0: i32) -> (i32, i32) {
    %c0_i32 = arith.constant 0 : i32
    %c0_i32_0 = arith.constant 0 : i32
    %c0_i32_1 = arith.constant 0 : i32
    return %c0_i32, %c0_i32_0 : i32, i32
  }
  func.func @transform_12(%arg0: i32) -> (i32, i32, i32) {
    %c0_i32 = arith.constant 0 : i32
    %c0_i32_0 = arith.constant 0 : i32
    %c0_i32_1 = arith.constant 0 : i32
    %c0_i32_2 = arith.constant 0 : i32
    return %c0_i32, %c0_i32_0, %c0_i32_1 : i32, i32, i32
  }
  func.func @transform_13(%arg0: i32) -> (i32, i32, i32) {
    %c0_i32 = arith.constant 0 : i32
    %c0_i32_0 = arith.constant 0 : i32
    %c0_i32_1 = arith.constant 0 : i32
    %c0_i32_2 = arith.constant 0 : i32
    return %c0_i32, %c0_i32_0, %c0_i32_1 : i32, i32, i32
  }
  func.func @transform_14(%arg0: i32) -> (i32, i32, i32) {
    %c0_i32 = arith.constant 0 : i32
    %c0_i32_0 = arith.constant 0 : i32
    %c0_i32_1 = arith.constant 0 : i32
    %c0_i32_2 = arith.constant 0 : i32
    return %c0_i32, %c0_i32_0, %c0_i32_1 : i32, i32, i32
  }
  func.func @transform_15(%arg0: i32) -> (i32, i32, i32) {
    %c0_i32 = arith.constant 0 : i32
    %c0_i32_0 = arith.constant 0 : i32
    %c0_i32_1 = arith.constant 0 : i32
    %c0_i32_2 = arith.constant 0 : i32
    return %c0_i32, %c0_i32_0, %c0_i32_1 : i32, i32, i32
  }
  func.func @transform_16(%arg0: i32) -> (i32, i32, i32) {
    %c0_i32 = arith.constant 0 : i32
    %c0_i32_0 = arith.constant 0 : i32
    %c0_i32_1 = arith.constant 0 : i32
    %c0_i32_2 = arith.constant 0 : i32
    return %c0_i32, %c0_i32_0, %c0_i32_1 : i32, i32, i32
  }
  func.func @transform_17(%arg0: i32) -> (i32, i32, i32) {
    %c0_i32 = arith.constant 0 : i32
    %c0_i32_0 = arith.constant 0 : i32
    %c0_i32_1 = arith.constant 0 : i32
    %c0_i32_2 = arith.constant 0 : i32
    return %c0_i32, %c0_i32_0, %c0_i32_1 : i32, i32, i32
  }
  func.func @transform_18(%arg0: i32) -> (i32, i32, i32) {
    %c0_i32 = arith.constant 0 : i32
    %c0_i32_0 = arith.constant 0 : i32
    %c0_i32_1 = arith.constant 0 : i32
    %c0_i32_2 = arith.constant 0 : i32
    return %c0_i32, %c0_i32_0, %c0_i32_1 : i32, i32, i32
  }
  func.func @transform_19(%arg0: i32) -> (i32, i32, i32) {
    %c0_i32 = arith.constant 0 : i32
    %c0_i32_0 = arith.constant 0 : i32
    %c0_i32_1 = arith.constant 0 : i32
    %c0_i32_2 = arith.constant 0 : i32
    return %c0_i32, %c0_i32_0, %c0_i32_1 : i32, i32, i32
  }
  func.func @transform_20(%arg0: i32) -> (i32, i32, i32) {
    %c0_i32 = arith.constant 0 : i32
    %c0_i32_0 = arith.constant 0 : i32
    %c0_i32_1 = arith.constant 0 : i32
    %c0_i32_2 = arith.constant 0 : i32
    return %c0_i32, %c0_i32_0, %c0_i32_1 : i32, i32, i32
  }
  func.func @transform_21(%arg0: i32) -> (i32, i32, i32) {
    %c0_i32 = arith.constant 0 : i32
    %c0_i32_0 = arith.constant 0 : i32
    %c0_i32_1 = arith.constant 0 : i32
    %c0_i32_2 = arith.constant 0 : i32
    return %c0_i32, %c0_i32_0, %c0_i32_1 : i32, i32, i32
  }
  func.func @transform_22(%arg0: i32) -> (i32, i32, i32) {
    %c0_i32 = arith.constant 0 : i32
    %c0_i32_0 = arith.constant 0 : i32
    %c0_i32_1 = arith.constant 0 : i32
    %c0_i32_2 = arith.constant 0 : i32
    return %c0_i32, %c0_i32_0, %c0_i32_1 : i32, i32, i32
  }
  func.func @transform_23(%arg0: i32) -> (i32, i32, i32) {
    %c0_i32 = arith.constant 0 : i32
    %c0_i32_0 = arith.constant 0 : i32
    %c0_i32_1 = arith.constant 0 : i32
    %c0_i32_2 = arith.constant 0 : i32
    return %c0_i32, %c0_i32_0, %c0_i32_1 : i32, i32, i32
  }
  func.func @transform_24(%arg0: i32) -> (i32, i32, i32) {
    %c0_i32 = arith.constant 0 : i32
    %c0_i32_0 = arith.constant 0 : i32
    %c0_i32_1 = arith.constant 0 : i32
    return %arg0, %c0_i32, %c0_i32_0 : i32, i32, i32
  }
}

</mosaic_0001>

<llo_original>
// kernel: vqvae2_decoder_forward.1
$region0: #{vqvae2_decoder_forward.1}
  #allocation0 [shape = 'u32[]', space=smem, size = 0x4, offset = 0x4, fixed_abs, tag = 'smem constant byte address 0x4 - core index']
  #allocation1 [shape = 'u32[144,128]{1,0:T(1,128)}', space=vmem, size = 0x12000, scoped, tag = 'internal scratch']
  %s0 = inlined_call_operand.vmem [shape: f32[2,8,32], index: 0, kind: input, shape index: {}]
  %s1 = inlined_call_operand.vmem [shape: bf16[96,32], index: 1, kind: input, shape index: {}]
  %s2 = inlined_call_operand.vmem [shape: bf16[64,32], index: 2, kind: input, shape index: {}]
  %s3 = inlined_call_operand.vmem [shape: f32[1,32], index: 3, kind: input, shape index: {}]
  %s4 = inlined_call_operand.vmem [shape: f32[1,32], index: 4, kind: input, shape index: {}]
  %s5 = inlined_call_operand.vmem [shape: f32[1,32], index: 5, kind: input, shape index: {}]
  %s6 = inlined_call_operand.vmem [shape: bf16[1,160,32], index: 6, kind: input, shape index: {}]
  %s7 = inlined_call_operand.vmem [shape: f32[1,1,32], index: 7, kind: input, shape index: {}]
  %s8 = inlined_call_operand.vmem [shape: f32[1,1,32], index: 8, kind: input, shape index: {}]
  %s9 = inlined_call_operand.vmem [shape: f32[1,1,32], index: 9, kind: input, shape index: {}]
  %s10 = inlined_call_operand.vmem [shape: bf16[32,32], index: 10, kind: input, shape index: {}]
  %s11 = inlined_call_operand.vmem [shape: f32[1,32], index: 11, kind: input, shape index: {}]
  %s12 = inlined_call_operand.vmem [shape: bf16[2,32,96], index: 12, kind: input, shape index: {}]
  %s13 = inlined_call_operand.vmem [shape: f32[2,1,96], index: 13, kind: input, shape index: {}]
  %s14 = inlined_call_operand.vmem [shape: bf16[2,32,32], index: 14, kind: input, shape index: {}]
  %s15 = inlined_call_operand.vmem [shape: f32[2,1,32], index: 15, kind: input, shape index: {}]
  %s16 = inlined_call_operand.vmem [shape: f32[2,1,32], index: 16, kind: input, shape index: {}]
  %s17 = inlined_call_operand.vmem [shape: f32[2,1,32], index: 17, kind: input, shape index: {}]
  %s18 = inlined_call_operand.vmem [shape: bf16[2,32,64], index: 18, kind: input, shape index: {}]
  %s19 = inlined_call_operand.vmem [shape: f32[2,1,64], index: 19, kind: input, shape index: {}]
  %s20 = inlined_call_operand.vmem [shape: bf16[2,64,32], index: 20, kind: input, shape index: {}]
  %s21 = inlined_call_operand.vmem [shape: f32[2,1,32], index: 21, kind: input, shape index: {}]
  %s22 = inlined_call_operand.vmem [shape: f32[2,1,32], index: 22, kind: input, shape index: {}]
  %s23 = inlined_call_operand.vmem [shape: f32[2,1,32], index: 23, kind: input, shape index: {}]
  %s24 = inlined_call_operand.hbm [shape: f32[2,32,32], index: 24, kind: output, shape index: {}]
  %s25 = sld [smem:[#allocation0]]
  $region129: #{vqvae2_decoder_forward.1} parent=0
    _
  %s27 = ssub.s32 1, %s25
  %s28 = scalar_select 0, %s27, %s25
  $region1: #{vqvae2_decoder_forward.1} parent=0
    #allocation2 [shape = 'u8[32768]{0}', space=vmem, size = 0x8000, scoped, tag = 'output window, operand 0']
    #allocation3 [shape = 's32[2]{0}', space=sflag, size = 0x8, scoped, tag = 'scoped memory for vqvae2_decoder_forward.1']
    %29 = vsyncpa [#allocation3], 0
    %s30 = scalar_lea.sflag [#allocation3], 1
    %31 = vsyncpa %s30, 0
    loop: start=0, step=1, limit=4
    $region2: #{vqvae2_decoder_forward.1} parent=1 // loop_pre_header
      _
    $region3: #{vqvae2_decoder_forward.1} parent=1 // loop_header
      %s33 = sphi 0, %s37
      %p34 = scmp.ge.s32.totalorder %s33, 4
      %s43 = sphi 0, %s45
      %s46 = sphi 0, %s43
      %s47 = sphi 0, %s46
      %s63 = sphi 0, %s47
      %s67 = sphi 0, %s67
      %s69 = sphi 0, %s67
      %s70 = sphi 0, %s69
      %s84 = sphi 0, %s70
      %s88 = sphi 0, %s88
      %s90 = sphi 0, %s88
      %s91 = sphi 0, %s90
      %s105 = sphi 0, %s91
      %s109 = sphi 0, %s109
      %s111 = sphi 0, %s109
      %s112 = sphi 0, %s111
      %s126 = sphi 0, %s112
      %s130 = sphi 0, %s130
      %s132 = sphi 0, %s130
      %s133 = sphi 0, %s132
      %s147 = sphi 0, %s133
      %s151 = sphi 0, %s151
      %s153 = sphi 0, %s151
      %s154 = sphi 0, %s153
      %s168 = sphi 0, %s154
      %s172 = sphi 0, %s172
      %s174 = sphi 0, %s172
      %s175 = sphi 0, %s174
      %s189 = sphi 0, %s175
      %s193 = sphi 0, %s193
      %s195 = sphi 0, %s193
      %s196 = sphi 0, %s195
      %s210 = sphi 0, %s196
      %s214 = sphi 0, %s214
      %s216 = sphi 0, %s214
      %s217 = sphi 0, %s216
      %s231 = sphi 0, %s217
      %s235 = sphi 0, %s235
      %s237 = sphi 0, %s235
      %s238 = sphi 0, %s237
      %s252 = sphi 0, %s238
      %s256 = sphi 0, %s256
      %s258 = sphi 0, %s256
      %s259 = sphi 0, %s258
      %s273 = sphi 0, %s259
      %s277 = sphi 0, %s277
      %s279 = sphi 0, %s277
      %s280 = sphi 0, %s279
      %s294 = sphi 0, %s280
      %s298 = sphi 0, %s298
      %s300 = sphi 0, %s298
      %s301 = sphi 0, %s300
      %s315 = sphi 0, %s301
      %s319 = sphi 0, %s319
      %s321 = sphi 0, %s319
      %s322 = sphi 0, %s321
      %s336 = sphi 0, %s322
      %s340 = sphi 0, %s340
      %s342 = sphi 0, %s340
      %s343 = sphi 0, %s342
      %s357 = sphi 0, %s343
      %s361 = sphi 0, %s361
      %s363 = sphi 0, %s361
      %s364 = sphi 0, %s363
      %s378 = sphi 0, %s364
      %s382 = sphi 0, %s382
      %s384 = sphi 0, %s382
      %s385 = sphi 0, %s384
      %s399 = sphi 0, %s385
      %s403 = sphi 0, %s403
      %s405 = sphi 0, %s403
      %s406 = sphi 0, %s405
      %s420 = sphi 0, %s406
      %s424 = sphi 0, %s424
      %s426 = sphi 0, %s424
      %s427 = sphi 0, %s426
      %s441 = sphi 0, %s427
      %s445 = sphi 0, %s445
      %s447 = sphi 0, %s445
      %s448 = sphi 0, %s447
      %s462 = sphi 0, %s448
      %s466 = sphi 0, %s466
      %s468 = sphi 0, %s466
      %s469 = sphi 0, %s468
      %s483 = sphi 0, %s469
      %s487 = sphi 0, %s487
      %s489 = sphi 0, %s487
      %s490 = sphi 0, %s489
      %s504 = sphi 0, %s490
      %s508 = sphi 0, %s508
      %s510 = sphi 0, %s508
      %s511 = sphi 0, %s510
      %s525 = sphi 0, %s511
      %s529 = sphi 0, %s529
      %s531 = sphi 0, %s529
      %s532 = sphi 0, %s531
      %s546 = sphi 0, %s532
      %s552 = sphi 0, %s554
      %s555 = sphi 0, %s552
      %s556 = sphi 0, %s555
      %s572 = sphi 0, %s556
    $region4: #{vqvae2_decoder_forward.1} parent=1 // loop_header_branch
      %36 = sbr.rel (%p34) target = $region8
    $region5: #{vqvae2_decoder_forward.1} parent=1 // loop_body
      %s38 = ssub.s32 %s33, 1
      %s39 = ssub.s32 %s33, 2
      %s40 = sadd.s32 %s33, 1
      %s41 = ssub.s32 %s33, %s40
      %p42 = scmp.eq.s32.totalorder %s41, 0
      %s44 = sadd.s32 %s43, 1
      %s45 = scalar_select %p42, %s43, %s44
      %p48 = pneg %p42
      %p49 = scmp.eq.s32.totalorder %s33, 1
      %p50 = por %p48, %p49
      %p51 = scmp.ne.s32.totalorder %s43, %s46
      %p52 = scmp.eq.s32.totalorder %s33, 0
      %p53 = por %p51, %p52
      %p54 = scmp.ne.s32.totalorder %s43, %s46
      %p55 = scmp.eq.s32.totalorder %s38, 1
      %p56 = por %p54, %p55
      %p57 = scmp.ne.s32.totalorder %s46, %s47
      %p58 = scmp.eq.s32.totalorder %s38, 0
      %p59 = por %p57, %p58
      %p60 = scmp.ne.s32.totalorder %s46, %s47
      %p61 = scmp.eq.s32.totalorder %s39, 1
      %p62 = por %p60, %p61
      %p64 = scmp.ne.s32.totalorder %s47, %s63
      %p65 = scmp.eq.s32.totalorder %s39, 0
      %p66 = por %p64, %p65
      %s68 = sadd.s32 %s67, 1
      %p71 = scmp.eq.s32.totalorder %s33, 1
      %p72 = scmp.ne.s32.totalorder %s67, %s69
      %p73 = scmp.eq.s32.totalorder %s33, 0
      %p74 = por %p72, %p73
      %p75 = scmp.ne.s32.totalorder %s67, %s69
      %p76 = scmp.eq.s32.totalorder %s38, 1
      %p77 = por %p75, %p76
      %p78 = scmp.ne.s32.totalorder %s69, %s70
      %p79 = scmp.eq.s32.totalorder %s38, 0
      %p80 = por %p78, %p79
      %p81 = scmp.ne.s32.totalorder %s69, %s70
      %p82 = scmp.eq.s32.totalorder %s39, 1
      %p83 = por %p81, %p82
      %p85 = scmp.ne.s32.totalorder %s70, %s84
      %p86 = scmp.eq.s32.totalorder %s39, 0
      %p87 = por %p85, %p86
      %s89 = sadd.s32 %s88, 1
      %p92 = scmp.eq.s32.totalorder %s33, 1
      %p93 = scmp.ne.s32.totalorder %s88, %s90
      %p94 = scmp.eq.s32.totalorder %s33, 0
      %p95 = por %p93, %p94
      %p96 = scmp.ne.s32.totalorder %s88, %s90
      %p97 = scmp.eq.s32.totalorder %s38, 1
      %p98 = por %p96, %p97
      %p99 = scmp.ne.s32.totalorder %s90, %s91
      %p100 = scmp.eq.s32.totalorder %s38, 0
      %p101 = por %p99, %p100
      %p102 = scmp.ne.s32.totalorder %s90, %s91
      %p103 = scmp.eq.s32.totalorder %s39, 1
      %p104 = por %p102, %p103
      %p106 = scmp.ne.s32.totalorder %s91, %s105
      %p107 = scmp.eq.s32.totalorder %s39, 0
      %p108 = por %p106, %p107
      %s110 = sadd.s32 %s109, 1
      %p113 = scmp.eq.s32.totalorder %s33, 1
      %p114 = scmp.ne.s32.totalorder %s109, %s111
      %p115 = scmp.eq.s32.totalorder %s33, 0
      %p116 = por %p114, %p115
      %p117 = scmp.ne.s32.totalorder %s109, %s111
      %p118 = scmp.eq.s32.totalorder %s38, 1
      %p119 = por %p117, %p118
      %p120 = scmp.ne.s32.totalorder %s111, %s112
      %p121 = scmp.eq.s32.totalorder %s38, 0
      %p122 = por %p120, %p121
      %p123 = scmp.ne.s32.totalorder %s111, %s112
      %p124 = scmp.eq.s32.totalorder %s39, 1
      %p125 = por %p123, %p124
      %p127 = scmp.ne.s32.totalorder %s112, %s126
      %p128 = scmp.eq.s32.totalorder %s39, 0
      %p129 = por %p127, %p128
      %s131 = sadd.s32 %s130, 1
      %p134 = scmp.eq.s32.totalorder %s33, 1
      %p135 = scmp.ne.s32.totalorder %s130, %s132
      %p136 = scmp.eq.s32.totalorder %s33, 0
      %p137 = por %p135, %p136
      %p138 = scmp.ne.s32.totalorder %s130, %s132
      %p139 = scmp.eq.s32.totalorder %s38, 1
      %p140 = por %p138, %p139
      %p141 = scmp.ne.s32.totalorder %s132, %s133
      %p142 = scmp.eq.s32.totalorder %s38, 0
      %p143 = por %p141, %p142
      %p144 = scmp.ne.s32.totalorder %s132, %s133
      %p145 = scmp.eq.s32.totalorder %s39, 1
      %p146 = por %p144, %p145
      %p148 = scmp.ne.s32.totalorder %s133, %s147
      %p149 = scmp.eq.s32.totalorder %s39, 0
      %p150 = por %p148, %p149
      %s152 = sadd.s32 %s151, 1
      %p155 = scmp.eq.s32.totalorder %s33, 1
      %p156 = scmp.ne.s32.totalorder %s151, %s153
      %p157 = scmp.eq.s32.totalorder %s33, 0
      %p158 = por %p156, %p157
      %p159 = scmp.ne.s32.totalorder %s151, %s153
      %p160 = scmp.eq.s32.totalorder %s38, 1
      %p161 = por %p159, %p160
      %p162 = scmp.ne.s32.totalorder %s153, %s154
      %p163 = scmp.eq.s32.totalorder %s38, 0
      %p164 = por %p162, %p163
      %p165 = scmp.ne.s32.totalorder %s153, %s154
      %p166 = scmp.eq.s32.totalorder %s39, 1
      %p167 = por %p165, %p166
      %p169 = scmp.ne.s32.totalorder %s154, %s168
      %p170 = scmp.eq.s32.totalorder %s39, 0
      %p171 = por %p169, %p170
      %s173 = sadd.s32 %s172, 1
      %p176 = scmp.eq.s32.totalorder %s33, 1
      %p177 = scmp.ne.s32.totalorder %s172, %s174
      %p178 = scmp.eq.s32.totalorder %s33, 0
      %p179 = por %p177, %p178
      %p180 = scmp.ne.s32.totalorder %s172, %s174
      %p181 = scmp.eq.s32.totalorder %s38, 1
      %p182 = por %p180, %p181
      %p183 = scmp.ne.s32.totalorder %s174, %s175
      %p184 = scmp.eq.s32.totalorder %s38, 0
      %p185 = por %p183, %p184
      %p186 = scmp.ne.s32.totalorder %s174, %s175
      %p187 = scmp.eq.s32.totalorder %s39, 1
      %p188 = por %p186, %p187
      %p190 = scmp.ne.s32.totalorder %s175, %s189
      %p191 = scmp.eq.s32.totalorder %s39, 0
      %p192 = por %p190, %p191
      %s194 = sadd.s32 %s193, 1
      %p197 = scmp.eq.s32.totalorder %s33, 1
      %p198 = scmp.ne.s32.totalorder %s193, %s195
      %p199 = scmp.eq.s32.totalorder %s33, 0
      %p200 = por %p198, %p199
      %p201 = scmp.ne.s32.totalorder %s193, %s195
      %p202 = scmp.eq.s32.totalorder %s38, 1
      %p203 = por %p201, %p202
      %p204 = scmp.ne.s32.totalorder %s195, %s196
      %p205 = scmp.eq.s32.totalorder %s38, 0
      %p206 = por %p204, %p205
      %p207 = scmp.ne.s32.totalorder %s195, %s196
      %p208 = scmp.eq.s32.totalorder %s39, 1
      %p209 = por %p207, %p208
      %p211 = scmp.ne.s32.totalorder %s196, %s210
      %p212 = scmp.eq.s32.totalorder %s39, 0
      %p213 = por %p211, %p212
      %s215 = sadd.s32 %s214, 1
      %p218 = scmp.eq.s32.totalorder %s33, 1
      %p219 = scmp.ne.s32.totalorder %s214, %s216
      %p220 = scmp.eq.s32.totalorder %s33, 0
      %p221 = por %p219, %p220
      %p222 = scmp.ne.s32.totalorder %s214, %s216
      %p223 = scmp.eq.s32.totalorder %s38, 1
      %p224 = por %p222, %p223
      %p225 = scmp.ne.s32.totalorder %s216, %s217
      %p226 = scmp.eq.s32.totalorder %s38, 0
      %p227 = por %p225, %p226
      %p228 = scmp.ne.s32.totalorder %s216, %s217
      %p229 = scmp.eq.s32.totalorder %s39, 1
      %p230 = por %p228, %p229
      %p232 = scmp.ne.s32.totalorder %s217, %s231
      %p233 = scmp.eq.s32.totalorder %s39, 0
      %p234 = por %p232, %p233
      %s236 = sadd.s32 %s235, 1
      %p239 = scmp.eq.s32.totalorder %s33, 1
      %p240 = scmp.ne.s32.totalorder %s235, %s237
      %p241 = scmp.eq.s32.totalorder %s33, 0
      %p242 = por %p240, %p241
      %p243 = scmp.ne.s32.totalorder %s235, %s237
      %p244 = scmp.eq.s32.totalorder %s38, 1
      %p245 = por %p243, %p244
      %p246 = scmp.ne.s32.totalorder %s237, %s238
      %p247 = scmp.eq.s32.totalorder %s38, 0
      %p248 = por %p246, %p247
      %p249 = scmp.ne.s32.totalorder %s237, %s238
      %p250 = scmp.eq.s32.totalorder %s39, 1
      %p251 = por %p249, %p250
      %p253 = scmp.ne.s32.totalorder %s238, %s252
      %p254 = scmp.eq.s32.totalorder %s39, 0
      %p255 = por %p253, %p254
      %s257 = sadd.s32 %s256, 1
      %p260 = scmp.eq.s32.totalorder %s33, 1
      %p261 = scmp.ne.s32.totalorder %s256, %s258
      %p262 = scmp.eq.s32.totalorder %s33, 0
      %p263 = por %p261, %p262
      %p264 = scmp.ne.s32.totalorder %s256, %s258
      %p265 = scmp.eq.s32.totalorder %s38, 1
      %p266 = por %p264, %p265
      %p267 = scmp.ne.s32.totalorder %s258, %s259
      %p268 = scmp.eq.s32.totalorder %s38, 0
      %p269 = por %p267, %p268
      %p270 = scmp.ne.s32.totalorder %s258, %s259
      %p271 = scmp.eq.s32.totalorder %s39, 1
      %p272 = por %p270, %p271
      %p274 = scmp.ne.s32.totalorder %s259, %s273
      %p275 = scmp.eq.s32.totalorder %s39, 0
      %p276 = por %p274, %p275
      %s278 = sadd.s32 %s277, 1
      %p281 = scmp.eq.s32.totalorder %s33, 1
      %p282 = scmp.ne.s32.totalorder %s277, %s279
      %p283 = scmp.eq.s32.totalorder %s33, 0
      %p284 = por %p282, %p283
      %p285 = scmp.ne.s32.totalorder %s277, %s279
      %p286 = scmp.eq.s32.totalorder %s38, 1
      %p287 = por %p285, %p286
      %p288 = scmp.ne.s32.totalorder %s279, %s280
      %p289 = scmp.eq.s32.totalorder %s38, 0
      %p290 = por %p288, %p289
      %p291 = scmp.ne.s32.totalorder %s279, %s280
      %p292 = scmp.eq.s32.totalorder %s39, 1
      %p293 = por %p291, %p292
      %p295 = scmp.ne.s32.totalorder %s280, %s294
      %p296 = scmp.eq.s32.totalorder %s39, 0
      %p297 = por %p295, %p296
      %s299 = sadd.s32 %s298, 1
      %p302 = scmp.eq.s32.totalorder %s33, 1
      %p303 = scmp.ne.s32.totalorder %s298, %s300
      %p304 = scmp.eq.s32.totalorder %s33, 0
      %p305 = por %p303, %p304
      %p306 = scmp.ne.s32.totalorder %s298, %s300
      %p307 = scmp.eq.s32.totalorder %s38, 1
      %p308 = por %p306, %p307
      %p309 = scmp.ne.s32.totalorder %s300, %s301
      %p310 = scmp.eq.s32.totalorder %s38, 0
      %p311 = por %p309, %p310
      %p312 = scmp.ne.s32.totalorder %s300, %s301
      %p313 = scmp.eq.s32.totalorder %s39, 1
      %p314 = por %p312, %p313
      %p316 = scmp.ne.s32.totalorder %s301, %s315
      %p317 = scmp.eq.s32.totalorder %s39, 0
      %p318 = por %p316, %p317
      %s320 = sadd.s32 %s319, 1
      %p323 = scmp.eq.s32.totalorder %s33, 1
      %p324 = scmp.ne.s32.totalorder %s319, %s321
      %p325 = scmp.eq.s32.totalorder %s33, 0
      %p326 = por %p324, %p325
      %p327 = scmp.ne.s32.totalorder %s319, %s321
      %p328 = scmp.eq.s32.totalorder %s38, 1
      %p329 = por %p327, %p328
      %p330 = scmp.ne.s32.totalorder %s321, %s322
      %p331 = scmp.eq.s32.totalorder %s38, 0
      %p332 = por %p330, %p331
      %p333 = scmp.ne.s32.totalorder %s321, %s322
      %p334 = scmp.eq.s32.totalorder %s39, 1
      %p335 = por %p333, %p334
      %p337 = scmp.ne.s32.totalorder %s322, %s336
      %p338 = scmp.eq.s32.totalorder %s39, 0
      %p339 = por %p337, %p338
      %s341 = sadd.s32 %s340, 1
      %p344 = scmp.eq.s32.totalorder %s33, 1
      %p345 = scmp.ne.s32.totalorder %s340, %s342
      %p346 = scmp.eq.s32.totalorder %s33, 0
      %p347 = por %p345, %p346
      %p348 = scmp.ne.s32.totalorder %s340, %s342
      %p349 = scmp.eq.s32.totalorder %s38, 1
      %p350 = por %p348, %p349
      %p351 = scmp.ne.s32.totalorder %s342, %s343
      %p352 = scmp.eq.s32.totalorder %s38, 0
      %p353 = por %p351, %p352
      %p354 = scmp.ne.s32.totalorder %s342, %s343
      %p355 = scmp.eq.s32.totalorder %s39, 1
      %p356 = por %p354, %p355
      %p358 = scmp.ne.s32.totalorder %s343, %s357
      %p359 = scmp.eq.s32.totalorder %s39, 0
      %p360 = por %p358, %p359
      %s362 = sadd.s32 %s361, 1
      %p365 = scmp.eq.s32.totalorder %s33, 1
      %p366 = scmp.ne.s32.totalorder %s361, %s363
      %p367 = scmp.eq.s32.totalorder %s33, 0
      %p368 = por %p366, %p367
      %p369 = scmp.ne.s32.totalorder %s361, %s363
      %p370 = scmp.eq.s32.totalorder %s38, 1
      %p371 = por %p369, %p370
      %p372 = scmp.ne.s32.totalorder %s363, %s364
      %p373 = scmp.eq.s32.totalorder %s38, 0
      %p374 = por %p372, %p373
      %p375 = scmp.ne.s32.totalorder %s363, %s364
      %p376 = scmp.eq.s32.totalorder %s39, 1
      %p377 = por %p375, %p376
      %p379 = scmp.ne.s32.totalorder %s364, %s378
      %p380 = scmp.eq.s32.totalorder %s39, 0
      %p381 = por %p379, %p380
      %s383 = sadd.s32 %s382, 1
      %p386 = scmp.eq.s32.totalorder %s33, 1
      %p387 = scmp.ne.s32.totalorder %s382, %s384
      %p388 = scmp.eq.s32.totalorder %s33, 0
      %p389 = por %p387, %p388
      %p390 = scmp.ne.s32.totalorder %s382, %s384
      %p391 = scmp.eq.s32.totalorder %s38, 1
      %p392 = por %p390, %p391
      %p393 = scmp.ne.s32.totalorder %s384, %s385
      %p394 = scmp.eq.s32.totalorder %s38, 0
      %p395 = por %p393, %p394
      %p396 = scmp.ne.s32.totalorder %s384, %s385
      %p397 = scmp.eq.s32.totalorder %s39, 1
      %p398 = por %p396, %p397
      %p400 = scmp.ne.s32.totalorder %s385, %s399
      %p401 = scmp.eq.s32.totalorder %s39, 0
      %p402 = por %p400, %p401
      %s404 = sadd.s32 %s403, 1
      %p407 = scmp.eq.s32.totalorder %s33, 1
      %p408 = scmp.ne.s32.totalorder %s403, %s405
      %p409 = scmp.eq.s32.totalorder %s33, 0
      %p410 = por %p408, %p409
      %p411 = scmp.ne.s32.totalorder %s403, %s405
      %p412 = scmp.eq.s32.totalorder %s38, 1
      %p413 = por %p411, %p412
      %p414 = scmp.ne.s32.totalorder %s405, %s406
      %p415 = scmp.eq.s32.totalorder %s38, 0
      %p416 = por %p414, %p415
      %p417 = scmp.ne.s32.totalorder %s405, %s406
      %p418 = scmp.eq.s32.totalorder %s39, 1
      %p419 = por %p417, %p418
      %p421 = scmp.ne.s32.totalorder %s406, %s420
      %p422 = scmp.eq.s32.totalorder %s39, 0
      %p423 = por %p421, %p422
      %s425 = sadd.s32 %s424, 1
      %p428 = scmp.eq.s32.totalorder %s33, 1
      %p429 = scmp.ne.s32.totalorder %s424, %s426
      %p430 = scmp.eq.s32.totalorder %s33, 0
      %p431 = por %p429, %p430
      %p432 = scmp.ne.s32.totalorder %s424, %s426
      %p433 = scmp.eq.s32.totalorder %s38, 1
      %p434 = por %p432, %p433
      %p435 = scmp.ne.s32.totalorder %s426, %s427
      %p436 = scmp.eq.s32.totalorder %s38, 0
      %p437 = por %p435, %p436
      %p438 = scmp.ne.s32.totalorder %s426, %s427
      %p439 = scmp.eq.s32.totalorder %s39, 1
      %p440 = por %p438, %p439
      %p442 = scmp.ne.s32.totalorder %s427, %s441
      %p443 = scmp.eq.s32.totalorder %s39, 0
      %p444 = por %p442, %p443
      %s446 = sadd.s32 %s445, 1
      %p449 = scmp.eq.s32.totalorder %s33, 1
      %p450 = scmp.ne.s32.totalorder %s445, %s447
      %p451 = scmp.eq.s32.totalorder %s33, 0
      %p452 = por %p450, %p451
      %p453 = scmp.ne.s32.totalorder %s445, %s447
      %p454 = scmp.eq.s32.totalorder %s38, 1
      %p455 = por %p453, %p454
      %p456 = scmp.ne.s32.totalorder %s447, %s448
      %p457 = scmp.eq.s32.totalorder %s38, 0
      %p458 = por %p456, %p457
      %p459 = scmp.ne.s32.totalorder %s447, %s448
      %p460 = scmp.eq.s32.totalorder %s39, 1
      %p461 = por %p459, %p460
      %p463 = scmp.ne.s32.totalorder %s448, %s462
      %p464 = scmp.eq.s32.totalorder %s39, 0
      %p465 = por %p463, %p464
      %s467 = sadd.s32 %s466, 1
      %p470 = scmp.eq.s32.totalorder %s33, 1
      %p471 = scmp.ne.s32.totalorder %s466, %s468
      %p472 = scmp.eq.s32.totalorder %s33, 0
      %p473 = por %p471, %p472
      %p474 = scmp.ne.s32.totalorder %s466, %s468
      %p475 = scmp.eq.s32.totalorder %s38, 1
      %p476 = por %p474, %p475
      %p477 = scmp.ne.s32.totalorder %s468, %s469
      %p478 = scmp.eq.s32.totalorder %s38, 0
      %p479 = por %p477, %p478
      %p480 = scmp.ne.s32.totalorder %s468, %s469
      %p481 = scmp.eq.s32.totalorder %s39, 1
      %p482 = por %p480, %p481
      %p484 = scmp.ne.s32.totalorder %s469, %s483
      %p485 = scmp.eq.s32.totalorder %s39, 0
      %p486 = por %p484, %p485
      %s488 = sadd.s32 %s487, 1
      %p491 = scmp.eq.s32.totalorder %s33, 1
      %p492 = scmp.ne.s32.totalorder %s487, %s489
      %p493 = scmp.eq.s32.totalorder %s33, 0
      %p494 = por %p492, %p493
      %p495 = scmp.ne.s32.totalorder %s487, %s489
      %p496 = scmp.eq.s32.totalorder %s38, 1
      %p497 = por %p495, %p496
      %p498 = scmp.ne.s32.totalorder %s489, %s490
      %p499 = scmp.eq.s32.totalorder %s38, 0
      %p500 = por %p498, %p499
      %p501 = scmp.ne.s32.totalorder %s489, %s490
      %p502 = scmp.eq.s32.totalorder %s39, 1
      %p503 = por %p501, %p502
      %p505 = scmp.ne.s32.totalorder %s490, %s504
      %p506 = scmp.eq.s32.totalorder %s39, 0
      %p507 = por %p505, %p506
      %s509 = sadd.s32 %s508, 1
      %p512 = scmp.eq.s32.totalorder %s33, 1
      %p513 = scmp.ne.s32.totalorder %s508, %s510
      %p514 = scmp.eq.s32.totalorder %s33, 0
      %p515 = por %p513, %p514
      %p516 = scmp.ne.s32.totalorder %s508, %s510
      %p517 = scmp.eq.s32.totalorder %s38, 1
      %p518 = por %p516, %p517
      %p519 = scmp.ne.s32.totalorder %s510, %s511
      %p520 = scmp.eq.s32.totalorder %s38, 0
      %p521 = por %p519, %p520
      %p522 = scmp.ne.s32.totalorder %s510, %s511
      %p523 = scmp.eq.s32.totalorder %s39, 1
      %p524 = por %p522, %p523
      %p526 = scmp.ne.s32.totalorder %s511, %s525
      %p527 = scmp.eq.s32.totalorder %s39, 0
      %p528 = por %p526, %p527
      %s530 = sadd.s32 %s529, 1
      %p533 = scmp.eq.s32.totalorder %s33, 1
      %p534 = scmp.ne.s32.totalorder %s529, %s531
      %p535 = scmp.eq.s32.totalorder %s33, 0
      %p536 = por %p534, %p535
      %p537 = scmp.ne.s32.totalorder %s529, %s531
      %p538 = scmp.eq.s32.totalorder %s38, 1
      %p539 = por %p537, %p538
      %p540 = scmp.ne.s32.totalorder %s531, %s532
      %p541 = scmp.eq.s32.totalorder %s38, 0
      %p542 = por %p540, %p541
      %p543 = scmp.ne.s32.totalorder %s531, %s532
      %p544 = scmp.eq.s32.totalorder %s39, 1
      %p545 = por %p543, %p544
      %p547 = scmp.ne.s32.totalorder %s532, %s546
      %p548 = scmp.eq.s32.totalorder %s39, 0
      %p549 = por %p547, %p548
      %s550 = ssub.s32 %s33, %s40
      %p551 = scmp.eq.s32.totalorder %s550, 0
      %s553 = sadd.s32 %s552, 1
      %s554 = scalar_select %p551, %s552, %s553
      %p557 = pneg %p551
      %p558 = scmp.eq.s32.totalorder %s33, 1
      %p559 = por %p557, %p558
      %p560 = scmp.ne.s32.totalorder %s552, %s555
      %p561 = scmp.eq.s32.totalorder %s33, 0
      %p562 = por %p560, %p561
      %p563 = scmp.ne.s32.totalorder %s552, %s555
      %p564 = scmp.eq.s32.totalorder %s38, 1
      %p565 = por %p563, %p564
      %p566 = scmp.ne.s32.totalorder %s555, %s556
      %p567 = scmp.eq.s32.totalorder %s38, 0
      %p568 = por %p566, %p567
      %p569 = scmp.ne.s32.totalorder %s555, %s556
      %p570 = scmp.eq.s32.totalorder %s39, 1
      %p571 = por %p569, %p570
      %p573 = scmp.ne.s32.totalorder %s556, %s572
      %p574 = scmp.eq.s32.totalorder %s39, 0
      %p575 = por %p573, %p574
      %p576 = scmp.le.s32.totalorder 1, %s33
      %p577 = scmp.lt.s32.totalorder %s33, 3
      %p578 = pnand %p576, %p577
      %p579 = pneg %p578
      // Predicated region
      $region9: #{vqvae2_decoder_forward.1} parent=5 // pred_check
        _
      $region10: #{vqvae2_decoder_forward.1} parent=5 // pred_check_branch
        %581 = sbr.rel (%p578) target = $region12
      $region11: #{vqvae2_decoder_forward.1} parent=5 // pred_region
        %s582 = ssub.s32 %s33, 1
        // Predicated region
        $region13: #{vqvae2_decoder_forward.1} parent=11 // pred_check
          %p583 = pneg %p80
        $region14: #{vqvae2_decoder_forward.1} parent=11 // pred_check_branch
          %585 = sbr.rel (%p583) target = $region16
        $region15: #{vqvae2_decoder_forward.1} parent=11 // pred_region
          _
        $region16: #{vqvae2_decoder_forward.1} parent=11 // pred_fallthru
          _
        // Predicated region
        $region17: #{vqvae2_decoder_forward.1} parent=11 // pred_check
          %p586 = pneg %p101
        $region18: #{vqvae2_decoder_forward.1} parent=11 // pred_check_branch
          %588 = sbr.rel (%p586) target = $region20
        $region19: #{vqvae2_decoder_forward.1} parent=11 // pred_region
          _
        $region20: #{vqvae2_decoder_forward.1} parent=11 // pred_fallthru
          _
        // Predicated region
        $region21: #{vqvae2_decoder_forward.1} parent=11 // pred_check
          %p589 = pneg %p122
        $region22: #{vqvae2_decoder_forward.1} parent=11 // pred_check_branch
          %591 = sbr.rel (%p589) target = $region24
        $region23: #{vqvae2_decoder_forward.1} parent=11 // pred_region
          _
        $region24: #{vqvae2_decoder_forward.1} parent=11 // pred_fallthru
          _
        // Predicated region
        $region25: #{vqvae2_decoder_forward.1} parent=11 // pred_check
          %p592 = pneg %p143
        $region26: #{vqvae2_decoder_forward.1} parent=11 // pred_check_branch
          %594 = sbr.rel (%p592) target = $region28
        $region27: #{vqvae2_decoder_forward.1} parent=11 // pred_region
          _
        $region28: #{vqvae2_decoder_forward.1} parent=11 // pred_fallthru
          _
        // Predicated region
        $region29: #{vqvae2_decoder_forward.1} parent=11 // pred_check
          %p595 = pneg %p164
        $region30: #{vqvae2_decoder_forward.1} parent=11 // pred_check_branch
          %597 = sbr.rel (%p595) target = $region32
        $region31: #{vqvae2_decoder_forward.1} parent=11 // pred_region
          _
        $region32: #{vqvae2_decoder_forward.1} parent=11 // pred_fallthru
          _
        // Predicated region
        $region33: #{vqvae2_decoder_forward.1} parent=11 // pred_check
          %p598 = pneg %p185
        $region34: #{vqvae2_decoder_forward.1} parent=11 // pred_check_branch
          %600 = sbr.rel (%p598) target = $region36
        $region35: #{vqvae2_decoder_forward.1} parent=11 // pred_region
          _
        $region36: #{vqvae2_decoder_forward.1} parent=11 // pred_fallthru
          _
        // Predicated region
        $region37: #{vqvae2_decoder_forward.1} parent=11 // pred_check
          %p601 = pneg %p206
        $region38: #{vqvae2_decoder_forward.1} parent=11 // pred_check_branch
          %603 = sbr.rel (%p601) target = $region40
        $region39: #{vqvae2_decoder_forward.1} parent=11 // pred_region
          _
        $region40: #{vqvae2_decoder_forward.1} parent=11 // pred_fallthru
          _
        // Predicated region
        $region41: #{vqvae2_decoder_forward.1} parent=11 // pred_check
          %p604 = pneg %p227
        $region42: #{vqvae2_decoder_forward.1} parent=11 // pred_check_branch
          %606 = sbr.rel (%p604) target = $region44
        $region43: #{vqvae2_decoder_forward.1} parent=11 // pred_region
          _
        $region44: #{vqvae2_decoder_forward.1} parent=11 // pred_fallthru
          _
        // Predicated region
        $region45: #{vqvae2_decoder_forward.1} parent=11 // pred_check
          %p607 = pneg %p248
        $region46: #{vqvae2_decoder_forward.1} parent=11 // pred_check_branch
          %609 = sbr.rel (%p607) target = $region48
        $region47: #{vqvae2_decoder_forward.1} parent=11 // pred_region
          _
        $region48: #{vqvae2_decoder_forward.1} parent=11 // pred_fallthru
          _
        // Predicated region
        $region49: #{vqvae2_decoder_forward.1} parent=11 // pred_check
          %p610 = pneg %p269
        $region50: #{vqvae2_decoder_forward.1} parent=11 // pred_check_branch
          %612 = sbr.rel (%p610) target = $region52
        $region51: #{vqvae2_decoder_forward.1} parent=11 // pred_region
          _
        $region52: #{vqvae2_decoder_forward.1} parent=11 // pred_fallthru
          _
        // Predicated region
        $region53: #{vqvae2_decoder_forward.1} parent=11 // pred_check
          %p613 = pneg %p290
        $region54: #{vqvae2_decoder_forward.1} parent=11 // pred_check_branch
          %615 = sbr.rel (%p613) target = $region56
        $region55: #{vqvae2_decoder_forward.1} parent=11 // pred_region
          _
        $region56: #{vqvae2_decoder_forward.1} parent=11 // pred_fallthru
          _
        // Predicated region
        $region57: #{vqvae2_decoder_forward.1} parent=11 // pred_check
          %p616 = pneg %p311
        $region58: #{vqvae2_decoder_forward.1} parent=11 // pred_check_branch
          %618 = sbr.rel (%p616) target = $region60
        $region59: #{vqvae2_decoder_forward.1} parent=11 // pred_region
          _
        $region60: #{vqvae2_decoder_forward.1} parent=11 // pred_fallthru
          _
        // Predicated region
        $region61: #{vqvae2_decoder_forward.1} parent=11 // pred_check
          %p619 = pneg %p332
        $region62: #{vqvae2_decoder_forward.1} parent=11 // pred_check_branch
          %621 = sbr.rel (%p619) target = $region64
        $region63: #{vqvae2_decoder_forward.1} parent=11 // pred_region
          _
        $region64: #{vqvae2_decoder_forward.1} parent=11 // pred_fallthru
          _
        // Predicated region
        $region65: #{vqvae2_decoder_forward.1} parent=11 // pred_check
          %p622 = pneg %p353
        $region66: #{vqvae2_decoder_forward.1} parent=11 // pred_check_branch
          %624 = sbr.rel (%p622) target = $region68
        $region67: #{vqvae2_decoder_forward.1} parent=11 // pred_region
          _
        $region68: #{vqvae2_decoder_forward.1} parent=11 // pred_fallthru
          _
        // Predicated region
        $region69: #{vqvae2_decoder_forward.1} parent=11 // pred_check
          %p625 = pneg %p374
        $region70: #{vqvae2_decoder_forward.1} parent=11 // pred_check_branch
          %627 = sbr.rel (%p625) target = $region72
        $region71: #{vqvae2_decoder_forward.1} parent=11 // pred_region
          _
        $region72: #{vqvae2_decoder_forward.1} parent=11 // pred_fallthru
          _
        // Predicated region
        $region73: #{vqvae2_decoder_forward.1} parent=11 // pred_check
          %p628 = pneg %p395
        $region74: #{vqvae2_decoder_forward.1} parent=11 // pred_check_branch
          %630 = sbr.rel (%p628) target = $region76
        $region75: #{vqvae2_decoder_forward.1} parent=11 // pred_region
          _
        $region76: #{vqvae2_decoder_forward.1} parent=11 // pred_fallthru
          _
        // Predicated region
        $region77: #{vqvae2_decoder_forward.1} parent=11 // pred_check
          %p631 = pneg %p416
        $region78: #{vqvae2_decoder_forward.1} parent=11 // pred_check_branch
          %633 = sbr.rel (%p631) target = $region80
        $region79: #{vqvae2_decoder_forward.1} parent=11 // pred_region
          _
        $region80: #{vqvae2_decoder_forward.1} parent=11 // pred_fallthru
          _
        // Predicated region
        $region81: #{vqvae2_decoder_forward.1} parent=11 // pred_check
          %p634 = pneg %p437
        $region82: #{vqvae2_decoder_forward.1} parent=11 // pred_check_branch
          %636 = sbr.rel (%p634) target = $region84
        $region83: #{vqvae2_decoder_forward.1} parent=11 // pred_region
          _
        $region84: #{vqvae2_decoder_forward.1} parent=11 // pred_fallthru
          _
        // Predicated region
        $region85: #{vqvae2_decoder_forward.1} parent=11 // pred_check
          %p637 = pneg %p458
        $region86: #{vqvae2_decoder_forward.1} parent=11 // pred_check_branch
          %639 = sbr.rel (%p637) target = $region88
        $region87: #{vqvae2_decoder_forward.1} parent=11 // pred_region
          _
        $region88: #{vqvae2_decoder_forward.1} parent=11 // pred_fallthru
          _
        // Predicated region
        $region89: #{vqvae2_decoder_forward.1} parent=11 // pred_check
          %p640 = pneg %p479
        $region90: #{vqvae2_decoder_forward.1} parent=11 // pred_check_branch
          %642 = sbr.rel (%p640) target = $region92
        $region91: #{vqvae2_decoder_forward.1} parent=11 // pred_region
          _
        $region92: #{vqvae2_decoder_forward.1} parent=11 // pred_fallthru
          _
        // Predicated region
        $region93: #{vqvae2_decoder_forward.1} parent=11 // pred_check
          %p643 = pneg %p500
        $region94: #{vqvae2_decoder_forward.1} parent=11 // pred_check_branch
          %645 = sbr.rel (%p643) target = $region96
        $region95: #{vqvae2_decoder_forward.1} parent=11 // pred_region
          _
        $region96: #{vqvae2_decoder_forward.1} parent=11 // pred_fallthru
          _
        // Predicated region
        $region97: #{vqvae2_decoder_forward.1} parent=11 // pred_check
          %p646 = pneg %p521
        $region98: #{vqvae2_decoder_forward.1} parent=11 // pred_check_branch
          %648 = sbr.rel (%p646) target = $region100
        $region99: #{vqvae2_decoder_forward.1} parent=11 // pred_region
          _
        $region100: #{vqvae2_decoder_forward.1} parent=11 // pred_fallthru
          _
        // Predicated region
        $region101: #{vqvae2_decoder_forward.1} parent=11 // pred_check
          %p649 = pneg %p542
        $region102: #{vqvae2_decoder_forward.1} parent=11 // pred_check_branch
          %651 = sbr.rel (%p649) target = $region104
        $region103: #{vqvae2_decoder_forward.1} parent=11 // pred_region
          _
        $region104: #{vqvae2_decoder_forward.1} parent=11 // pred_fallthru
          _
      $region12: #{vqvae2_decoder_forward.1} parent=5 // pred_fallthru
        _
      %p652 = scmp.lt.s32.totalorder %s33, 2
      // Predicated region
      $region105: #{vqvae2_decoder_forward.1} parent=5 // pred_check
        %p653 = pneg %p652
      $region106: #{vqvae2_decoder_forward.1} parent=5 // pred_check_branch
        %655 = sbr.rel (%p653) target = $region108
      $region107: #{vqvae2_decoder_forward.1} parent=5 // pred_region
        // Predicated region
        $region109: #{vqvae2_decoder_forward.1} parent=107 // pred_check
          %p656 = pneg %p53
        $region110: #{vqvae2_decoder_forward.1} parent=107 // pred_check_branch
          %658 = sbr.rel (%p656) target = $region112
        $region111: #{vqvae2_decoder_forward.1} parent=107 // pred_region
          %p659 = scmp.lt.s32.totalorder %s33, 1
          %s660 = scalar_select %p659, %s33, 1
          %s661 = smul.addr %s660, 8
          %s662 = scalar_lea.vmem %s0, %s661
        $region112: #{vqvae2_decoder_forward.1} parent=107 // pred_fallthru
          _
      $region108: #{vqvae2_decoder_forward.1} parent=5 // pred_fallthru
        _
      %p663 = scmp.le.s32.totalorder 1, %s33
      %p664 = scmp.lt.s32.totalorder %s33, 3
      %p665 = pnand %p663, %p664
      %p666 = pneg %p665
      // Predicated region
      $region113: #{vqvae2_decoder_forward.1} parent=5 // pred_check
        _
      $region114: #{vqvae2_decoder_forward.1} parent=5 // pred_check_branch
        %668 = sbr.rel (%p665) target = $region116
      $region115: #{vqvae2_decoder_forward.1} parent=5 // pred_region
        %s669 = ssub.s32 %s33, 1
        %p670 = scmp.lt.s32.totalorder %s38, 1
        %s671 = scalar_select %p670, %s38, 1
        %s672 = smul.addr %s671, 8
        %s673 = scalar_lea.vmem %s0, %s672
        %p674 = pneg %p59
        %p675 = pneg %p56
        %p676 = pneg %p80
        %p677 = pneg %p77
        %p678 = pneg %p101
        %p679 = pneg %p98
        %p680 = pneg %p122
        %p681 = pneg %p119
        %p682 = pneg %p143
        %p683 = pneg %p140
        %p684 = pneg %p164
        %p685 = pneg %p161
        %p686 = pneg %p185
        %p687 = pneg %p182
        %p688 = pneg %p206
        %p689 = pneg %p203
        %p690 = pneg %p227
        %p691 = pneg %p224
        %p692 = pneg %p248
        %p693 = pneg %p245
        %p694 = pneg %p269
        %p695 = pneg %p266
        %p696 = pneg %p290
        %p697 = pneg %p287
        %p698 = pneg %p311
        %p699 = pneg %p308
        %p700 = pneg %p332
        %p701 = pneg %p329
        %p702 = pneg %p353
        %p703 = pneg %p350
        %p704 = pneg %p374
        %p705 = pneg %p371
        %p706 = pneg %p395
        %p707 = pneg %p392
        %p708 = pneg %p416
        %p709 = pneg %p413
        %p710 = pneg %p437
        %p711 = pneg %p434
        %p712 = pneg %p458
        %p713 = pneg %p455
        %p714 = pneg %p479
        %p715 = pneg %p476
        %p716 = pneg %p500
        %p717 = pneg %p497
        %p718 = pneg %p521
        %p719 = pneg %p518
        %p720 = pneg %p542
        %p721 = pneg %p539
        %p722 = pneg %p568
        %p723 = pneg %p565
        %s724 = sand.u32 %s555, 1
        %s725 = scalar_lea.sflag [#allocation3], %s724
        %s726 = sand.u32 %s555, 1
        %s727 = smul.addr %s726, 32
        %s728 = scalar_lea.vmem [#allocation2], %s727
        %p729 = scmp.lt.s32.totalorder %s38, 1
        %s730 = scalar_select %p729, %s38, 1
        %s731 = smul.addr %s730, 8
        %s732 = scalar_lea.vmem %s0, %s731
        %v734 = vld [vmem:[%s732] sm:$0xff]
        %v736 = vrot.slane %v734, 7
        %vm738 = vcmask 1040384
        %v739 = vsel %vm738, 0.0, %v736
        %v740 = vrot.slane %v734, 1
        %vm742 = vcmask 1046528
        %v743 = vsel %vm742, %v740, 0.0
        %744 = vrot.lane.b32.xlu0 %v734, 32
        %v745 = vpop.permute.xlu0 %744
        %748 = vrot.lane.b32.xlu0 %v743, 64
        %v749 = vpop.permute.xlu0 %748
        %vm751 = vcmask 261120
        %v752 = vsel %vm751, %v739, %v745
        %vm753 = vcmask 523264
        %v754 = vsel %vm753, %v752, %v749
        %v755 = vld [vmem:[%s1] sm:$0xf]
        %v756 = vld [vmem:[%s1 + $0x4] sm:$0xf]
        %v757 = vld [vmem:[%s1 + $0x8] sm:$0xf]
        %v758 = vld [vmem:[%s1 + $0xc] sm:$0xf]
        %v759 = vld [vmem:[%s1 + $0x10] sm:$0xf]
        %v760 = vld [vmem:[%s1 + $0x14] sm:$0xf]
        %v761 = vld [vmem:[%s1 + $0x18] sm:$0xf]
        %v762 = vld [vmem:[%s1 + $0x1c] sm:$0xf]
        %v763 = vld [vmem:[%s1 + $0x20] sm:$0xf]
        %v764 = vld [vmem:[%s1 + $0x24] sm:$0xf]
        %v765 = vld [vmem:[%s1 + $0x28] sm:$0xf]
        %v766 = vld [vmem:[%s1 + $0x2c] sm:$0xf]
        %v767 = vpack.c.bf16 %v754, %v754
        %v768 = vld [vmem:[%s3] sm:$0x1]
        %v770 = vlaneseq
        %v771 = vshrl.u32 %v770, 7
        %v772 = vsub.s32 0, %v771
        %v773 = vrot.slane %v768, %v772
        %v787 = vunpack.c.l.b16 %v755
        %v788 = vunpack.c.l.b16 %v756
        %v789 = vunpack.c.l.b16 %v757
        %v790 = vunpack.c.l.b16 %v758
        %v791 = vunpack.c.l.b16 %v759
        %v792 = vunpack.c.l.b16 %v760
        %v793 = vunpack.c.l.b16 %v761
        %v794 = vunpack.c.l.b16 %v762
        %v795 = vunpack.c.l.b16 %v763
        %v796 = vunpack.c.l.b16 %v764
        %v797 = vunpack.c.l.b16 %v765
        %v798 = vunpack.c.l.b16 %v766
        %v799 = vpack.c.b16 %v788, %v787
        %v800 = vpack.c.b16 %v790, %v789
        %v801 = vpack.c.b16 %v792, %v791
        %v802 = vpack.c.b16 %v794, %v793
        %v803 = vpack.c.b16 %v796, %v795
        %v804 = vpack.c.b16 %v798, %v797
        %vm811 = vcmask 785408
        %v813 = vsel %vm811, %v767, 0
        %815 = vmatprep.subr.bf16.mxu0 0
        %816 = vmatpush1.bf16.msra.mxu0 %v799
        %817 = vmatprep.subr.bf16.mxu0 0
        %818 = vmatpush1.bf16.msra.mxu0 %v800
        %819 = vmatprep.subr.bf16.mxu0 0
        %820 = vmatpush1.bf16.msra.mxu0 %v801
        %821 = vmatprep.subr.bf16.mxu0 0
        %822 = vmatpush1.bf16.msra.mxu0 %v802
        %823 = vmatprep.subr.bf16.mxu0 0
        %824 = vmatpush1.bf16.msra.mxu0 %v803
        %825 = vmatprep.subr.bf16.mxu0 0
        %826 = vmatpush1.bf16.msra.mxu0 %v804
        %827 = vmatprep.subr.bf16.mxu0 0
        %828 = vmatpush1.bf16.msra.mxu0 0
        %829 = vmatprep.subr.bf16.mxu0 0
        %830 = vmatpush1.bf16.msra.mxu0 0
        %831 = vmatprep.subr.bf16.mxu0 0
        %832 = vmatpush1.bf16.msra.mxu0 0
        %833 = vmatprep.subr.bf16.mxu0 0
        %834 = vmatpush1.bf16.msra.mxu0 0
        %835 = vmatprep.subr.bf16.mxu0 0
        %836 = vmatpush1.bf16.msra.mxu0 0
        %837 = vmatprep.subr.bf16.mxu0 0
        %838 = vmatpush1.bf16.msra.mxu0 0
        %839 = vmatprep.subr.bf16.mxu0 0
        %840 = vmatpush1.bf16.msra.mxu0 0
        %841 = vmatprep.subr.bf16.mxu0 0
        %842 = vmatpush1.bf16.msra.mxu0 0
        %843 = vmatprep.subr.bf16.mxu0 0
        %844 = vmatpush1.bf16.msra.mxu0 0
        %845 = vmatprep.subr.bf16.mxu0 0
        %846 = vmatpush1.bf16.msra.mxu0 0
        %847 = vmatprep.mubr.bf16.mxu0 0
        %848 = vmatmul.mubr.bf16.gmra.mrb[0].mxu0 %v813
        %v849 = vpop.f32.mrb[0].mxu0
        %v850 = vadd.f32 %v773, %v849
        %v851 = vpop.f32.mrb[0].mxu0
        %v852 = vpop.f32.mrb[0].mxu0
        %v853 = vpop.f32.mrb[0].mxu0
        %854 = vdwg.mxu0
        %855 = vrot.lane.b32.xlu0 %v743, 32
        %v856 = vpop.permute.xlu0 %855
        %v858 = vsel %vm751, %v734, %v856
        %v859 = vld [vmem:[%s2] sm:$0xf]
        %v860 = vld [vmem:[%s2 + $0x4] sm:$0xf]
        %v861 = vld [vmem:[%s2 + $0x8] sm:$0xf]
        %v862 = vld [vmem:[%s2 + $0xc] sm:$0xf]
        %v863 = vld [vmem:[%s2 + $0x10] sm:$0xf]
        %v864 = vld [vmem:[%s2 + $0x14] sm:$0xf]
        %v865 = vld [vmem:[%s2 + $0x18] sm:$0xf]
        %v866 = vld [vmem:[%s2 + $0x1c] sm:$0xf]
        %v867 = vpack.c.bf16 %v858, %v858
        %v876 = vunpack.c.l.b16 %v859
        %v877 = vunpack.c.l.b16 %v860
        %v878 = vunpack.c.l.b16 %v861
        %v879 = vunpack.c.l.b16 %v862
        %v880 = vunpack.c.l.b16 %v863
        %v881 = vunpack.c.l.b16 %v864
        %v882 = vunpack.c.l.b16 %v865
        %v883 = vunpack.c.l.b16 %v866
        %v884 = vpack.c.b16 %v877, %v876
        %v885 = vpack.c.b16 %v879, %v878
        %v886 = vpack.c.b16 %v881, %v880
        %v887 = vpack.c.b16 %v883, %v882
        %v893 = vsel %vm753, %v867, 0
        %895 = vmatprep.subr.bf16.mxu0 0
        %896 = vmatpush1.bf16.msra.mxu0 %v884
        %897 = vmatprep.subr.bf16.mxu0 0
        %898 = vmatpush1.bf16.msra.mxu0 %v885
        %899 = vmatprep.subr.bf16.mxu0 0
        %900 = vmatpush1.bf16.msra.mxu0 %v886
        %901 = vmatprep.subr.bf16.mxu0 0
        %902 = vmatpush1.bf16.msra.mxu0 %v887
        %903 = vmatprep.subr.bf16.mxu0 0
        %904 = vmatpush1.bf16.msra.mxu0 0
        %905 = vmatprep.subr.bf16.mxu0 0
        %906 = vmatpush1.bf16.msra.mxu0 0
        %907 = vmatprep.subr.bf16.mxu0 0
        %908 = vmatpush1.bf16.msra.mxu0 0
        %909 = vmatprep.subr.bf16.mxu0 0
        %910 = vmatpush1.bf16.msra.mxu0 0
        %911 = vmatprep.subr.bf16.mxu0 0
        %912 = vmatpush1.bf16.msra.mxu0 0
        %913 = vmatprep.subr.bf16.mxu0 0
        %914 = vmatpush1.bf16.msra.mxu0 0
        %915 = vmatprep.subr.bf16.mxu0 0
        %916 = vmatpush1.bf16.msra.mxu0 0
        %917 = vmatprep.subr.bf16.mxu0 0
        %918 = vmatpush1.bf16.msra.mxu0 0
        %919 = vmatprep.subr.bf16.mxu0 0
        %920 = vmatpush1.bf16.msra.mxu0 0
        %921 = vmatprep.subr.bf16.mxu0 0
        %922 = vmatpush1.bf16.msra.mxu0 0
        %923 = vmatprep.subr.bf16.mxu0 0
        %924 = vmatpush1.bf16.msra.mxu0 0
        %925 = vmatprep.subr.bf16.mxu0 0
        %926 = vmatpush1.bf16.msra.mxu0 0
        %927 = vmatprep.mubr.bf16.mxu0 0
        %928 = vmatmul.mubr.bf16.gmra.mrb[0].mxu0 %v893
        %v929 = vpop.f32.mrb[0].mxu0
        %v930 = vadd.f32 %v773, %v929
        %v931 = vpop.f32.mrb[0].mxu0
        %v932 = vpop.f32.mrb[0].mxu0
        %v933 = vpop.f32.mrb[0].mxu0
        %934 = vdwg.mxu0
        %vm935 = vcmp.ge.f32.partialorder %v850, 0.0
        %v936 = vmul.f32 %v850, 0.2
        %v937 = vsel %vm935, %v850, %v936
        %v938 = vld [vmem:[%s4] sm:$0x1]
        %v940 = vlaneseq
        %v941 = vshrl.u32 %v940, 7
        %v942 = vsub.s32 0, %v941
        %v943 = vrot.slane %v938, %v942
        %v945 = vmul.f32 %v937, %v943
        %v946 = vld [vmem:[%s5] sm:$0x1]
        %v948 = vlaneseq
        %v949 = vshrl.u32 %v948, 7
        %v950 = vsub.s32 0, %v949
        %v951 = vrot.slane %v946, %v950
        %v953 = vadd.f32 %v945, %v951
        %vm954 = vcmp.ge.f32.partialorder %v930, 0.0
        %v955 = vmul.f32 %v930, 0.2
        %v956 = vsel %vm954, %v930, %v955
        %v957 = vmul.f32 %v956, %v943
        %v958 = vadd.f32 %v957, %v951
        %v959 = vlaneseq
        %v960 = vshrl.u32 %v959, 7
        %v961 = vadd.s32 %v960, 8
        %v962 = vlaneseq
        %v963 = vand.u32 %v962, 127
        %v964 = vmul.u32 %v963, 2
        %vm965 = vcmp.eq.s32.totalorder %v960, %v964
        %vm966 = vcmp.eq.s32.totalorder %v961, %v964
        %v967 = vsel %vm965, 1.0, 0.0
        %v968 = vsel %vm966, 1.0, 0.0
        %v969 = vpack.c.bf16 %v968, %v967
        %v970 = vadd.s32 %v964, 1
        %vm971 = vcmp.eq.s32.totalorder %v960, %v970
        %vm972 = vcmp.eq.s32.totalorder %v961, %v970
        %v973 = vsel %vm971, 1.0, 0.0
        %v974 = vsel %vm972, 1.0, 0.0
        %v975 = vpack.c.bf16 %v974, %v973
        %v976 = vpack.c.bf16 %v953, %v953
        %v977 = vpack.c.bf16 %v958, %v958
        %vm978 = vcmask 64512
        %v980 = vsel %vm978, %v975, 0
        %vm982 = vcmask 1043456
        %v984 = vsel %vm982, %v977, 0
        %986 = vmatprep.subr.bf16.mxu0 0
        %987 = vmatpush1.bf16.msra.mxu0 %v984
        %988 = vmatprep.subr.bf16.mxu0 0
        %989 = vmatpush1.bf16.msra.mxu0 0
        %990 = vmatprep.subr.bf16.mxu0 0
        %991 = vmatpush1.bf16.msra.mxu0 0
        %992 = vmatprep.subr.bf16.mxu0 0
        %993 = vmatpush1.bf16.msra.mxu0 0
        %994 = vmatprep.subr.bf16.mxu0 0
        %995 = vmatpush1.bf16.msra.mxu0 0
        %996 = vmatprep.subr.bf16.mxu0 0
        %997 = vmatpush1.bf16.msra.mxu0 0
        %998 = vmatprep.subr.bf16.mxu0 0
        %999 = vmatpush1.bf16.msra.mxu0 0
        %1000 = vmatprep.subr.bf16.mxu0 0
        %1001 = vmatpush1.bf16.msra.mxu0 0
        %1002 = vmatprep.subr.bf16.mxu0 0
        %1003 = vmatpush1.bf16.msra.mxu0 0
        %1004 = vmatprep.subr.bf16.mxu0 0
        %1005 = vmatpush1.bf16.msra.mxu0 0
        %1006 = vmatprep.subr.bf16.mxu0 0
        %1007 = vmatpush1.bf16.msra.mxu0 0
        %1008 = vmatprep.subr.bf16.mxu0 0
        %1009 = vmatpush1.bf16.msra.mxu0 0
        %1010 = vmatprep.subr.bf16.mxu0 0
        %1011 = vmatpush1.bf16.msra.mxu0 0
        %1012 = vmatprep.subr.bf16.mxu0 0
        %1013 = vmatpush1.bf16.msra.mxu0 0
        %1014 = vmatprep.subr.bf16.mxu0 0
        %1015 = vmatpush1.bf16.msra.mxu0 0
        %1016 = vmatprep.subr.bf16.mxu0 0
        %1017 = vmatpush1.bf16.msra.mxu0 0
        %1018 = vmatprep.mubr.bf16.mxu0 0
        %1019 = vmatmul.mubr.bf16.gmra.mrb[0].mxu0 %v980
        %v1020 = vpop.f32.mrb[0].mxu0
        %v1021 = vadd.f32 0.0, %v1020
        %v1022 = vpop.f32.mrb[0].mxu0
        %v1023 = vpop.f32.mrb[0].mxu0
        %v1024 = vadd.f32 0.0, %v1023
        %v1025 = vpop.f32.mrb[0].mxu0
        %1026 = vdwg.mxu0
        %v1028 = vsel %vm978, %v969, 0
        %v1031 = vsel %vm982, %v976, 0
        %1033 = vmatprep.subr.bf16.mxu0 0
        %1034 = vmatpush1.bf16.msra.mxu0 %v1031
        %1035 = vmatprep.subr.bf16.mxu0 0
        %1036 = vmatpush1.bf16.msra.mxu0 0
        %1037 = vmatprep.subr.bf16.mxu0 0
        %1038 = vmatpush1.bf16.msra.mxu0 0
        %1039 = vmatprep.subr.bf16.mxu0 0
        %1040 = vmatpush1.bf16.msra.mxu0 0
        %1041 = vmatprep.subr.bf16.mxu0 0
        %1042 = vmatpush1.bf16.msra.mxu0 0
        %1043 = vmatprep.subr.bf16.mxu0 0
        %1044 = vmatpush1.bf16.msra.mxu0 0
        %1045 = vmatprep.subr.bf16.mxu0 0
        %1046 = vmatpush1.bf16.msra.mxu0 0
        %1047 = vmatprep.subr.bf16.mxu0 0
        %1048 = vmatpush1.bf16.msra.mxu0 0
        %1049 = vmatprep.subr.bf16.mxu0 0
        %1050 = vmatpush1.bf16.msra.mxu0 0
        %1051 = vmatprep.subr.bf16.mxu0 0
        %1052 = vmatpush1.bf16.msra.mxu0 0
        %1053 = vmatprep.subr.bf16.mxu0 0
        %1054 = vmatpush1.bf16.msra.mxu0 0
        %1055 = vmatprep.subr.bf16.mxu0 0
        %1056 = vmatpush1.bf16.msra.mxu0 0
        %1057 = vmatprep.subr.bf16.mxu0 0
        %1058 = vmatpush1.bf16.msra.mxu0 0
        %1059 = vmatprep.subr.bf16.mxu0 0
        %1060 = vmatpush1.bf16.msra.mxu0 0
        %1061 = vmatprep.subr.bf16.mxu0 0
        %1062 = vmatpush1.bf16.msra.mxu0 0
        %1063 = vmatprep.subr.bf16.mxu0 0
        %1064 = vmatpush1.bf16.msra.mxu0 0
        %1065 = vmatprep.mubr.bf16.mxu0 0
        %1066 = vmatmul.mubr.bf16.gmra.mrb[0].mxu0 %v1028
        %v1067 = vpop.f32.mrb[0].mxu0
        %v1068 = vadd.f32 %v1021, %v1067
        %v1069 = vpop.f32.mrb[0].mxu0
        %v1070 = vpop.f32.mrb[0].mxu0
        %v1071 = vadd.f32 %v1024, %v1070
        %v1072 = vpop.f32.mrb[0].mxu0
        %1073 = vdwg.mxu0
        %v1075 = vrot.slane %v1068, 7
        %vm1078 = vcmask 1041408
        %v1079 = vrot.slane %v1068, 6
        %v1080 = vrot.slane %v1071, 6
        %v1081 = vsel %vm1078, %v1079, %v1080
        %v1084 = vsel %vm738, %v1068, %v1075
        %v1085 = vsel %vm1078, %v1084, %v1079
        %v1086 = vrot.slane %v1071, 7
        %v1087 = vsel %vm738, %v1075, %v1086
        %v1088 = vrot.slane %v1068, 1
        %v1089 = vrot.slane %v1071, 1
        %v1090 = vsel %vm742, %v1088, %v1089
        %v1092 = vsel %vm742, %v1089, %v1071
        %vm1093 = vcmask 1045504
        %v1094 = vrot.slane %v1068, 2
        %v1095 = vrot.slane %v1071, 2
        %v1096 = vsel %vm1093, %v1094, %v1095
        %v1099 = vsel %vm1093, %v1095, %v1089
        %v1100 = vsel %vm742, %v1099, %v1071
        %1102 = vrot.lane.b32.xlu0 %v1084, 32
        %v1103 = vpop.permute.xlu0 %1102
        %1104 = vrot.lane.b32.xlu0 %v1087, 32
        %v1105 = vpop.permute.xlu0 %1104
        %1108 = vrot.lane.b32.xlu0 %v1068, 64
        %v1109 = vpop.permute.xlu0 %1108
        %1110 = vrot.lane.b32.xlu0 %v1071, 64
        %v1111 = vpop.permute.xlu0 %1110
        %1115 = vrot.lane.b32.xlu0 %v1090, 96
        %v1116 = vpop.permute.xlu0 %1115
        %1117 = vrot.lane.b32.xlu0 %v1092, 96
        %v1118 = vpop.permute.xlu0 %1117
        %v1121 = vsel %vm751, %v1085, %v1103
        %v1122 = vsel %vm751, %v1081, %v1105
        %v1123 = vsel %vm753, %v1121, %v1109
        %v1124 = vsel %vm753, %v1122, %v1111
        %v1125 = vsel %vm811, %v1123, %v1116
        %v1126 = vsel %vm811, %v1124, %v1118
        %v1127 = vld [vmem:[%s6] sm:$0xf]
        %v1128 = vld [vmem:[%s6 + $0x4] sm:$0xf]
        %v1129 = vld [vmem:[%s6 + $0x8] sm:$0xf]
        %v1130 = vld [vmem:[%s6 + $0xc] sm:$0xf]
        %v1131 = vld [vmem:[%s6 + $0x10] sm:$0xf]
        %v1132 = vld [vmem:[%s6 + $0x14] sm:$0xf]
        %v1133 = vld [vmem:[%s6 + $0x18] sm:$0xf]
        %v1134 = vld [vmem:[%s6 + $0x1c] sm:$0xf]
        %v1135 = vld [vmem:[%s6 + $0x20] sm:$0xf]
        %v1136 = vld [vmem:[%s6 + $0x24] sm:$0xf]
        %v1137 = vld [vmem:[%s6 + $0x28] sm:$0xf]
        %v1138 = vld [vmem:[%s6 + $0x2c] sm:$0xf]
        %v1139 = vld [vmem:[%s6 + $0x30] sm:$0xf]
        %v1140 = vld [vmem:[%s6 + $0x34] sm:$0xf]
        %v1141 = vld [vmem:[%s6 + $0x38] sm:$0xf]
        %v1142 = vld [vmem:[%s6 + $0x3c] sm:$0xf]
        %v1143 = vld [vmem:[%s6 + $0x40] sm:$0xf]
        %v1144 = vld [vmem:[%s6 + $0x44] sm:$0xf]
        %v1145 = vld [vmem:[%s6 + $0x48] sm:$0xf]
        %v1146 = vld [vmem:[%s6 + $0x4c] sm:$0xf]
        %v1147 = vpack.c.bf16 %v1126, %v1125
        %v1148 = vpack.c.bf16 %v1100, %v1096
        %v1149 = vld [vmem:[%s7] sm:$0x1]
        %v1151 = vlaneseq
        %v1152 = vshrl.u32 %v1151, 7
        %v1153 = vsub.s32 0, %v1152
        %v1154 = vrot.slane %v1149, %v1153
        %v1176 = vunpack.c.l.b16 %v1127
        %v1177 = vunpack.c.l.b16 %v1128
        %v1178 = vunpack.c.l.b16 %v1129
        %v1179 = vunpack.c.l.b16 %v1130
        %v1180 = vunpack.c.l.b16 %v1131
        %v1181 = vunpack.c.l.b16 %v1132
        %v1182 = vunpack.c.l.b16 %v1133
        %v1183 = vunpack.c.l.b16 %v1134
        %v1184 = vunpack.c.l.b16 %v1135
        %v1185 = vunpack.c.l.b16 %v1136
        %v1186 = vunpack.c.l.b16 %v1137
        %v1187 = vunpack.c.l.b16 %v1138
        %v1188 = vunpack.c.l.b16 %v1139
        %v1189 = vunpack.c.l.b16 %v1140
        %v1190 = vunpack.c.l.b16 %v1141
        %v1191 = vunpack.c.l.b16 %v1142
        %v1192 = vunpack.c.l.b16 %v1143
        %v1193 = vunpack.c.l.b16 %v1144
        %v1194 = vunpack.c.l.b16 %v1145
        %v1195 = vunpack.c.l.b16 %v1146
        %v1196 = vpack.c.b16 %v1177, %v1176
        %v1197 = vpack.c.b16 %v1179, %v1178
        %v1198 = vpack.c.b16 %v1181, %v1180
        %v1199 = vpack.c.b16 %v1183, %v1182
        %v1200 = vpack.c.b16 %v1185, %v1184
        %v1201 = vpack.c.b16 %v1187, %v1186
        %v1202 = vpack.c.b16 %v1189, %v1188
        %v1203 = vpack.c.b16 %v1191, %v1190
        %v1204 = vpack.c.b16 %v1193, %v1192
        %v1205 = vpack.c.b16 %v1195, %v1194
        %v1217 = vsel %vm751, %v1148, 0
        %1219 = vmatprep.subr.bf16.mxu0 0
        %1220 = vmatpush1.bf16.msra.mxu0 %v1196
        %1221 = vmatprep.subr.bf16.mxu0 0
        %1222 = vmatpush1.bf16.msra.mxu0 %v1197
        %1223 = vmatprep.subr.bf16.mxu0 0
        %1224 = vmatpush1.bf16.msra.mxu0 %v1198
        %1225 = vmatprep.subr.bf16.mxu0 0
        %1226 = vmatpush1.bf16.msra.mxu0 %v1199
        %1227 = vmatprep.subr.bf16.mxu0 0
        %1228 = vmatpush1.bf16.msra.mxu0 %v1200
        %1229 = vmatprep.subr.bf16.mxu0 0
        %1230 = vmatpush1.bf16.msra.mxu0 %v1201
        %1231 = vmatprep.subr.bf16.mxu0 0
        %1232 = vmatpush1.bf16.msra.mxu0 %v1202
        %1233 = vmatprep.subr.bf16.mxu0 0
        %1234 = vmatpush1.bf16.msra.mxu0 %v1203
        %1235 = vmatprep.subr.bf16.mxu0 0
        %1236 = vmatpush1.bf16.msra.mxu0 %v1204
        %1237 = vmatprep.subr.bf16.mxu0 0
        %1238 = vmatpush1.bf16.msra.mxu0 %v1205
        %1239 = vmatprep.subr.bf16.mxu0 0
        %1240 = vmatpush1.bf16.msra.mxu0 0
        %1241 = vmatprep.subr.bf16.mxu0 0
        %1242 = vmatpush1.bf16.msra.mxu0 0
        %1243 = vmatprep.subr.bf16.mxu0 0
        %1244 = vmatpush1.bf16.msra.mxu0 0
        %1245 = vmatprep.subr.bf16.mxu0 0
        %1246 = vmatpush1.bf16.msra.mxu0 0
        %1247 = vmatprep.subr.bf16.mxu0 0
        %1248 = vmatpush1.bf16.msra.mxu0 0
        %1249 = vmatprep.subr.bf16.mxu0 0
        %1250 = vmatpush1.bf16.msra.mxu0 0
        %1251 = vmatprep.mubr.bf16.mxu0 %v1217
        %1252 = vmatmul.mubr.bf16.gmra.mrb[0].mxu0 %v1147
        %v1253 = vpop.f32.mrb[0].mxu0
        %v1254 = vadd.f32 %v1154, %v1253
        %v1255 = vpop.f32.mrb[0].mxu0
        %v1256 = vpop.f32.mrb[0].mxu0
        %v1257 = vadd.f32 %v1154, %v1256
        %v1258 = vpop.f32.mrb[0].mxu0
        %1259 = vdwg.mxu0
        %vm1260 = vcmp.ge.f32.partialorder %v1254, 0.0
        %vm1261 = vcmp.ge.f32.partialorder %v1257, 0.0
        %v1262 = vmul.f32 %v1254, 0.2
        %v1263 = vmul.f32 %v1257, 0.2
        %v1264 = vsel %vm1260, %v1254, %v1262
        %v1265 = vsel %vm1261, %v1257, %v1263
        %v1266 = vld [vmem:[%s8] sm:$0x1]
        %v1268 = vlaneseq
        %v1269 = vshrl.u32 %v1268, 7
        %v1270 = vsub.s32 0, %v1269
        %v1271 = vrot.slane %v1266, %v1270
        %v1273 = vmul.f32 %v1264, %v1271
        %v1274 = vmul.f32 %v1265, %v1271
        %v1275 = vld [vmem:[%s9] sm:$0x1]
        %v1277 = vlaneseq
        %v1278 = vshrl.u32 %v1277, 7
        %v1279 = vsub.s32 0, %v1278
        %v1280 = vrot.slane %v1275, %v1279
        %v1282 = vadd.f32 %v1273, %v1280
        %v1283 = vadd.f32 %v1274, %v1280
        %v1284 = vadd.s32 %v960, 16
        %v1285 = vadd.s32 %v960, 24
        %vm1286 = vcmp.eq.s32.totalorder %v1284, %v964
        %vm1287 = vcmp.eq.s32.totalorder %v1285, %v964
        %vm1288 = vcmp.eq.s32.totalorder %v1284, %v970
        %vm1289 = vcmp.eq.s32.totalorder %v1285, %v970
        %vm1290 = vmor %vm965, %vm971
        %vm1291 = vmor %vm966, %vm972
        %vm1292 = vmor %vm1286, %vm1288
        %vm1293 = vmor %vm1287, %vm1289
        %v1294 = vsel %vm1290, 1.0, 0.0
        %v1295 = vsel %vm1291, 1.0, 0.0
        %v1296 = vsel %vm1292, 1.0, 0.0
        %v1297 = vsel %vm1293, 1.0, 0.0
        %v1298 = vpack.c.bf16 %v1295, %v1294
        %v1299 = vpack.c.bf16 %v1297, %v1296
        %v1300 = vpack.c.bf16 %v1283, %v1282
        %vm1301 = vcmask 130048
        %v1303 = vsel %vm1301, %v1298, 0
        %v1306 = vsel %vm1301, %v1299, 0
        %1308 = vmatprep.subr.bf16.mxu0 0
        %1309 = vmatpush1.bf16.msra.mxu0 %v1300
        %1310 = vmatprep.subr.bf16.mxu0 0
        %1311 = vmatpush1.bf16.msra.mxu0 0
        %1312 = vmatprep.subr.bf16.mxu0 0
        %1313 = vmatpush1.bf16.msra.mxu0 0
        %1314 = vmatprep.subr.bf16.mxu0 0
        %1315 = vmatpush1.bf16.msra.mxu0 0
        %1316 = vmatprep.subr.bf16.mxu0 0
        %1317 = vmatpush1.bf16.msra.mxu0 0
        %1318 = vmatprep.subr.bf16.mxu0 0
        %1319 = vmatpush1.bf16.msra.mxu0 0
        %1320 = vmatprep.subr.bf16.mxu0 0
        %1321 = vmatpush1.bf16.msra.mxu0 0
        %1322 = vmatprep.subr.bf16.mxu0 0
        %1323 = vmatpush1.bf16.msra.mxu0 0
        %1324 = vmatprep.subr.bf16.mxu0 0
        %1325 = vmatpush1.bf16.msra.mxu0 0
        %1326 = vmatprep.subr.bf16.mxu0 0
        %1327 = vmatpush1.bf16.msra.mxu0 0
        %1328 = vmatprep.subr.bf16.mxu0 0
        %1329 = vmatpush1.bf16.msra.mxu0 0
        %1330 = vmatprep.subr.bf16.mxu0 0
        %1331 = vmatpush1.bf16.msra.mxu0 0
        %1332 = vmatprep.subr.bf16.mxu0 0
        %1333 = vmatpush1.bf16.msra.mxu0 0
        %1334 = vmatprep.subr.bf16.mxu0 0
        %1335 = vmatpush1.bf16.msra.mxu0 0
        %1336 = vmatprep.subr.bf16.mxu0 0
        %1337 = vmatpush1.bf16.msra.mxu0 0
        %1338 = vmatprep.subr.bf16.mxu0 0
        %1339 = vmatpush1.bf16.msra.mxu0 0
        %1340 = vmatprep.mubr.bf16.mxu0 0
        %1341 = vmatmul.mubr.bf16.gmra.mrb[0].mxu0 %v1303
        %v1342 = vpop.f32.mrb[0].mxu0
        %v1343 = vadd.f32 0.0, %v1342
        %v1344 = vpop.f32.mrb[0].mxu0
        %v1345 = vpop.f32.mrb[0].mxu0
        %v1346 = vadd.f32 0.0, %v1345
        %v1347 = vpop.f32.mrb[0].mxu0
        %1348 = vmatprep.mubr.bf16.mxu0 0
        %1349 = vmatmul.mubr.bf16.gmra.mrb[0].mxu0 %v1306
        %v1350 = vpop.f32.mrb[0].mxu0
        %v1351 = vadd.f32 0.0, %v1350
        %v1352 = vpop.f32.mrb[0].mxu0
        %v1353 = vpop.f32.mrb[0].mxu0
        %v1354 = vadd.f32 0.0, %v1353
        %v1355 = vpop.f32.mrb[0].mxu0
        %1356 = vdwg.mxu0
        %v1357 = vld [vmem:[%s10] sm:$0xf]
        %v1358 = vld [vmem:[%s10 + $0x4] sm:$0xf]
        %v1359 = vld [vmem:[%s10 + $0x8] sm:$0xf]
        %v1360 = vld [vmem:[%s10 + $0xc] sm:$0xf]
        %v1361 = vpack.c.bf16 %v1346, %v1343
        %v1362 = vpack.c.bf16 %v1354, %v1351
        %v1363 = vld [vmem:[%s11] sm:$0x1]
        %v1365 = vlaneseq
        %v1366 = vshrl.u32 %v1365, 7
        %v1367 = vsub.s32 0, %v1366
        %v1368 = vrot.slane %v1363, %v1367
        %v1374 = vunpack.c.l.b16 %v1357
        %v1375 = vunpack.c.l.b16 %v1358
        %v1376 = vunpack.c.l.b16 %v1359
        %v1377 = vunpack.c.l.b16 %v1360
        %v1378 = vpack.c.b16 %v1375, %v1374
        %v1379 = vpack.c.b16 %v1377, %v1376
        %v1383 = vsel %vm751, %v1361, 0
        %v1386 = vsel %vm751, %v1362, 0
        %1388 = vmatprep.subr.bf16.mxu0 0
        %1389 = vmatpush1.bf16.msra.mxu0 %v1378
        %1390 = vmatprep.subr.bf16.mxu0 0
        %1391 = vmatpush1.bf16.msra.mxu0 %v1379
        %1392 = vmatprep.subr.bf16.mxu0 0
        %1393 = vmatpush1.bf16.msra.mxu0 0
        %1394 = vmatprep.subr.bf16.mxu0 0
        %1395 = vmatpush1.bf16.msra.mxu0 0
        %1396 = vmatprep.subr.bf16.mxu0 0
        %1397 = vmatpush1.bf16.msra.mxu0 0
        %1398 = vmatprep.subr.bf16.mxu0 0
        %1399 = vmatpush1.bf16.msra.mxu0 0
        %1400 = vmatprep.subr.bf16.mxu0 0
        %1401 = vmatpush1.bf16.msra.mxu0 0
        %1402 = vmatprep.subr.bf16.mxu0 0
        %1403 = vmatpush1.bf16.msra.mxu0 0
        %1404 = vmatprep.subr.bf16.mxu0 0
        %1405 = vmatpush1.bf16.msra.mxu0 0
        %1406 = vmatprep.subr.bf16.mxu0 0
        %1407 = vmatpush1.bf16.msra.mxu0 0
        %1408 = vmatprep.subr.bf16.mxu0 0
        %1409 = vmatpush1.bf16.msra.mxu0 0
        %1410 = vmatprep.subr.bf16.mxu0 0
        %1411 = vmatpush1.bf16.msra.mxu0 0
        %1412 = vmatprep.subr.bf16.mxu0 0
        %1413 = vmatpush1.bf16.msra.mxu0 0
        %1414 = vmatprep.subr.bf16.mxu0 0
        %1415 = vmatpush1.bf16.msra.mxu0 0
        %1416 = vmatprep.subr.bf16.mxu0 0
        %1417 = vmatpush1.bf16.msra.mxu0 0
        %1418 = vmatprep.subr.bf16.mxu0 0
        %1419 = vmatpush1.bf16.msra.mxu0 0
        %1420 = vmatprep.mubr.bf16.mxu0 0
        %1421 = vmatmul.mubr.bf16.gmra.mrb[0].mxu0 %v1383
        %v1422 = vpop.f32.mrb[0].mxu0
        %v1423 = vadd.f32 %v1368, %v1422
        %v1424 = vpop.f32.mrb[0].mxu0
        %v1425 = vpop.f32.mrb[0].mxu0
        %v1426 = vadd.f32 %v1368, %v1425
        %v1427 = vpop.f32.mrb[0].mxu0
        %1428 = vmatprep.mubr.bf16.mxu0 0
        %1429 = vmatmul.mubr.bf16.gmra.mrb[0].mxu0 %v1386
        %v1430 = vpop.f32.mrb[0].mxu0
        %v1431 = vadd.f32 %v1368, %v1430
        %v1432 = vpop.f32.mrb[0].mxu0
        %v1433 = vpop.f32.mrb[0].mxu0
        %v1434 = vadd.f32 %v1368, %v1433
        %v1435 = vpop.f32.mrb[0].mxu0
        %1436 = vdwg.mxu0
        %v1437 = vld [vmem:[%s12] sm:$0xf]
        %v1438 = vld [vmem:[%s12 + $0x4] sm:$0xf]
        %v1439 = vld [vmem:[%s12 + $0x8] sm:$0xf]
        %v1440 = vld [vmem:[%s12 + $0xc] sm:$0xf]
        %v1441 = vpack.c.bf16 %v1426, %v1423
        %v1442 = vpack.c.bf16 %v1434, %v1431
        %v1443 = vld [vmem:[%s13] sm:$0x1]
        %v1445 = vlaneseq
        %v1446 = vshrl.u32 %v1445, 7
        %v1447 = vsub.s32 0, %v1446
        %v1448 = vrot.slane %v1443, %v1447
        %v1454 = vunpack.c.l.b16 %v1437
        %v1455 = vunpack.c.l.b16 %v1438
        %v1456 = vunpack.c.l.b16 %v1439
        %v1457 = vunpack.c.l.b16 %v1440
        %v1458 = vpack.c.b16 %v1455, %v1454
        %v1459 = vpack.c.b16 %v1457, %v1456
        %v1463 = vsel %vm751, %v1441, 0
        %v1466 = vsel %vm751, %v1442, 0
        %1468 = vmatprep.subr.bf16.mxu0 0
        %1469 = vmatpush1.bf16.msra.mxu0 %v1458
        %1470 = vmatprep.subr.bf16.mxu0 0
        %1471 = vmatpush1.bf16.msra.mxu0 %v1459
        %1472 = vmatprep.subr.bf16.mxu0 0
        %1473 = vmatpush1.bf16.msra.mxu0 0
        %1474 = vmatprep.subr.bf16.mxu0 0
        %1475 = vmatpush1.bf16.msra.mxu0 0
        %1476 = vmatprep.subr.bf16.mxu0 0
        %1477 = vmatpush1.bf16.msra.mxu0 0
        %1478 = vmatprep.subr.bf16.mxu0 0
        %1479 = vmatpush1.bf16.msra.mxu0 0
        %1480 = vmatprep.subr.bf16.mxu0 0
        %1481 = vmatpush1.bf16.msra.mxu0 0
        %1482 = vmatprep.subr.bf16.mxu0 0
        %1483 = vmatpush1.bf16.msra.mxu0 0
        %1484 = vmatprep.subr.bf16.mxu0 0
        %1485 = vmatpush1.bf16.msra.mxu0 0
        %1486 = vmatprep.subr.bf16.mxu0 0
        %1487 = vmatpush1.bf16.msra.mxu0 0
        %1488 = vmatprep.subr.bf16.mxu0 0
        %1489 = vmatpush1.bf16.msra.mxu0 0
        %1490 = vmatprep.subr.bf16.mxu0 0
        %1491 = vmatpush1.bf16.msra.mxu0 0
        %1492 = vmatprep.subr.bf16.mxu0 0
        %1493 = vmatpush1.bf16.msra.mxu0 0
        %1494 = vmatprep.subr.bf16.mxu0 0
        %1495 = vmatpush1.bf16.msra.mxu0 0
        %1496 = vmatprep.subr.bf16.mxu0 0
        %1497 = vmatpush1.bf16.msra.mxu0 0
        %1498 = vmatprep.subr.bf16.mxu0 0
        %1499 = vmatpush1.bf16.msra.mxu0 0
        %1500 = vmatprep.mubr.bf16.mxu0 0
        %1501 = vmatmul.mubr.bf16.gmra.mrb[0].mxu0 %v1463
        %v1502 = vpop.f32.mrb[0].mxu0
        %v1503 = vadd.f32 %v1448, %v1502
        %v1504 = vpop.f32.mrb[0].mxu0
        %v1505 = vpop.f32.mrb[0].mxu0
        %v1506 = vadd.f32 %v1448, %v1505
        %v1507 = vpop.f32.mrb[0].mxu0
        %1508 = vmatprep.mubr.bf16.mxu0 0
        %1509 = vmatmul.mubr.bf16.gmra.mrb[0].mxu0 %v1466
        %v1510 = vpop.f32.mrb[0].mxu0
        %v1511 = vadd.f32 %v1448, %v1510
        %v1512 = vpop.f32.mrb[0].mxu0
        %v1513 = vpop.f32.mrb[0].mxu0
        %v1514 = vadd.f32 %v1448, %v1513
        %v1515 = vpop.f32.mrb[0].mxu0
        %1516 = vdwg.mxu0
        %1521 = vrot.lane.b32.xlu0 %v1503, 112
        %v1522 = vpop.permute.xlu0 %1521
        %1523 = vrot.lane.b32.xlu0 %v1506, 112
        %v1524 = vpop.permute.xlu0 %1523
        %1525 = vrot.lane.b32.xlu0 %v1511, 112
        %v1526 = vpop.permute.xlu0 %1525
        %1527 = vrot.lane.b32.xlu0 %v1514, 112
        %v1528 = vpop.permute.xlu0 %1527
        %v1533 = vpack.c.bf16 %v1506, %v1503
        %v1534 = vpack.c.bf16 %v1514, %v1511
        %v1535 = vpack.c.bf16 %v1524, %v1522
        %v1536 = vpack.c.bf16 %v1528, %v1526
        %1539 = vrot.lane.b32.xlu0 %v1533, 96
        %v1540 = vpop.permute.xlu0 %1539
        %1541 = vrot.lane.b32.xlu0 %v1534, 96
        %v1542 = vpop.permute.xlu0 %1541
        %v1544 = vsel %vm1301, %v1533, 0
        %v1547 = vsel %vm1301, %v1534, 0
        %v1550 = vsel %vm1301, %v1540, 0
        %v1553 = vsel %vm1301, %v1542, 0
        %1555 = vmatprep.subr.bf16.mxu0 0
        %1556 = vmatpush1.bf16.xpose.msra.mxu0 %v1550
        %1557 = vmatprep.subr.bf16.mxu0 0
        %1558 = vmatpush1.bf16.xpose.msra.mxu0 %v1553
        %1559 = vmatprep.subr.bf16.mxu0 0
        %1560 = vmatpush1.bf16.xpose.msra.mxu0 0
        %1561 = vmatprep.subr.bf16.mxu0 0
        %1562 = vmatpush1.bf16.xpose.msra.mxu0 0
        %1563 = vmatprep.subr.bf16.mxu0 0
        %1564 = vmatpush1.bf16.xpose.msra.mxu0 0
        %1565 = vmatprep.subr.bf16.mxu0 0
        %1566 = vmatpush1.bf16.xpose.msra.mxu0 0
        %1567 = vmatprep.subr.bf16.mxu0 0
        %1568 = vmatpush1.bf16.xpose.msra.mxu0 0
        %1569 = vmatprep.subr.bf16.mxu0 0
        %1570 = vmatpush1.bf16.xpose.msra.mxu0 0
        %1571 = vmatprep.subr.bf16.mxu0 0
        %1572 = vmatpush1.bf16.xpose.msra.mxu0 0
        %1573 = vmatprep.subr.bf16.mxu0 0
        %1574 = vmatpush1.bf16.xpose.msra.mxu0 0
        %1575 = vmatprep.subr.bf16.mxu0 0
        %1576 = vmatpush1.bf16.xpose.msra.mxu0 0
        %1577 = vmatprep.subr.bf16.mxu0 0
        %1578 = vmatpush1.bf16.xpose.msra.mxu0 0
        %1579 = vmatprep.subr.bf16.mxu0 0
        %1580 = vmatpush1.bf16.xpose.msra.mxu0 0
        %1581 = vmatprep.subr.bf16.mxu0 0
        %1582 = vmatpush1.bf16.xpose.msra.mxu0 0
        %1583 = vmatprep.subr.bf16.mxu0 0
        %1584 = vmatpush1.bf16.xpose.msra.mxu0 0
        %1585 = vmatprep.subr.bf16.mxu0 0
        %1586 = vmatpush1.bf16.xpose.msra.mxu0 0
        %1587 = vmatprep.mubr.bf16.mxu0 0
        %1588 = vmatmul.mubr.bf16.gmra.mrb[0].mxu0 %v1544
        %v1589 = vpop.f32.mrb[0].mxu0
        %v1590 = vadd.f32 0.0, %v1589
        %v1591 = vpop.f32.mrb[0].mxu0
        %v1592 = vpop.f32.mrb[0].mxu0
        %v1593 = vadd.f32 0.0, %v1592
        %v1594 = vpop.f32.mrb[0].mxu0
        %1595 = vmatprep.mubr.bf16.mxu0 0
        %1596 = vmatmul.mubr.bf16.gmra.mrb[0].mxu0 %v1547
        %v1597 = vpop.f32.mrb[0].mxu0
        %v1598 = vadd.f32 0.0, %v1597
        %v1599 = vpop.f32.mrb[0].mxu0
        %v1600 = vpop.f32.mrb[0].mxu0
        %v1601 = vadd.f32 0.0, %v1600
        %v1602 = vpop.f32.mrb[0].mxu0
        %1603 = vdwg.mxu0
        %1606 = vrot.lane.b32.xlu0 %v1535, 96
        %v1607 = vpop.permute.xlu0 %1606
        %1608 = vrot.lane.b32.xlu0 %v1536, 96
        %v1609 = vpop.permute.xlu0 %1608
        %v1611 = vsel %vm1301, %v1535, 0
        %v1614 = vsel %vm1301, %v1536, 0
        %v1617 = vsel %vm1301, %v1607, 0
        %v1620 = vsel %vm1301, %v1609, 0
        %1622 = vmatprep.subr.bf16.mxu0 0
        %1623 = vmatpush1.bf16.xpose.msra.mxu0 %v1617
        %1624 = vmatprep.subr.bf16.mxu0 0
        %1625 = vmatpush1.bf16.xpose.msra.mxu0 %v1620
        %1626 = vmatprep.subr.bf16.mxu0 0
        %1627 = vmatpush1.bf16.xpose.msra.mxu0 0
        %1628 = vmatprep.subr.bf16.mxu0 0
        %1629 = vmatpush1.bf16.xpose.msra.mxu0 0
        %1630 = vmatprep.subr.bf16.mxu0 0
        %1631 = vmatpush1.bf16.xpose.msra.mxu0 0
        %1632 = vmatprep.subr.bf16.mxu0 0
        %1633 = vmatpush1.bf16.xpose.msra.mxu0 0
        %1634 = vmatprep.subr.bf16.mxu0 0
        %1635 = vmatpush1.bf16.xpose.msra.mxu0 0
        %1636 = vmatprep.subr.bf16.mxu0 0
        %1637 = vmatpush1.bf16.xpose.msra.mxu0 0
        %1638 = vmatprep.subr.bf16.mxu0 0
        %1639 = vmatpush1.bf16.xpose.msra.mxu0 0
        %1640 = vmatprep.subr.bf16.mxu0 0
        %1641 = vmatpush1.bf16.xpose.msra.mxu0 0
        %1642 = vmatprep.subr.bf16.mxu0 0
        %1643 = vmatpush1.bf16.xpose.msra.mxu0 0
        %1644 = vmatprep.subr.bf16.mxu0 0
        %1645 = vmatpush1.bf16.xpose.msra.mxu0 0
        %1646 = vmatprep.subr.bf16.mxu0 0
        %1647 = vmatpush1.bf16.xpose.msra.mxu0 0
        %1648 = vmatprep.subr.bf16.mxu0 0
        %1649 = vmatpush1.bf16.xpose.msra.mxu0 0
        %1650 = vmatprep.subr.bf16.mxu0 0
        %1651 = vmatpush1.bf16.xpose.msra.mxu0 0
        %1652 = vmatprep.subr.bf16.mxu0 0
        %1653 = vmatpush1.bf16.xpose.msra.mxu0 0
        %1654 = vmatprep.mubr.bf16.mxu0 0
        %1655 = vmatmul.mubr.bf16.gmra.mrb[0].mxu0 %v1611
        %v1656 = vpop.f32.mrb[0].mxu0
        %v1657 = vadd.f32 0.0, %v1656
        %v1658 = vpop.f32.mrb[0].mxu0
        %v1659 = vpop.f32.mrb[0].mxu0
        %v1660 = vadd.f32 0.0, %v1659
        %v1661 = vpop.f32.mrb[0].mxu0
        %1662 = vmatprep.mubr.bf16.mxu0 0
        %1663 = vmatmul.mubr.bf16.gmra.mrb[0].mxu0 %v1614
        %v1664 = vpop.f32.mrb[0].mxu0
        %v1665 = vadd.f32 0.0, %v1664
        %v1666 = vpop.f32.mrb[0].mxu0
        %v1667 = vpop.f32.mrb[0].mxu0
        %v1668 = vadd.f32 0.0, %v1667
        %v1669 = vpop.f32.mrb[0].mxu0
        %1670 = vdwg.mxu0
        %v1671 = vmul.f32 %v1590, 0.25
        %v1672 = vmul.f32 %v1593, 0.25
        %v1673 = vmul.f32 %v1598, 0.25
        %v1674 = vmul.f32 %v1601, 0.25
        %v1675 = vmul.f32 %v1657, 0.25
        %v1676 = vmul.f32 %v1660, 0.25
        %v1677 = vmul.f32 %v1665, 0.25
        %v1678 = vmul.f32 %v1668, 0.25
        %v1679 = vsel %vm751, %v1671, -inf
        %1680 = vmax.xlane.f32.xlu0 %v1679
        %v1681 = vpop.xlane.xlu0 %1680
        %v1682 = vsel %vm751, %v1672, -inf
        %1683 = vmax.xlane.f32.xlu0 %v1682
        %v1684 = vpop.xlane.xlu0 %1683
        %v1685 = vsel %vm751, %v1673, -inf
        %1686 = vmax.xlane.f32.xlu0 %v1685
        %v1687 = vpop.xlane.xlu0 %1686
        %v1688 = vsel %vm751, %v1674, -inf
        %1689 = vmax.xlane.f32.xlu0 %v1688
        %v1690 = vpop.xlane.xlu0 %1689
        %v1691 = vsel %vm751, %v1675, -inf
        %1692 = vmax.xlane.f32.xlu0 %v1691
        %v1693 = vpop.xlane.xlu0 %1692
        %v1694 = vsel %vm751, %v1676, -inf
        %1695 = vmax.xlane.f32.xlu0 %v1694
        %v1696 = vpop.xlane.xlu0 %1695
        %v1697 = vsel %vm751, %v1677, -inf
        %1698 = vmax.xlane.f32.xlu0 %v1697
        %v1699 = vpop.xlane.xlu0 %1698
        %v1700 = vsel %vm751, %v1678, -inf
        %1701 = vmax.xlane.f32.xlu0 %v1700
        %v1702 = vpop.xlane.xlu0 %1701
        %v1703 = vsub.f32 %v1671, %v1681
        %v1704 = vsub.f32 %v1672, %v1684
        %v1705 = vsub.f32 %v1673, %v1687
        %v1706 = vsub.f32 %v1674, %v1690
        %v1707 = vsub.f32 %v1675, %v1693
        %v1708 = vsub.f32 %v1676, %v1696
        %v1709 = vsub.f32 %v1677, %v1699
        %v1710 = vsub.f32 %v1678, %v1702
        %v1711 = vmul.f32 %v1703, 1.442695
        %v1712 = vpow.pop %v1711
        %v1713 = vmul.f32 %v1704, 1.442695
        %v1714 = vpow.pop %v1713
        %v1715 = vmul.f32 %v1705, 1.442695
        %v1716 = vpow.pop %v1715
        %v1717 = vmul.f32 %v1706, 1.442695
        %v1718 = vpow.pop %v1717
        %v1719 = vmul.f32 %v1707, 1.442695
        %v1720 = vpow.pop %v1719
        %v1721 = vmul.f32 %v1708, 1.442695
        %v1722 = vpow.pop %v1721
        %v1723 = vmul.f32 %v1709, 1.442695
        %v1724 = vpow.pop %v1723
        %v1725 = vmul.f32 %v1710, 1.442695
        %v1726 = vpow.pop %v1725
        %v1727 = vsel %vm751, %v1712, 0.0
        %1728 = vadd.xlane.f32.xlu0 %v1727
        %v1729 = vpop.xlane.xlu0 %1728
        %v1730 = vsel %vm751, %v1714, 0.0
        %1731 = vadd.xlane.f32.xlu0 %v1730
        %v1732 = vpop.xlane.xlu0 %1731
        %v1733 = vsel %vm751, %v1716, 0.0
        %1734 = vadd.xlane.f32.xlu0 %v1733
        %v1735 = vpop.xlane.xlu0 %1734
        %v1736 = vsel %vm751, %v1718, 0.0
        %1737 = vadd.xlane.f32.xlu0 %v1736
        %v1738 = vpop.xlane.xlu0 %1737
        %v1739 = vsel %vm751, %v1720, 0.0
        %1740 = vadd.xlane.f32.xlu0 %v1739
        %v1741 = vpop.xlane.xlu0 %1740
        %v1742 = vsel %vm751, %v1722, 0.0
        %1743 = vadd.xlane.f32.xlu0 %v1742
        %v1744 = vpop.xlane.xlu0 %1743
        %v1745 = vsel %vm751, %v1724, 0.0
        %1746 = vadd.xlane.f32.xlu0 %v1745
        %v1747 = vpop.xlane.xlu0 %1746
        %v1748 = vsel %vm751, %v1726, 0.0
        %1749 = vadd.xlane.f32.xlu0 %v1748
        %v1750 = vpop.xlane.xlu0 %1749
        %v1751 = vrcp.pop %v1729
        %v1752 = vrcp.pop %v1732
        %v1753 = vrcp.pop %v1735
        %v1754 = vrcp.pop %v1738
        %v1755 = vrcp.pop %v1741
        %v1756 = vrcp.pop %v1744
        %v1757 = vrcp.pop %v1747
        %v1758 = vrcp.pop %v1750
        %v1759 = vmul.f32 %v1712, %v1751
        %v1760 = vmul.f32 %v1714, %v1752
        %v1761 = vmul.f32 %v1716, %v1753
        %v1762 = vmul.f32 %v1718, %v1754
        %v1763 = vmul.f32 %v1720, %v1755
        %v1764 = vmul.f32 %v1722, %v1756
        %v1765 = vmul.f32 %v1724, %v1757
        %v1766 = vmul.f32 %v1726, %v1758
        %v1767 = vpack.c.bf16 %v1760, %v1759
        %v1768 = vpack.c.bf16 %v1762, %v1761
        %v1769 = vpack.c.bf16 %v1764, %v1763
        %v1770 = vpack.c.bf16 %v1766, %v1765
        %1771 = vrot.lane.b32.xlu0 %v1533, 64
        %v1772 = vpop.permute.xlu0 %1771
        %1773 = vrot.lane.b32.xlu0 %v1534, 64
        %v1774 = vpop.permute.xlu0 %1773
        %v1778 = vsel %vm751, %v1767, 0
        %v1781 = vsel %vm751, %v1768, 0
        %1783 = vmatprep.subr.bf16.mxu0 0
        %1784 = vmatpush1.bf16.msra.mxu0 %v1772
        %1785 = vmatprep.subr.bf16.mxu0 0
        %1786 = vmatpush1.bf16.msra.mxu0 %v1774
        %1787 = vmatprep.subr.bf16.mxu0 0
        %1788 = vmatpush1.bf16.msra.mxu0 0
        %1789 = vmatprep.subr.bf16.mxu0 0
        %1790 = vmatpush1.bf16.msra.mxu0 0
        %1791 = vmatprep.subr.bf16.mxu0 0
        %1792 = vmatpush1.bf16.msra.mxu0 0
        %1793 = vmatprep.subr.bf16.mxu0 0
        %1794 = vmatpush1.bf16.msra.mxu0 0
        %1795 = vmatprep.subr.bf16.mxu0 0
        %1796 = vmatpush1.bf16.msra.mxu0 0
        %1797 = vmatprep.subr.bf16.mxu0 0
        %1798 = vmatpush1.bf16.msra.mxu0 0
        %1799 = vmatprep.subr.bf16.mxu0 0
        %1800 = vmatpush1.bf16.msra.mxu0 0
        %1801 = vmatprep.subr.bf16.mxu0 0
        %1802 = vmatpush1.bf16.msra.mxu0 0
        %1803 = vmatprep.subr.bf16.mxu0 0
        %1804 = vmatpush1.bf16.msra.mxu0 0
        %1805 = vmatprep.subr.bf16.mxu0 0
        %1806 = vmatpush1.bf16.msra.mxu0 0
        %1807 = vmatprep.subr.bf16.mxu0 0
        %1808 = vmatpush1.bf16.msra.mxu0 0
        %1809 = vmatprep.subr.bf16.mxu0 0
        %1810 = vmatpush1.bf16.msra.mxu0 0
        %1811 = vmatprep.subr.bf16.mxu0 0
        %1812 = vmatpush1.bf16.msra.mxu0 0
        %1813 = vmatprep.subr.bf16.mxu0 0
        %1814 = vmatpush1.bf16.msra.mxu0 0
        %1815 = vmatprep.mubr.bf16.mxu0 0
        %1816 = vmatmul.mubr.bf16.gmra.mrb[0].mxu0 %v1778
        %v1817 = vpop.f32.mrb[0].mxu0
        %v1818 = vadd.f32 0.0, %v1817
        %v1819 = vpop.f32.mrb[0].mxu0
        %v1820 = vpop.f32.mrb[0].mxu0
        %v1821 = vadd.f32 0.0, %v1820
        %v1822 = vpop.f32.mrb[0].mxu0
        %1823 = vmatprep.mubr.bf16.mxu0 0
        %1824 = vmatmul.mubr.bf16.gmra.mrb[0].mxu0 %v1781
        %v1825 = vpop.f32.mrb[0].mxu0
        %v1826 = vadd.f32 0.0, %v1825
        %v1827 = vpop.f32.mrb[0].mxu0
        %v1828 = vpop.f32.mrb[0].mxu0
        %v1829 = vadd.f32 0.0, %v1828
        %v1830 = vpop.f32.mrb[0].mxu0
        %1831 = vdwg.mxu0
        %1832 = vrot.lane.b32.xlu0 %v1535, 64
        %v1833 = vpop.permute.xlu0 %1832
        %1834 = vrot.lane.b32.xlu0 %v1536, 64
        %v1835 = vpop.permute.xlu0 %1834
        %v1839 = vsel %vm751, %v1769, 0
        %v1842 = vsel %vm751, %v1770, 0
        %1844 = vmatprep.subr.bf16.mxu0 0
        %1845 = vmatpush1.bf16.msra.mxu0 %v1833
        %1846 = vmatprep.subr.bf16.mxu0 0
        %1847 = vmatpush1.bf16.msra.mxu0 %v1835
        %1848 = vmatprep.subr.bf16.mxu0 0
        %1849 = vmatpush1.bf16.msra.mxu0 0
        %1850 = vmatprep.subr.bf16.mxu0 0
        %1851 = vmatpush1.bf16.msra.mxu0 0
        %1852 = vmatprep.subr.bf16.mxu0 0
        %1853 = vmatpush1.bf16.msra.mxu0 0
        %1854 = vmatprep.subr.bf16.mxu0 0
        %1855 = vmatpush1.bf16.msra.mxu0 0
        %1856 = vmatprep.subr.bf16.mxu0 0
        %1857 = vmatpush1.bf16.msra.mxu0 0
        %1858 = vmatprep.subr.bf16.mxu0 0
        %1859 = vmatpush1.bf16.msra.mxu0 0
        %1860 = vmatprep.subr.bf16.mxu0 0
        %1861 = vmatpush1.bf16.msra.mxu0 0
        %1862 = vmatprep.subr.bf16.mxu0 0
        %1863 = vmatpush1.bf16.msra.mxu0 0
        %1864 = vmatprep.subr.bf16.mxu0 0
        %1865 = vmatpush1.bf16.msra.mxu0 0
        %1866 = vmatprep.subr.bf16.mxu0 0
        %1867 = vmatpush1.bf16.msra.mxu0 0
        %1868 = vmatprep.subr.bf16.mxu0 0
        %1869 = vmatpush1.bf16.msra.mxu0 0
        %1870 = vmatprep.subr.bf16.mxu0 0
        %1871 = vmatpush1.bf16.msra.mxu0 0
        %1872 = vmatprep.subr.bf16.mxu0 0
        %1873 = vmatpush1.bf16.msra.mxu0 0
        %1874 = vmatprep.subr.bf16.mxu0 0
        %1875 = vmatpush1.bf16.msra.mxu0 0
        %1876 = vmatprep.mubr.bf16.mxu0 0
        %1877 = vmatmul.mubr.bf16.gmra.mrb[0].mxu0 %v1839
        %v1878 = vpop.f32.mrb[0].mxu0
        %v1879 = vadd.f32 0.0, %v1878
        %v1880 = vpop.f32.mrb[0].mxu0
        %v1881 = vpop.f32.mrb[0].mxu0
        %v1882 = vadd.f32 0.0, %v1881
        %v1883 = vpop.f32.mrb[0].mxu0
        %1884 = vmatprep.mubr.bf16.mxu0 0
        %1885 = vmatmul.mubr.bf16.gmra.mrb[0].mxu0 %v1842
        %v1886 = vpop.f32.mrb[0].mxu0
        %v1887 = vadd.f32 0.0, %v1886
        %v1888 = vpop.f32.mrb[0].mxu0
        %v1889 = vpop.f32.mrb[0].mxu0
        %v1890 = vadd.f32 0.0, %v1889
        %v1891 = vpop.f32.mrb[0].mxu0
        %1892 = vdwg.mxu0
        %1897 = vrot.lane.b32.xlu0 %v1879, 16
        %v1898 = vpop.permute.xlu0 %1897
        %1899 = vrot.lane.b32.xlu0 %v1882, 16
        %v1900 = vpop.permute.xlu0 %1899
        %1901 = vrot.lane.b32.xlu0 %v1887, 16
        %v1902 = vpop.permute.xlu0 %1901
        %1903 = vrot.lane.b32.xlu0 %v1890, 16
        %v1904 = vpop.permute.xlu0 %1903
        %v1909 = vsel %vm1301, %v1818, %v1898
        %v1910 = vsel %vm1301, %v1821, %v1900
        %v1911 = vsel %vm1301, %v1826, %v1902
        %v1912 = vsel %vm1301, %v1829, %v1904
        %v1913 = vld [vmem:[%s14] sm:$0xf]
        %v1914 = vld [vmem:[%s14 + $0x4] sm:$0xf]
        %v1915 = vld [vmem:[%s14 + $0x8] sm:$0xf]
        %v1916 = vld [vmem:[%s14 + $0xc] sm:$0xf]
        %v1917 = vpack.c.bf16 %v1910, %v1909
        %v1918 = vpack.c.bf16 %v1912, %v1911
        %v1919 = vld [vmem:[%s15] sm:$0x1]
        %v1921 = vlaneseq
        %v1922 = vshrl.u32 %v1921, 7
        %v1923 = vsub.s32 0, %v1922
        %v1924 = vrot.slane %v1919, %v1923
        %v1930 = vunpack.c.l.b16 %v1913
        %v1931 = vunpack.c.l.b16 %v1914
        %v1932 = vunpack.c.l.b16 %v1915
        %v1933 = vunpack.c.l.b16 %v1916
        %v1934 = vpack.c.b16 %v1931, %v1930
        %v1935 = vpack.c.b16 %v1933, %v1932
        %v1939 = vsel %vm751, %v1917, 0
        %v1942 = vsel %vm751, %v1918, 0
        %1944 = vmatprep.subr.bf16.mxu0 0
        %1945 = vmatpush1.bf16.msra.mxu0 %v1934
        %1946 = vmatprep.subr.bf16.mxu0 0
        %1947 = vmatpush1.bf16.msra.mxu0 %v1935
        %1948 = vmatprep.subr.bf16.mxu0 0
        %1949 = vmatpush1.bf16.msra.mxu0 0
        %1950 = vmatprep.subr.bf16.mxu0 0
        %1951 = vmatpush1.bf16.msra.mxu0 0
        %1952 = vmatprep.subr.bf16.mxu0 0
        %1953 = vmatpush1.bf16.msra.mxu0 0
        %1954 = vmatprep.subr.bf16.mxu0 0
        %1955 = vmatpush1.bf16.msra.mxu0 0
        %1956 = vmatprep.subr.bf16.mxu0 0
        %1957 = vmatpush1.bf16.msra.mxu0 0
        %1958 = vmatprep.subr.bf16.mxu0 0
        %1959 = vmatpush1.bf16.msra.mxu0 0
        %1960 = vmatprep.subr.bf16.mxu0 0
        %1961 = vmatpush1.bf16.msra.mxu0 0
        %1962 = vmatprep.subr.bf16.mxu0 0
        %1963 = vmatpush1.bf16.msra.mxu0 0
        %1964 = vmatprep.subr.bf16.mxu0 0
        %1965 = vmatpush1.bf16.msra.mxu0 0
        %1966 = vmatprep.subr.bf16.mxu0 0
        %1967 = vmatpush1.bf16.msra.mxu0 0
        %1968 = vmatprep.subr.bf16.mxu0 0
        %1969 = vmatpush1.bf16.msra.mxu0 0
        %1970 = vmatprep.subr.bf16.mxu0 0
        %1971 = vmatpush1.bf16.msra.mxu0 0
        %1972 = vmatprep.subr.bf16.mxu0 0
        %1973 = vmatpush1.bf16.msra.mxu0 0
        %1974 = vmatprep.subr.bf16.mxu0 0
        %1975 = vmatpush1.bf16.msra.mxu0 0
        %1976 = vmatprep.mubr.bf16.mxu0 0
        %1977 = vmatmul.mubr.bf16.gmra.mrb[0].mxu0 %v1939
        %v1978 = vpop.f32.mrb[0].mxu0
        %v1979 = vadd.f32 %v1924, %v1978
        %v1980 = vpop.f32.mrb[0].mxu0
        %v1981 = vpop.f32.mrb[0].mxu0
        %v1982 = vadd.f32 %v1924, %v1981
        %v1983 = vpop.f32.mrb[0].mxu0
        %1984 = vmatprep.mubr.bf16.mxu0 0
        %1985 = vmatmul.mubr.bf16.gmra.mrb[0].mxu0 %v1942
        %v1986 = vpop.f32.mrb[0].mxu0
        %v1987 = vadd.f32 %v1924, %v1986
        %v1988 = vpop.f32.mrb[0].mxu0
        %v1989 = vpop.f32.mrb[0].mxu0
        %v1990 = vadd.f32 %v1924, %v1989
        %v1991 = vpop.f32.mrb[0].mxu0
        %1992 = vdwg.mxu0
        %v1993 = vadd.f32 %v1423, %v1979
        %v1994 = vadd.f32 %v1426, %v1982
        %v1995 = vadd.f32 %v1431, %v1987
        %v1996 = vadd.f32 %v1434, %v1990
        %v1997 = vld [vmem:[%s16] sm:$0x1]
        %v1998 = vld [vmem:[%s17] sm:$0x1]
        %v1999 = vsel %vm751, %v1993, 0.0
        %2000 = vadd.xlane.f32.xlu0 %v1999
        %v2001 = vpop.xlane.xlu0 %2000
        %v2002 = vsel %vm751, %v1994, 0.0
        %2003 = vadd.xlane.f32.xlu0 %v2002
        %v2004 = vpop.xlane.xlu0 %2003
        %v2005 = vsel %vm751, %v1995, 0.0
        %2006 = vadd.xlane.f32.xlu0 %v2005
        %v2007 = vpop.xlane.xlu0 %2006
        %v2008 = vsel %vm751, %v1996, 0.0
        %2009 = vadd.xlane.f32.xlu0 %v2008
        %v2010 = vpop.xlane.xlu0 %2009
        %v2011 = vrcp.pop 32.0
        %v2012 = vmul.f32 %v2001, %v2011
        %v2013 = vmul.f32 %v2004, %v2011
        %v2014 = vmul.f32 %v2007, %v2011
        %v2015 = vmul.f32 %v2010, %v2011
        %v2016 = vsub.f32 %v1993, %v2012
        %v2017 = vsub.f32 %v1994, %v2013
        %v2018 = vsub.f32 %v1995, %v2014
        %v2019 = vsub.f32 %v1996, %v2015
        %v2020 = vmul.f32 %v2016, %v2016
        %v2021 = vmul.f32 %v2017, %v2017
        %v2022 = vmul.f32 %v2018, %v2018
        %v2023 = vmul.f32 %v2019, %v2019
        %v2024 = vsel %vm751, %v2020, 0.0
        %2025 = vadd.xlane.f32.xlu0 %v2024
        %v2026 = vpop.xlane.xlu0 %2025
        %v2027 = vsel %vm751, %v2021, 0.0
        %2028 = vadd.xlane.f32.xlu0 %v2027
        %v2029 = vpop.xlane.xlu0 %2028
        %v2030 = vsel %vm751, %v2022, 0.0
        %2031 = vadd.xlane.f32.xlu0 %v2030
        %v2032 = vpop.xlane.xlu0 %2031
        %v2033 = vsel %vm751, %v2023, 0.0
        %2034 = vadd.xlane.f32.xlu0 %v2033
        %v2035 = vpop.xlane.xlu0 %2034
        %v2036 = vmul.f32 %v2026, %v2011
        %v2037 = vmul.f32 %v2029, %v2011
        %v2038 = vmul.f32 %v2032, %v2011
        %v2039 = vmul.f32 %v2035, %v2011
        %v2040 = vadd.f32 %v2036, 1e-05
        %v2041 = vadd.f32 %v2037, 1e-05
        %v2042 = vadd.f32 %v2038, 1e-05
        %v2043 = vadd.f32 %v2039, 1e-05
        %v2044 = vrsqrt.pop %v2040
        %v2045 = vrsqrt.pop %v2041
        %v2046 = vrsqrt.pop %v2042
        %v2047 = vrsqrt.pop %v2043
        %v2048 = vmul.f32 %v2016, %v2044
        %v2049 = vmul.f32 %v2017, %v2045
        %v2050 = vmul.f32 %v2018, %v2046
        %v2051 = vmul.f32 %v2019, %v2047
        %v2053 = vlaneseq
        %v2054 = vshrl.u32 %v2053, 7
        %v2055 = vsub.s32 0, %v2054
        %v2056 = vrot.slane %v1997, %v2055
        %v2058 = vmul.f32 %v2048, %v2056
        %v2059 = vmul.f32 %v2049, %v2056
        %v2060 = vmul.f32 %v2050, %v2056
        %v2061 = vmul.f32 %v2051, %v2056
        %v2063 = vlaneseq
        %v2064 = vshrl.u32 %v2063, 7
        %v2065 = vsub.s32 0, %v2064
        %v2066 = vrot.slane %v1998, %v2065
        %v2068 = vadd.f32 %v2058, %v2066
        %v2069 = vadd.f32 %v2059, %v2066
        %v2070 = vadd.f32 %v2060, %v2066
        %v2071 = vadd.f32 %v2061, %v2066
        %v2072 = vld [vmem:[%s18] sm:$0xf]
        %v2073 = vld [vmem:[%s18 + $0x4] sm:$0xf]
        %v2074 = vld [vmem:[%s18 + $0x8] sm:$0xf]
        %v2075 = vld [vmem:[%s18 + $0xc] sm:$0xf]
        %v2076 = vpack.c.bf16 %v2069, %v2068
        %v2077 = vpack.c.bf16 %v2071, %v2070
        %v2078 = vld [vmem:[%s19] sm:$0x1]
        %v2080 = vlaneseq
        %v2081 = vshrl.u32 %v2080, 7
        %v2082 = vsub.s32 0, %v2081
        %v2083 = vrot.slane %v2078, %v2082
        %v2089 = vunpack.c.l.b16 %v2072
        %v2090 = vunpack.c.l.b16 %v2073
        %v2091 = vunpack.c.l.b16 %v2074
        %v2092 = vunpack.c.l.b16 %v2075
        %v2093 = vpack.c.b16 %v2090, %v2089
        %v2094 = vpack.c.b16 %v2092, %v2091
        %v2098 = vsel %vm751, %v2076, 0
        %v2101 = vsel %vm751, %v2077, 0
        %2103 = vmatprep.subr.bf16.mxu0 0
        %2104 = vmatpush1.bf16.msra.mxu0 %v2093
        %2105 = vmatprep.subr.bf16.mxu0 0
        %2106 = vmatpush1.bf16.msra.mxu0 %v2094
        %2107 = vmatprep.subr.bf16.mxu0 0
        %2108 = vmatpush1.bf16.msra.mxu0 0
        %2109 = vmatprep.subr.bf16.mxu0 0
        %2110 = vmatpush1.bf16.msra.mxu0 0
        %2111 = vmatprep.subr.bf16.mxu0 0
        %2112 = vmatpush1.bf16.msra.mxu0 0
        %2113 = vmatprep.subr.bf16.mxu0 0
        %2114 = vmatpush1.bf16.msra.mxu0 0
        %2115 = vmatprep.subr.bf16.mxu0 0
        %2116 = vmatpush1.bf16.msra.mxu0 0
        %2117 = vmatprep.subr.bf16.mxu0 0
        %2118 = vmatpush1.bf16.msra.mxu0 0
        %2119 = vmatprep.subr.bf16.mxu0 0
        %2120 = vmatpush1.bf16.msra.mxu0 0
        %2121 = vmatprep.subr.bf16.mxu0 0
        %2122 = vmatpush1.bf16.msra.mxu0 0
        %2123 = vmatprep.subr.bf16.mxu0 0
        %2124 = vmatpush1.bf16.msra.mxu0 0
        %2125 = vmatprep.subr.bf16.mxu0 0
        %2126 = vmatpush1.bf16.msra.mxu0 0
        %2127 = vmatprep.subr.bf16.mxu0 0
        %2128 = vmatpush1.bf16.msra.mxu0 0
        %2129 = vmatprep.subr.bf16.mxu0 0
        %2130 = vmatpush1.bf16.msra.mxu0 0
        %2131 = vmatprep.subr.bf16.mxu0 0
        %2132 = vmatpush1.bf16.msra.mxu0 0
        %2133 = vmatprep.subr.bf16.mxu0 0
        %2134 = vmatpush1.bf16.msra.mxu0 0
        %2135 = vmatprep.mubr.bf16.mxu0 0
        %2136 = vmatmul.mubr.bf16.gmra.mrb[0].mxu0 %v2098
        %v2137 = vpop.f32.mrb[0].mxu0
        %v2138 = vadd.f32 %v2083, %v2137
        %v2139 = vpop.f32.mrb[0].mxu0
        %v2140 = vpop.f32.mrb[0].mxu0
        %v2141 = vadd.f32 %v2083, %v2140
        %v2142 = vpop.f32.mrb[0].mxu0
        %2143 = vmatprep.mubr.bf16.mxu0 0
        %2144 = vmatmul.mubr.bf16.gmra.mrb[0].mxu0 %v2101
        %v2145 = vpop.f32.mrb[0].mxu0
        %v2146 = vadd.f32 %v2083, %v2145
        %v2147 = vpop.f32.mrb[0].mxu0
        %v2148 = vpop.f32.mrb[0].mxu0
        %v2149 = vadd.f32 %v2083, %v2148
        %v2150 = vpop.f32.mrb[0].mxu0
        %2151 = vdwg.mxu0
        %v2152 = vmul.f32 %v2138, 0.5
        %v2153 = vmul.f32 %v2141, 0.5
        %v2154 = vmul.f32 %v2146, 0.5
        %v2155 = vmul.f32 %v2149, 0.5
        %v2156 = vmul.f32 %v2138, 0.70710677
        %v2157 = vmul.f32 %v2141, 0.70710677
        %v2158 = vmul.f32 %v2146, 0.70710677
        %v2159 = vmul.f32 %v2149, 0.70710677
        %vm2160 = vcmp.ge.f32.partialorder %v2156, 0.0
        %vm2161 = vcmp.ge.f32.partialorder %v2157, 0.0
        %vm2162 = vcmp.ge.f32.partialorder %v2158, 0.0
        %vm2163 = vcmp.ge.f32.partialorder %v2159, 0.0
        %v2164 = vsel %vm2160, 1.0, -1.0
        %v2165 = vsel %vm2161, 1.0, -1.0
        %v2166 = vsel %vm2162, 1.0, -1.0
        %v2167 = vsel %vm2163, 1.0, -1.0
        %v2168 = vand.u32 2147483647, %v2156
        %v2169 = vand.u32 2147483647, %v2157
        %v2170 = vand.u32 2147483647, %v2158
        %v2171 = vand.u32 2147483647, %v2159
        %v2172 = vmul.f32 %v2168, 0.3275911
        %v2173 = vmul.f32 %v2169, 0.3275911
        %v2174 = vmul.f32 %v2170, 0.3275911
        %v2175 = vmul.f32 %v2171, 0.3275911
        %v2176 = vadd.f32 %v2172, 1.0
        %v2177 = vadd.f32 %v2173, 1.0
        %v2178 = vadd.f32 %v2174, 1.0
        %v2179 = vadd.f32 %v2175, 1.0
        %v2180 = vrcp.pop %v2176
        %v2181 = vmul.f32 1.0, %v2180
        %v2182 = vrcp.pop %v2177
        %v2183 = vmul.f32 1.0, %v2182
        %v2184 = vrcp.pop %v2178
        %v2185 = vmul.f32 1.0, %v2184
        %v2186 = vrcp.pop %v2179
        %v2187 = vmul.f32 1.0, %v2186
        %v2188 = vmul.f32 %v2181, 1.0614054
        %v2189 = vmul.f32 %v2183, 1.0614054
        %v2190 = vmul.f32 %v2185, 1.0614054
        %v2191 = vmul.f32 %v2187, 1.0614054
        %v2192 = vadd.f32 %v2188, -1.4531521
        %v2193 = vadd.f32 %v2189, -1.4531521
        %v2194 = vadd.f32 %v2190, -1.4531521
        %v2195 = vadd.f32 %v2191, -1.4531521
        %v2196 = vmul.f32 %v2192, %v2181
        %v2197 = vmul.f32 %v2193, %v2183
        %v2198 = vmul.f32 %v2194, %v2185
        %v2199 = vmul.f32 %v2195, %v2187
        %v2200 = vadd.f32 %v2196, 1.4214138
        %v2201 = vadd.f32 %v2197, 1.4214138
        %v2202 = vadd.f32 %v2198, 1.4214138
        %v2203 = vadd.f32 %v2199, 1.4214138
        %v2204 = vmul.f32 %v2200, %v2181
        %v2205 = vmul.f32 %v2201, %v2183
        %v2206 = vmul.f32 %v2202, %v2185
        %v2207 = vmul.f32 %v2203, %v2187
        %v2208 = vadd.f32 %v2204, -0.28449672
        %v2209 = vadd.f32 %v2205, -0.28449672
        %v2210 = vadd.f32 %v2206, -0.28449672
        %v2211 = vadd.f32 %v2207, -0.28449672
        %v2212 = vmul.f32 %v2208, %v2181
        %v2213 = vmul.f32 %v2209, %v2183
        %v2214 = vmul.f32 %v2210, %v2185
        %v2215 = vmul.f32 %v2211, %v2187
        %v2216 = vadd.f32 %v2212, 0.2548296
        %v2217 = vadd.f32 %v2213, 0.2548296
        %v2218 = vadd.f32 %v2214, 0.2548296
        %v2219 = vadd.f32 %v2215, 0.2548296
        %v2220 = vmul.f32 %v2216, %v2181
        %v2221 = vmul.f32 %v2217, %v2183
        %v2222 = vmul.f32 %v2218, %v2185
        %v2223 = vmul.f32 %v2219, %v2187
        %v2224 = vsub.f32 0.0, %v2168
        %v2225 = vsub.f32 0.0, %v2169
        %v2226 = vsub.f32 0.0, %v2170
        %v2227 = vsub.f32 0.0, %v2171
        %v2228 = vmul.f32 %v2224, %v2168
        %v2229 = vmul.f32 %v2225, %v2169
        %v2230 = vmul.f32 %v2226, %v2170
        %v2231 = vmul.f32 %v2227, %v2171
        %v2232 = vmul.f32 %v2228, 1.442695
        %v2233 = vpow.pop %v2232
        %v2234 = vmul.f32 %v2229, 1.442695
        %v2235 = vpow.pop %v2234
        %v2236 = vmul.f32 %v2230, 1.442695
        %v2237 = vpow.pop %v2236
        %v2238 = vmul.f32 %v2231, 1.442695
        %v2239 = vpow.pop %v2238
        %v2240 = vmul.f32 %v2220, %v2233
        %v2241 = vmul.f32 %v2221, %v2235
        %v2242 = vmul.f32 %v2222, %v2237
        %v2243 = vmul.f32 %v2223, %v2239
        %v2244 = vsub.f32 1.0, %v2240
        %v2245 = vsub.f32 1.0, %v2241
        %v2246 = vsub.f32 1.0, %v2242
        %v2247 = vsub.f32 1.0, %v2243
        %v2248 = vmul.f32 %v2164, %v2244
        %v2249 = vmul.f32 %v2165, %v2245
        %v2250 = vmul.f32 %v2166, %v2246
        %v2251 = vmul.f32 %v2167, %v2247
        %v2252 = vadd.f32 %v2248, 1.0
        %v2253 = vadd.f32 %v2249, 1.0
        %v2254 = vadd.f32 %v2250, 1.0
        %v2255 = vadd.f32 %v2251, 1.0
        %v2256 = vmul.f32 %v2152, %v2252
        %v2257 = vmul.f32 %v2153, %v2253
        %v2258 = vmul.f32 %v2154, %v2254
        %v2259 = vmul.f32 %v2155, %v2255
        %v2260 = vld [vmem:[%s20] sm:$0xf]
        %v2261 = vld [vmem:[%s20 + $0x4] sm:$0xf]
        %v2262 = vld [vmem:[%s20 + $0x8] sm:$0xf]
        %v2263 = vld [vmem:[%s20 + $0xc] sm:$0xf]
        %v2264 = vld [vmem:[%s20 + $0x10] sm:$0xf]
        %v2265 = vld [vmem:[%s20 + $0x14] sm:$0xf]
        %v2266 = vld [vmem:[%s20 + $0x18] sm:$0xf]
        %v2267 = vld [vmem:[%s20 + $0x1c] sm:$0xf]
        %v2268 = vpack.c.bf16 %v2257, %v2256
        %v2269 = vpack.c.bf16 %v2259, %v2258
        %v2270 = vld [vmem:[%s21] sm:$0x1]
        %v2272 = vlaneseq
        %v2273 = vshrl.u32 %v2272, 7
        %v2274 = vsub.s32 0, %v2273
        %v2275 = vrot.slane %v2270, %v2274
        %v2285 = vunpack.c.l.b16 %v2260
        %v2286 = vunpack.c.l.b16 %v2261
        %v2287 = vunpack.c.l.b16 %v2262
        %v2288 = vunpack.c.l.b16 %v2263
        %v2289 = vunpack.c.l.b16 %v2264
        %v2290 = vunpack.c.l.b16 %v2265
        %v2291 = vunpack.c.l.b16 %v2266
        %v2292 = vunpack.c.l.b16 %v2267
        %v2293 = vpack.c.b16 %v2286, %v2285
        %v2294 = vpack.c.b16 %v2288, %v2287
        %v2295 = vpack.c.b16 %v2290, %v2289
        %v2296 = vpack.c.b16 %v2292, %v2291
        %v2302 = vsel %vm753, %v2268, 0
        %v2305 = vsel %vm753, %v2269, 0
        %2307 = vmatprep.subr.bf16.mxu0 0
        %2308 = vmatpush1.bf16.msra.mxu0 %v2293
        %2309 = vmatprep.subr.bf16.mxu0 0
        %2310 = vmatpush1.bf16.msra.mxu0 %v2294
        %2311 = vmatprep.subr.bf16.mxu0 0
        %2312 = vmatpush1.bf16.msra.mxu0 %v2295
        %2313 = vmatprep.subr.bf16.mxu0 0
        %2314 = vmatpush1.bf16.msra.mxu0 %v2296
        %2315 = vmatprep.subr.bf16.mxu0 0
        %2316 = vmatpush1.bf16.msra.mxu0 0
        %2317 = vmatprep.subr.bf16.mxu0 0
        %2318 = vmatpush1.bf16.msra.mxu0 0
        %2319 = vmatprep.subr.bf16.mxu0 0
        %2320 = vmatpush1.bf16.msra.mxu0 0
        %2321 = vmatprep.subr.bf16.mxu0 0
        %2322 = vmatpush1.bf16.msra.mxu0 0
        %2323 = vmatprep.subr.bf16.mxu0 0
        %2324 = vmatpush1.bf16.msra.mxu0 0
        %2325 = vmatprep.subr.bf16.mxu0 0
        %2326 = vmatpush1.bf16.msra.mxu0 0
        %2327 = vmatprep.subr.bf16.mxu0 0
        %2328 = vmatpush1.bf16.msra.mxu0 0
        %2329 = vmatprep.subr.bf16.mxu0 0
        %2330 = vmatpush1.bf16.msra.mxu0 0
        %2331 = vmatprep.subr.bf16.mxu0 0
        %2332 = vmatpush1.bf16.msra.mxu0 0
        %2333 = vmatprep.subr.bf16.mxu0 0
        %2334 = vmatpush1.bf16.msra.mxu0 0
        %2335 = vmatprep.subr.bf16.mxu0 0
        %2336 = vmatpush1.bf16.msra.mxu0 0
        %2337 = vmatprep.subr.bf16.mxu0 0
        %2338 = vmatpush1.bf16.msra.mxu0 0
        %2339 = vmatprep.mubr.bf16.mxu0 0
        %2340 = vmatmul.mubr.bf16.gmra.mrb[0].mxu0 %v2302
        %v2341 = vpop.f32.mrb[0].mxu0
        %v2342 = vadd.f32 %v2275, %v2341
        %v2343 = vpop.f32.mrb[0].mxu0
        %v2344 = vpop.f32.mrb[0].mxu0
        %v2345 = vadd.f32 %v2275, %v2344
        %v2346 = vpop.f32.mrb[0].mxu0
        %2347 = vmatprep.mubr.bf16.mxu0 0
        %2348 = vmatmul.mubr.bf16.gmra.mrb[0].mxu0 %v2305
        %v2349 = vpop.f32.mrb[0].mxu0
        %v2350 = vadd.f32 %v2275, %v2349
        %v2351 = vpop.f32.mrb[0].mxu0
        %v2352 = vpop.f32.mrb[0].mxu0
        %v2353 = vadd.f32 %v2275, %v2352
        %v2354 = vpop.f32.mrb[0].mxu0
        %2355 = vdwg.mxu0
        %v2356 = vadd.f32 %v2068, %v2342
        %v2357 = vadd.f32 %v2069, %v2345
        %v2358 = vadd.f32 %v2070, %v2350
        %v2359 = vadd.f32 %v2071, %v2353
        %v2360 = vld [vmem:[%s22] sm:$0x1]
        %v2361 = vld [vmem:[%s23] sm:$0x1]
        %v2362 = vsel %vm751, %v2356, 0.0
        %2363 = vadd.xlane.f32.xlu0 %v2362
        %v2364 = vpop.xlane.xlu0 %2363
        %v2365 = vsel %vm751, %v2357, 0.0
        %2366 = vadd.xlane.f32.xlu0 %v2365
        %v2367 = vpop.xlane.xlu0 %2366
        %v2368 = vsel %vm751, %v2358, 0.0
        %2369 = vadd.xlane.f32.xlu0 %v2368
        %v2370 = vpop.xlane.xlu0 %2369
        %v2371 = vsel %vm751, %v2359, 0.0
        %2372 = vadd.xlane.f32.xlu0 %v2371
        %v2373 = vpop.xlane.xlu0 %2372
        %v2374 = vmul.f32 %v2364, %v2011
        %v2375 = vmul.f32 %v2367, %v2011
        %v2376 = vmul.f32 %v2370, %v2011
        %v2377 = vmul.f32 %v2373, %v2011
        %v2378 = vsub.f32 %v2356, %v2374
        %v2379 = vsub.f32 %v2357, %v2375
        %v2380 = vsub.f32 %v2358, %v2376
        %v2381 = vsub.f32 %v2359, %v2377
        %v2382 = vmul.f32 %v2378, %v2378
        %v2383 = vmul.f32 %v2379, %v2379
        %v2384 = vmul.f32 %v2380, %v2380
        %v2385 = vmul.f32 %v2381, %v2381
        %v2386 = vsel %vm751, %v2382, 0.0
        %2387 = vadd.xlane.f32.xlu0 %v2386
        %v2388 = vpop.xlane.xlu0 %2387
        %v2389 = vsel %vm751, %v2383, 0.0
        %2390 = vadd.xlane.f32.xlu0 %v2389
        %v2391 = vpop.xlane.xlu0 %2390
        %v2392 = vsel %vm751, %v2384, 0.0
        %2393 = vadd.xlane.f32.xlu0 %v2392
        %v2394 = vpop.xlane.xlu0 %2393
        %v2395 = vsel %vm751, %v2385, 0.0
        %2396 = vadd.xlane.f32.xlu0 %v2395
        %v2397 = vpop.xlane.xlu0 %2396
        %v2398 = vmul.f32 %v2388, %v2011
        %v2399 = vmul.f32 %v2391, %v2011
        %v2400 = vmul.f32 %v2394, %v2011
        %v2401 = vmul.f32 %v2397, %v2011
        %v2402 = vadd.f32 %v2398, 1e-05
        %v2403 = vadd.f32 %v2399, 1e-05
        %v2404 = vadd.f32 %v2400, 1e-05
        %v2405 = vadd.f32 %v2401, 1e-05
        %v2406 = vrsqrt.pop %v2402
        %v2407 = vrsqrt.pop %v2403
        %v2408 = vrsqrt.pop %v2404
        %v2409 = vrsqrt.pop %v2405
        %v2410 = vmul.f32 %v2378, %v2406
        %v2411 = vmul.f32 %v2379, %v2407
        %v2412 = vmul.f32 %v2380, %v2408
        %v2413 = vmul.f32 %v2381, %v2409
        %v2415 = vlaneseq
        %v2416 = vshrl.u32 %v2415, 7
        %v2417 = vsub.s32 0, %v2416
        %v2418 = vrot.slane %v2360, %v2417
        %v2420 = vmul.f32 %v2410, %v2418
        %v2421 = vmul.f32 %v2411, %v2418
        %v2422 = vmul.f32 %v2412, %v2418
        %v2423 = vmul.f32 %v2413, %v2418
        %v2425 = vlaneseq
        %v2426 = vshrl.u32 %v2425, 7
        %v2427 = vsub.s32 0, %v2426
        %v2428 = vrot.slane %v2361, %v2427
        %v2430 = vadd.f32 %v2420, %v2428
        %v2431 = vadd.f32 %v2421, %v2428
        %v2432 = vadd.f32 %v2422, %v2428
        %v2433 = vadd.f32 %v2423, %v2428
        %s2434 = scalar_lea.vmem %s12, 16
        %v2435 = vld [vmem:[%s2434] sm:$0xf]
        %v2436 = vld [vmem:[%s2434 + $0x4] sm:$0xf]
        %v2437 = vld [vmem:[%s2434 + $0x8] sm:$0xf]
        %v2438 = vld [vmem:[%s2434 + $0xc] sm:$0xf]
        %v2439 = vpack.c.bf16 %v2431, %v2430
        %v2440 = vpack.c.bf16 %v2433, %v2432
        %s2441 = scalar_lea.vmem %s13, 1
        %v2442 = vld [vmem:[%s2441] sm:$0x1]
        %v2444 = vlaneseq
        %v2445 = vshrl.u32 %v2444, 7
        %v2446 = vsub.s32 0, %v2445
        %v2447 = vrot.slane %v2442, %v2446
        %v2453 = vunpack.c.l.b16 %v2435
        %v2454 = vunpack.c.l.b16 %v2436
        %v2455 = vunpack.c.l.b16 %v2437
        %v2456 = vunpack.c.l.b16 %v2438
        %v2457 = vpack.c.b16 %v2454, %v2453
        %v2458 = vpack.c.b16 %v2456, %v2455
        %v2462 = vsel %vm751, %v2439, 0
        %v2465 = vsel %vm751, %v2440, 0
        %2467 = vmatprep.subr.bf16.mxu0 0
        %2468 = vmatpush1.bf16.msra.mxu0 %v2457
        %2469 = vmatprep.subr.bf16.mxu0 0
        %2470 = vmatpush1.bf16.msra.mxu0 %v2458
        %2471 = vmatprep.subr.bf16.mxu0 0
        %2472 = vmatpush1.bf16.msra.mxu0 0
        %2473 = vmatprep.subr.bf16.mxu0 0
        %2474 = vmatpush1.bf16.msra.mxu0 0
        %2475 = vmatprep.subr.bf16.mxu0 0
        %2476 = vmatpush1.bf16.msra.mxu0 0
        %2477 = vmatprep.subr.bf16.mxu0 0
        %2478 = vmatpush1.bf16.msra.mxu0 0
        %2479 = vmatprep.subr.bf16.mxu0 0
        %2480 = vmatpush1.bf16.msra.mxu0 0
        %2481 = vmatprep.subr.bf16.mxu0 0
        %2482 = vmatpush1.bf16.msra.mxu0 0
        %2483 = vmatprep.subr.bf16.mxu0 0
        %2484 = vmatpush1.bf16.msra.mxu0 0
        %2485 = vmatprep.subr.bf16.mxu0 0
        %2486 = vmatpush1.bf16.msra.mxu0 0
        %2487 = vmatprep.subr.bf16.mxu0 0
        %2488 = vmatpush1.bf16.msra.mxu0 0
        %2489 = vmatprep.subr.bf16.mxu0 0
        %2490 = vmatpush1.bf16.msra.mxu0 0
        %2491 = vmatprep.subr.bf16.mxu0 0
        %2492 = vmatpush1.bf16.msra.mxu0 0
        %2493 = vmatprep.subr.bf16.mxu0 0
        %2494 = vmatpush1.bf16.msra.mxu0 0
        %2495 = vmatprep.subr.bf16.mxu0 0
        %2496 = vmatpush1.bf16.msra.mxu0 0
        %2497 = vmatprep.subr.bf16.mxu0 0
        %2498 = vmatpush1.bf16.msra.mxu0 0
        %2499 = vmatprep.mubr.bf16.mxu0 0
        %2500 = vmatmul.mubr.bf16.gmra.mrb[0].mxu0 %v2462
        %v2501 = vpop.f32.mrb[0].mxu0
        %v2502 = vadd.f32 %v2447, %v2501
        %v2503 = vpop.f32.mrb[0].mxu0
        %v2504 = vpop.f32.mrb[0].mxu0
        %v2505 = vadd.f32 %v2447, %v2504
        %v2506 = vpop.f32.mrb[0].mxu0
        %2507 = vmatprep.mubr.bf16.mxu0 0
        %2508 = vmatmul.mubr.bf16.gmra.mrb[0].mxu0 %v2465
        %v2509 = vpop.f32.mrb[0].mxu0
        %v2510 = vadd.f32 %v2447, %v2509
        %v2511 = vpop.f32.mrb[0].mxu0
        %v2512 = vpop.f32.mrb[0].mxu0
        %v2513 = vadd.f32 %v2447, %v2512
        %v2514 = vpop.f32.mrb[0].mxu0
        %2515 = vdwg.mxu0
        %2520 = vrot.lane.b32.xlu0 %v2502, 112
        %v2521 = vpop.permute.xlu0 %2520
        %2522 = vrot.lane.b32.xlu0 %v2505, 112
        %v2523 = vpop.permute.xlu0 %2522
        %2524 = vrot.lane.b32.xlu0 %v2510, 112
        %v2525 = vpop.permute.xlu0 %2524
        %2526 = vrot.lane.b32.xlu0 %v2513, 112
        %v2527 = vpop.permute.xlu0 %2526
        %v2532 = vpack.c.bf16 %v2505, %v2502
        %v2533 = vpack.c.bf16 %v2513, %v2510
        %v2534 = vpack.c.bf16 %v2523, %v2521
        %v2535 = vpack.c.bf16 %v2527, %v2525
        %2538 = vrot.lane.b32.xlu0 %v2532, 96
        %v2539 = vpop.permute.xlu0 %2538
        %2540 = vrot.lane.b32.xlu0 %v2533, 96
        %v2541 = vpop.permute.xlu0 %2540
        %v2543 = vsel %vm1301, %v2532, 0
        %v2546 = vsel %vm1301, %v2533, 0
        %v2549 = vsel %vm1301, %v2539, 0
        %v2552 = vsel %vm1301, %v2541, 0
        %2554 = vmatprep.subr.bf16.mxu0 0
        %2555 = vmatpush1.bf16.xpose.msra.mxu0 %v2549
        %2556 = vmatprep.subr.bf16.mxu0 0
        %2557 = vmatpush1.bf16.xpose.msra.mxu0 %v2552
        %2558 = vmatprep.subr.bf16.mxu0 0
        %2559 = vmatpush1.bf16.xpose.msra.mxu0 0
        %2560 = vmatprep.subr.bf16.mxu0 0
        %2561 = vmatpush1.bf16.xpose.msra.mxu0 0
        %2562 = vmatprep.subr.bf16.mxu0 0
        %2563 = vmatpush1.bf16.xpose.msra.mxu0 0
        %2564 = vmatprep.subr.bf16.mxu0 0
        %2565 = vmatpush1.bf16.xpose.msra.mxu0 0
        %2566 = vmatprep.subr.bf16.mxu0 0
        %2567 = vmatpush1.bf16.xpose.msra.mxu0 0
        %2568 = vmatprep.subr.bf16.mxu0 0
        %2569 = vmatpush1.bf16.xpose.msra.mxu0 0
        %2570 = vmatprep.subr.bf16.mxu0 0
        %2571 = vmatpush1.bf16.xpose.msra.mxu0 0
        %2572 = vmatprep.subr.bf16.mxu0 0
        %2573 = vmatpush1.bf16.xpose.msra.mxu0 0
        %2574 = vmatprep.subr.bf16.mxu0 0
        %2575 = vmatpush1.bf16.xpose.msra.mxu0 0
        %2576 = vmatprep.subr.bf16.mxu0 0
        %2577 = vmatpush1.bf16.xpose.msra.mxu0 0
        %2578 = vmatprep.subr.bf16.mxu0 0
        %2579 = vmatpush1.bf16.xpose.msra.mxu0 0
        %2580 = vmatprep.subr.bf16.mxu0 0
        %2581 = vmatpush1.bf16.xpose.msra.mxu0 0
        %2582 = vmatprep.subr.bf16.mxu0 0
        %2583 = vmatpush1.bf16.xpose.msra.mxu0 0
        %2584 = vmatprep.subr.bf16.mxu0 0
        %2585 = vmatpush1.bf16.xpose.msra.mxu0 0
        %2586 = vmatprep.mubr.bf16.mxu0 0
        %2587 = vmatmul.mubr.bf16.gmra.mrb[0].mxu0 %v2543
        %v2588 = vpop.f32.mrb[0].mxu0
        %v2589 = vadd.f32 0.0, %v2588
        %v2590 = vpop.f32.mrb[0].mxu0
        %v2591 = vpop.f32.mrb[0].mxu0
        %v2592 = vadd.f32 0.0, %v2591
        %v2593 = vpop.f32.mrb[0].mxu0
        %2594 = vmatprep.mubr.bf16.mxu0 0
        %2595 = vmatmul.mubr.bf16.gmra.mrb[0].mxu0 %v2546
        %v2596 = vpop.f32.mrb[0].mxu0
        %v2597 = vadd.f32 0.0, %v2596
        %v2598 = vpop.f32.mrb[0].mxu0
        %v2599 = vpop.f32.mrb[0].mxu0
        %v2600 = vadd.f32 0.0, %v2599
        %v2601 = vpop.f32.mrb[0].mxu0
        %2602 = vdwg.mxu0
        %2605 = vrot.lane.b32.xlu0 %v2534, 96
        %v2606 = vpop.permute.xlu0 %2605
        %2607 = vrot.lane.b32.xlu0 %v2535, 96
        %v2608 = vpop.permute.xlu0 %2607
        %v2610 = vsel %vm1301, %v2534, 0
        %v2613 = vsel %vm1301, %v2535, 0
        %v2616 = vsel %vm1301, %v2606, 0
        %v2619 = vsel %vm1301, %v2608, 0
        %2621 = vmatprep.subr.bf16.mxu0 0
        %2622 = vmatpush1.bf16.xpose.msra.mxu0 %v2616
        %2623 = vmatprep.subr.bf16.mxu0 0
        %2624 = vmatpush1.bf16.xpose.msra.mxu0 %v2619
        %2625 = vmatprep.subr.bf16.mxu0 0
        %2626 = vmatpush1.bf16.xpose.msra.mxu0 0
        %2627 = vmatprep.subr.bf16.mxu0 0
        %2628 = vmatpush1.bf16.xpose.msra.mxu0 0
        %2629 = vmatprep.subr.bf16.mxu0 0
        %2630 = vmatpush1.bf16.xpose.msra.mxu0 0
        %2631 = vmatprep.subr.bf16.mxu0 0
        %2632 = vmatpush1.bf16.xpose.msra.mxu0 0
        %2633 = vmatprep.subr.bf16.mxu0 0
        %2634 = vmatpush1.bf16.xpose.msra.mxu0 0
        %2635 = vmatprep.subr.bf16.mxu0 0
        %2636 = vmatpush1.bf16.xpose.msra.mxu0 0
        %2637 = vmatprep.subr.bf16.mxu0 0
        %2638 = vmatpush1.bf16.xpose.msra.mxu0 0
        %2639 = vmatprep.subr.bf16.mxu0 0
        %2640 = vmatpush1.bf16.xpose.msra.mxu0 0
        %2641 = vmatprep.subr.bf16.mxu0 0
        %2642 = vmatpush1.bf16.xpose.msra.mxu0 0
        %2643 = vmatprep.subr.bf16.mxu0 0
        %2644 = vmatpush1.bf16.xpose.msra.mxu0 0
        %2645 = vmatprep.subr.bf16.mxu0 0
        %2646 = vmatpush1.bf16.xpose.msra.mxu0 0
        %2647 = vmatprep.subr.bf16.mxu0 0
        %2648 = vmatpush1.bf16.xpose.msra.mxu0 0
        %2649 = vmatprep.subr.bf16.mxu0 0
        %2650 = vmatpush1.bf16.xpose.msra.mxu0 0
        %2651 = vmatprep.subr.bf16.mxu0 0
        %2652 = vmatpush1.bf16.xpose.msra.mxu0 0
        %2653 = vmatprep.mubr.bf16.mxu0 0
        %2654 = vmatmul.mubr.bf16.gmra.mrb[0].mxu0 %v2610
        %v2655 = vpop.f32.mrb[0].mxu0
        %v2656 = vadd.f32 0.0, %v2655
        %v2657 = vpop.f32.mrb[0].mxu0
        %v2658 = vpop.f32.mrb[0].mxu0
        %v2659 = vadd.f32 0.0, %v2658
        %v2660 = vpop.f32.mrb[0].mxu0
        %2661 = vmatprep.mubr.bf16.mxu0 0
        %2662 = vmatmul.mubr.bf16.gmra.mrb[0].mxu0 %v2613
        %v2663 = vpop.f32.mrb[0].mxu0
        %v2664 = vadd.f32 0.0, %v2663
        %v2665 = vpop.f32.mrb[0].mxu0
        %v2666 = vpop.f32.mrb[0].mxu0
        %v2667 = vadd.f32 0.0, %v2666
        %v2668 = vpop.f32.mrb[0].mxu0
        %2669 = vdwg.mxu0
        %v2670 = vmul.f32 %v2589, 0.25
        %v2671 = vmul.f32 %v2592, 0.25
        %v2672 = vmul.f32 %v2597, 0.25
        %v2673 = vmul.f32 %v2600, 0.25
        %v2674 = vmul.f32 %v2656, 0.25
        %v2675 = vmul.f32 %v2659, 0.25
        %v2676 = vmul.f32 %v2664, 0.25
        %v2677 = vmul.f32 %v2667, 0.25
        %v2678 = vsel %vm751, %v2670, -inf
        %2679 = vmax.xlane.f32.xlu0 %v2678
        %v2680 = vpop.xlane.xlu0 %2679
        %v2681 = vsel %vm751, %v2671, -inf
        %2682 = vmax.xlane.f32.xlu0 %v2681
        %v2683 = vpop.xlane.xlu0 %2682
        %v2684 = vsel %vm751, %v2672, -inf
        %2685 = vmax.xlane.f32.xlu0 %v2684
        %v2686 = vpop.xlane.xlu0 %2685
        %v2687 = vsel %vm751, %v2673, -inf
        %2688 = vmax.xlane.f32.xlu0 %v2687
        %v2689 = vpop.xlane.xlu0 %2688
        %v2690 = vsel %vm751, %v2674, -inf
        %2691 = vmax.xlane.f32.xlu0 %v2690
        %v2692 = vpop.xlane.xlu0 %2691
        %v2693 = vsel %vm751, %v2675, -inf
        %2694 = vmax.xlane.f32.xlu0 %v2693
        %v2695 = vpop.xlane.xlu0 %2694
        %v2696 = vsel %vm751, %v2676, -inf
        %2697 = vmax.xlane.f32.xlu0 %v2696
        %v2698 = vpop.xlane.xlu0 %2697
        %v2699 = vsel %vm751, %v2677, -inf
        %2700 = vmax.xlane.f32.xlu0 %v2699
        %v2701 = vpop.xlane.xlu0 %2700
        %v2702 = vsub.f32 %v2670, %v2680
        %v2703 = vsub.f32 %v2671, %v2683
        %v2704 = vsub.f32 %v2672, %v2686
        %v2705 = vsub.f32 %v2673, %v2689
        %v2706 = vsub.f32 %v2674, %v2692
        %v2707 = vsub.f32 %v2675, %v2695
        %v2708 = vsub.f32 %v2676, %v2698
        %v2709 = vsub.f32 %v2677, %v2701
        %v2710 = vmul.f32 %v2702, 1.442695
        %v2711 = vpow.pop %v2710
        %v2712 = vmul.f32 %v2703, 1.442695
        %v2713 = vpow.pop %v2712
        %v2714 = vmul.f32 %v2704, 1.442695
        %v2715 = vpow.pop %v2714
        %v2716 = vmul.f32 %v2705, 1.442695
        %v2717 = vpow.pop %v2716
        %v2718 = vmul.f32 %v2706, 1.442695
        %v2719 = vpow.pop %v2718
        %v2720 = vmul.f32 %v2707, 1.442695
        %v2721 = vpow.pop %v2720
        %v2722 = vmul.f32 %v2708, 1.442695
        %v2723 = vpow.pop %v2722
        %v2724 = vmul.f32 %v2709, 1.442695
        %v2725 = vpow.pop %v2724
        %v2726 = vsel %vm751, %v2711, 0.0
        %2727 = vadd.xlane.f32.xlu0 %v2726
        %v2728 = vpop.xlane.xlu0 %2727
        %v2729 = vsel %vm751, %v2713, 0.0
        %2730 = vadd.xlane.f32.xlu0 %v2729
        %v2731 = vpop.xlane.xlu0 %2730
        %v2732 = vsel %vm751, %v2715, 0.0
        %2733 = vadd.xlane.f32.xlu0 %v2732
        %v2734 = vpop.xlane.xlu0 %2733
        %v2735 = vsel %vm751, %v2717, 0.0
        %2736 = vadd.xlane.f32.xlu0 %v2735
        %v2737 = vpop.xlane.xlu0 %2736
        %v2738 = vsel %vm751, %v2719, 0.0
        %2739 = vadd.xlane.f32.xlu0 %v2738
        %v2740 = vpop.xlane.xlu0 %2739
        %v2741 = vsel %vm751, %v2721, 0.0
        %2742 = vadd.xlane.f32.xlu0 %v2741
        %v2743 = vpop.xlane.xlu0 %2742
        %v2744 = vsel %vm751, %v2723, 0.0
        %2745 = vadd.xlane.f32.xlu0 %v2744
        %v2746 = vpop.xlane.xlu0 %2745
        %v2747 = vsel %vm751, %v2725, 0.0
        %2748 = vadd.xlane.f32.xlu0 %v2747
        %v2749 = vpop.xlane.xlu0 %2748
        %v2750 = vrcp.pop %v2728
        %v2751 = vrcp.pop %v2731
        %v2752 = vrcp.pop %v2734
        %v2753 = vrcp.pop %v2737
        %v2754 = vrcp.pop %v2740
        %v2755 = vrcp.pop %v2743
        %v2756 = vrcp.pop %v2746
        %v2757 = vrcp.pop %v2749
        %v2758 = vmul.f32 %v2711, %v2750
        %v2759 = vmul.f32 %v2713, %v2751
        %v2760 = vmul.f32 %v2715, %v2752
        %v2761 = vmul.f32 %v2717, %v2753
        %v2762 = vmul.f32 %v2719, %v2754
        %v2763 = vmul.f32 %v2721, %v2755
        %v2764 = vmul.f32 %v2723, %v2756
        %v2765 = vmul.f32 %v2725, %v2757
        %v2766 = vpack.c.bf16 %v2759, %v2758
        %v2767 = vpack.c.bf16 %v2761, %v2760
        %v2768 = vpack.c.bf16 %v2763, %v2762
        %v2769 = vpack.c.bf16 %v2765, %v2764
        %2770 = vrot.lane.b32.xlu0 %v2532, 64
        %v2771 = vpop.permute.xlu0 %2770
        %2772 = vrot.lane.b32.xlu0 %v2533, 64
        %v2773 = vpop.permute.xlu0 %2772
        %v2777 = vsel %vm751, %v2766, 0
        %v2780 = vsel %vm751, %v2767, 0
        %2782 = vmatprep.subr.bf16.mxu0 0
        %2783 = vmatpush1.bf16.msra.mxu0 %v2771
        %2784 = vmatprep.subr.bf16.mxu0 0
        %2785 = vmatpush1.bf16.msra.mxu0 %v2773
        %2786 = vmatprep.subr.bf16.mxu0 0
        %2787 = vmatpush1.bf16.msra.mxu0 0
        %2788 = vmatprep.subr.bf16.mxu0 0
        %2789 = vmatpush1.bf16.msra.mxu0 0
        %2790 = vmatprep.subr.bf16.mxu0 0
        %2791 = vmatpush1.bf16.msra.mxu0 0
        %2792 = vmatprep.subr.bf16.mxu0 0
        %2793 = vmatpush1.bf16.msra.mxu0 0
        %2794 = vmatprep.subr.bf16.mxu0 0
        %2795 = vmatpush1.bf16.msra.mxu0 0
        %2796 = vmatprep.subr.bf16.mxu0 0
        %2797 = vmatpush1.bf16.msra.mxu0 0
        %2798 = vmatprep.subr.bf16.mxu0 0
        %2799 = vmatpush1.bf16.msra.mxu0 0
        %2800 = vmatprep.subr.bf16.mxu0 0
        %2801 = vmatpush1.bf16.msra.mxu0 0
        %2802 = vmatprep.subr.bf16.mxu0 0
        %2803 = vmatpush1.bf16.msra.mxu0 0
        %2804 = vmatprep.subr.bf16.mxu0 0
        %2805 = vmatpush1.bf16.msra.mxu0 0
        %2806 = vmatprep.subr.bf16.mxu0 0
        %2807 = vmatpush1.bf16.msra.mxu0 0
        %2808 = vmatprep.subr.bf16.mxu0 0
        %2809 = vmatpush1.bf16.msra.mxu0 0
        %2810 = vmatprep.subr.bf16.mxu0 0
        %2811 = vmatpush1.bf16.msra.mxu0 0
        %2812 = vmatprep.subr.bf16.mxu0 0
        %2813 = vmatpush1.bf16.msra.mxu0 0
        %2814 = vmatprep.mubr.bf16.mxu0 0
        %2815 = vmatmul.mubr.bf16.gmra.mrb[0].mxu0 %v2777
        %v2816 = vpop.f32.mrb[0].mxu0
        %v2817 = vadd.f32 0.0, %v2816
        %v2818 = vpop.f32.mrb[0].mxu0
        %v2819 = vpop.f32.mrb[0].mxu0
        %v2820 = vadd.f32 0.0, %v2819
        %v2821 = vpop.f32.mrb[0].mxu0
        %2822 = vmatprep.mubr.bf16.mxu0 0
        %2823 = vmatmul.mubr.bf16.gmra.mrb[0].mxu0 %v2780
        %v2824 = vpop.f32.mrb[0].mxu0
        %v2825 = vadd.f32 0.0, %v2824
        %v2826 = vpop.f32.mrb[0].mxu0
        %v2827 = vpop.f32.mrb[0].mxu0
        %v2828 = vadd.f32 0.0, %v2827
        %v2829 = vpop.f32.mrb[0].mxu0
        %2830 = vdwg.mxu0
        %2831 = vrot.lane.b32.xlu0 %v2534, 64
        %v2832 = vpop.permute.xlu0 %2831
        %2833 = vrot.lane.b32.xlu0 %v2535, 64
        %v2834 = vpop.permute.xlu0 %2833
        %v2838 = vsel %vm751, %v2768, 0
        %v2841 = vsel %vm751, %v2769, 0
        %2843 = vmatprep.subr.bf16.mxu0 0
        %2844 = vmatpush1.bf16.msra.mxu0 %v2832
        %2845 = vmatprep.subr.bf16.mxu0 0
        %2846 = vmatpush1.bf16.msra.mxu0 %v2834
        %2847 = vmatprep.subr.bf16.mxu0 0
        %2848 = vmatpush1.bf16.msra.mxu0 0
        %2849 = vmatprep.subr.bf16.mxu0 0
        %2850 = vmatpush1.bf16.msra.mxu0 0
        %2851 = vmatprep.subr.bf16.mxu0 0
        %2852 = vmatpush1.bf16.msra.mxu0 0
        %2853 = vmatprep.subr.bf16.mxu0 0
        %2854 = vmatpush1.bf16.msra.mxu0 0
        %2855 = vmatprep.subr.bf16.mxu0 0
        %2856 = vmatpush1.bf16.msra.mxu0 0
        %2857 = vmatprep.subr.bf16.mxu0 0
        %2858 = vmatpush1.bf16.msra.mxu0 0
        %2859 = vmatprep.subr.bf16.mxu0 0
        %2860 = vmatpush1.bf16.msra.mxu0 0
        %2861 = vmatprep.subr.bf16.mxu0 0
        %2862 = vmatpush1.bf16.msra.mxu0 0
        %2863 = vmatprep.subr.bf16.mxu0 0
        %2864 = vmatpush1.bf16.msra.mxu0 0
        %2865 = vmatprep.subr.bf16.mxu0 0
        %2866 = vmatpush1.bf16.msra.mxu0 0
        %2867 = vmatprep.subr.bf16.mxu0 0
        %2868 = vmatpush1.bf16.msra.mxu0 0
        %2869 = vmatprep.subr.bf16.mxu0 0
        %2870 = vmatpush1.bf16.msra.mxu0 0
        %2871 = vmatprep.subr.bf16.mxu0 0
        %2872 = vmatpush1.bf16.msra.mxu0 0
        %2873 = vmatprep.subr.bf16.mxu0 0
        %2874 = vmatpush1.bf16.msra.mxu0 0
        %2875 = vmatprep.mubr.bf16.mxu0 0
        %2876 = vmatmul.mubr.bf16.gmra.mrb[0].mxu0 %v2838
        %v2877 = vpop.f32.mrb[0].mxu0
        %v2878 = vadd.f32 0.0, %v2877
        %v2879 = vpop.f32.mrb[0].mxu0
        %v2880 = vpop.f32.mrb[0].mxu0
        %v2881 = vadd.f32 0.0, %v2880
        %v2882 = vpop.f32.mrb[0].mxu0
        %2883 = vmatprep.mubr.bf16.mxu0 0
        %2884 = vmatmul.mubr.bf16.gmra.mrb[0].mxu0 %v2841
        %v2885 = vpop.f32.mrb[0].mxu0
        %v2886 = vadd.f32 0.0, %v2885
        %v2887 = vpop.f32.mrb[0].mxu0
        %v2888 = vpop.f32.mrb[0].mxu0
        %v2889 = vadd.f32 0.0, %v2888
        %v2890 = vpop.f32.mrb[0].mxu0
        %2891 = vdwg.mxu0
        %2896 = vrot.lane.b32.xlu0 %v2878, 16
        %v2897 = vpop.permute.xlu0 %2896
        %2898 = vrot.lane.b32.xlu0 %v2881, 16
        %v2899 = vpop.permute.xlu0 %2898
        %2900 = vrot.lane.b32.xlu0 %v2886, 16
        %v2901 = vpop.permute.xlu0 %2900
        %2902 = vrot.lane.b32.xlu0 %v2889, 16
        %v2903 = vpop.permute.xlu0 %2902
        %v2908 = vsel %vm1301, %v2817, %v2897
        %v2909 = vsel %vm1301, %v2820, %v2899
        %v2910 = vsel %vm1301, %v2825, %v2901
        %v2911 = vsel %vm1301, %v2828, %v2903
        %s2912 = scalar_lea.vmem %s14, 16
        %v2913 = vld [vmem:[%s2912] sm:$0xf]
        %v2914 = vld [vmem:[%s2912 + $0x4] sm:$0xf]
        %v2915 = vld [vmem:[%s2912 + $0x8] sm:$0xf]
        %v2916 = vld [vmem:[%s2912 + $0xc] sm:$0xf]
        %v2917 = vpack.c.bf16 %v2909, %v2908
        %v2918 = vpack.c.bf16 %v2911, %v2910
        %s2919 = scalar_lea.vmem %s15, 1
        %v2920 = vld [vmem:[%s2919] sm:$0x1]
        %v2922 = vlaneseq
        %v2923 = vshrl.u32 %v2922, 7
        %v2924 = vsub.s32 0, %v2923
        %v2925 = vrot.slane %v2920, %v2924
        %v2931 = vunpack.c.l.b16 %v2913
        %v2932 = vunpack.c.l.b16 %v2914
        %v2933 = vunpack.c.l.b16 %v2915
        %v2934 = vunpack.c.l.b16 %v2916
        %v2935 = vpack.c.b16 %v2932, %v2931
        %v2936 = vpack.c.b16 %v2934, %v2933
        %v2940 = vsel %vm751, %v2917, 0
        %v2943 = vsel %vm751, %v2918, 0
        %2945 = vmatprep.subr.bf16.mxu0 0
        %2946 = vmatpush1.bf16.msra.mxu0 %v2935
        %2947 = vmatprep.subr.bf16.mxu0 0
        %2948 = vmatpush1.bf16.msra.mxu0 %v2936
        %2949 = vmatprep.subr.bf16.mxu0 0
        %2950 = vmatpush1.bf16.msra.mxu0 0
        %2951 = vmatprep.subr.bf16.mxu0 0
        %2952 = vmatpush1.bf16.msra.mxu0 0
        %2953 = vmatprep.subr.bf16.mxu0 0
        %2954 = vmatpush1.bf16.msra.mxu0 0
        %2955 = vmatprep.subr.bf16.mxu0 0
        %2956 = vmatpush1.bf16.msra.mxu0 0
        %2957 = vmatprep.subr.bf16.mxu0 0
        %2958 = vmatpush1.bf16.msra.mxu0 0
        %2959 = vmatprep.subr.bf16.mxu0 0
        %2960 = vmatpush1.bf16.msra.mxu0 0
        %2961 = vmatprep.subr.bf16.mxu0 0
        %2962 = vmatpush1.bf16.msra.mxu0 0
        %2963 = vmatprep.subr.bf16.mxu0 0
        %2964 = vmatpush1.bf16.msra.mxu0 0
        %2965 = vmatprep.subr.bf16.mxu0 0
        %2966 = vmatpush1.bf16.msra.mxu0 0
        %2967 = vmatprep.subr.bf16.mxu0 0
        %2968 = vmatpush1.bf16.msra.mxu0 0
        %2969 = vmatprep.subr.bf16.mxu0 0
        %2970 = vmatpush1.bf16.msra.mxu0 0
        %2971 = vmatprep.subr.bf16.mxu0 0
        %2972 = vmatpush1.bf16.msra.mxu0 0
        %2973 = vmatprep.subr.bf16.mxu0 0
        %2974 = vmatpush1.bf16.msra.mxu0 0
        %2975 = vmatprep.subr.bf16.mxu0 0
        %2976 = vmatpush1.bf16.msra.mxu0 0
        %2977 = vmatprep.mubr.bf16.mxu0 0
        %2978 = vmatmul.mubr.bf16.gmra.mrb[0].mxu0 %v2940
        %v2979 = vpop.f32.mrb[0].mxu0
        %v2980 = vadd.f32 %v2925, %v2979
        %v2981 = vpop.f32.mrb[0].mxu0
        %v2982 = vpop.f32.mrb[0].mxu0
        %v2983 = vadd.f32 %v2925, %v2982
        %v2984 = vpop.f32.mrb[0].mxu0
        %2985 = vmatprep.mubr.bf16.mxu0 0
        %2986 = vmatmul.mubr.bf16.gmra.mrb[0].mxu0 %v2943
        %v2987 = vpop.f32.mrb[0].mxu0
        %v2988 = vadd.f32 %v2925, %v2987
        %v2989 = vpop.f32.mrb[0].mxu0
        %v2990 = vpop.f32.mrb[0].mxu0
        %v2991 = vadd.f32 %v2925, %v2990
        %v2992 = vpop.f32.mrb[0].mxu0
        %2993 = vdwg.mxu0
        %v2994 = vadd.f32 %v2430, %v2980
        %v2995 = vadd.f32 %v2431, %v2983
        %v2996 = vadd.f32 %v2432, %v2988
        %v2997 = vadd.f32 %v2433, %v2991
        %s2998 = scalar_lea.vmem %s16, 1
        %v2999 = vld [vmem:[%s2998] sm:$0x1]
        %s3000 = scalar_lea.vmem %s17, 1
        %v3001 = vld [vmem:[%s3000] sm:$0x1]
        %v3002 = vsel %vm751, %v2994, 0.0
        %3003 = vadd.xlane.f32.xlu0 %v3002
        %v3004 = vpop.xlane.xlu0 %3003
        %v3005 = vsel %vm751, %v2995, 0.0
        %3006 = vadd.xlane.f32.xlu0 %v3005
        %v3007 = vpop.xlane.xlu0 %3006
        %v3008 = vsel %vm751, %v2996, 0.0
        %3009 = vadd.xlane.f32.xlu0 %v3008
        %v3010 = vpop.xlane.xlu0 %3009
        %v3011 = vsel %vm751, %v2997, 0.0
        %3012 = vadd.xlane.f32.xlu0 %v3011
        %v3013 = vpop.xlane.xlu0 %3012
        %v3014 = vmul.f32 %v3004, %v2011
        %v3015 = vmul.f32 %v3007, %v2011
        %v3016 = vmul.f32 %v3010, %v2011
        %v3017 = vmul.f32 %v3013, %v2011
        %v3018 = vsub.f32 %v2994, %v3014
        %v3019 = vsub.f32 %v2995, %v3015
        %v3020 = vsub.f32 %v2996, %v3016
        %v3021 = vsub.f32 %v2997, %v3017
        %v3022 = vmul.f32 %v3018, %v3018
        %v3023 = vmul.f32 %v3019, %v3019
        %v3024 = vmul.f32 %v3020, %v3020
        %v3025 = vmul.f32 %v3021, %v3021
        %v3026 = vsel %vm751, %v3022, 0.0
        %3027 = vadd.xlane.f32.xlu0 %v3026
        %v3028 = vpop.xlane.xlu0 %3027
        %v3029 = vsel %vm751, %v3023, 0.0
        %3030 = vadd.xlane.f32.xlu0 %v3029
        %v3031 = vpop.xlane.xlu0 %3030
        %v3032 = vsel %vm751, %v3024, 0.0
        %3033 = vadd.xlane.f32.xlu0 %v3032
        %v3034 = vpop.xlane.xlu0 %3033
        %v3035 = vsel %vm751, %v3025, 0.0
        %3036 = vadd.xlane.f32.xlu0 %v3035
        %v3037 = vpop.xlane.xlu0 %3036
        %v3038 = vmul.f32 %v3028, %v2011
        %v3039 = vmul.f32 %v3031, %v2011
        %v3040 = vmul.f32 %v3034, %v2011
        %v3041 = vmul.f32 %v3037, %v2011
        %v3042 = vadd.f32 %v3038, 1e-05
        %v3043 = vadd.f32 %v3039, 1e-05
        %v3044 = vadd.f32 %v3040, 1e-05
        %v3045 = vadd.f32 %v3041, 1e-05
        %v3046 = vrsqrt.pop %v3042
        %v3047 = vrsqrt.pop %v3043
        %v3048 = vrsqrt.pop %v3044
        %v3049 = vrsqrt.pop %v3045
        %v3050 = vmul.f32 %v3018, %v3046
        %v3051 = vmul.f32 %v3019, %v3047
        %v3052 = vmul.f32 %v3020, %v3048
        %v3053 = vmul.f32 %v3021, %v3049
        %v3055 = vlaneseq
        %v3056 = vshrl.u32 %v3055, 7
        %v3057 = vsub.s32 0, %v3056
        %v3058 = vrot.slane %v2999, %v3057
        %v3060 = vmul.f32 %v3050, %v3058
        %v3061 = vmul.f32 %v3051, %v3058
        %v3062 = vmul.f32 %v3052, %v3058
        %v3063 = vmul.f32 %v3053, %v3058
        %v3065 = vlaneseq
        %v3066 = vshrl.u32 %v3065, 7
        %v3067 = vsub.s32 0, %v3066
        %v3068 = vrot.slane %v3001, %v3067
        %v3070 = vadd.f32 %v3060, %v3068
        %v3071 = vadd.f32 %v3061, %v3068
        %v3072 = vadd.f32 %v3062, %v3068
        %v3073 = vadd.f32 %v3063, %v3068
        %s3074 = scalar_lea.vmem %s18, 16
        %v3075 = vld [vmem:[%s3074] sm:$0xf]
        %v3076 = vld [vmem:[%s3074 + $0x4] sm:$0xf]
        %v3077 = vld [vmem:[%s3074 + $0x8] sm:$0xf]
        %v3078 = vld [vmem:[%s3074 + $0xc] sm:$0xf]
        %v3079 = vpack.c.bf16 %v3071, %v3070
        %v3080 = vpack.c.bf16 %v3073, %v3072
        %s3081 = scalar_lea.vmem %s19, 1
        %v3082 = vld [vmem:[%s3081] sm:$0x1]
        %v3084 = vlaneseq
        %v3085 = vshrl.u32 %v3084, 7
        %v3086 = vsub.s32 0, %v3085
        %v3087 = vrot.slane %v3082, %v3086
        %v3093 = vunpack.c.l.b16 %v3075
        %v3094 = vunpack.c.l.b16 %v3076
        %v3095 = vunpack.c.l.b16 %v3077
        %v3096 = vunpack.c.l.b16 %v3078
        %v3097 = vpack.c.b16 %v3094, %v3093
        %v3098 = vpack.c.b16 %v3096, %v3095
        %v3102 = vsel %vm751, %v3079, 0
        %v3105 = vsel %vm751, %v3080, 0
        %3107 = vmatprep.subr.bf16.mxu0 0
        %3108 = vmatpush1.bf16.msra.mxu0 %v3097
        %3109 = vmatprep.subr.bf16.mxu0 0
        %3110 = vmatpush1.bf16.msra.mxu0 %v3098
        %3111 = vmatprep.subr.bf16.mxu0 0
        %3112 = vmatpush1.bf16.msra.mxu0 0
        %3113 = vmatprep.subr.bf16.mxu0 0
        %3114 = vmatpush1.bf16.msra.mxu0 0
        %3115 = vmatprep.subr.bf16.mxu0 0
        %3116 = vmatpush1.bf16.msra.mxu0 0
        %3117 = vmatprep.subr.bf16.mxu0 0
        %3118 = vmatpush1.bf16.msra.mxu0 0
        %3119 = vmatprep.subr.bf16.mxu0 0
        %3120 = vmatpush1.bf16.msra.mxu0 0
        %3121 = vmatprep.subr.bf16.mxu0 0
        %3122 = vmatpush1.bf16.msra.mxu0 0
        %3123 = vmatprep.subr.bf16.mxu0 0
        %3124 = vmatpush1.bf16.msra.mxu0 0
        %3125 = vmatprep.subr.bf16.mxu0 0
        %3126 = vmatpush1.bf16.msra.mxu0 0
        %3127 = vmatprep.subr.bf16.mxu0 0
        %3128 = vmatpush1.bf16.msra.mxu0 0
        %3129 = vmatprep.subr.bf16.mxu0 0
        %3130 = vmatpush1.bf16.msra.mxu0 0
        %3131 = vmatprep.subr.bf16.mxu0 0
        %3132 = vmatpush1.bf16.msra.mxu0 0
        %3133 = vmatprep.subr.bf16.mxu0 0
        %3134 = vmatpush1.bf16.msra.mxu0 0
        %3135 = vmatprep.subr.bf16.mxu0 0
        %3136 = vmatpush1.bf16.msra.mxu0 0
        %3137 = vmatprep.subr.bf16.mxu0 0
        %3138 = vmatpush1.bf16.msra.mxu0 0
        %3139 = vmatprep.mubr.bf16.mxu0 0
        %3140 = vmatmul.mubr.bf16.gmra.mrb[0].mxu0 %v3102
        %v3141 = vpop.f32.mrb[0].mxu0
        %v3142 = vadd.f32 %v3087, %v3141
        %v3143 = vpop.f32.mrb[0].mxu0
        %v3144 = vpop.f32.mrb[0].mxu0
        %v3145 = vadd.f32 %v3087, %v3144
        %v3146 = vpop.f32.mrb[0].mxu0
        %3147 = vmatprep.mubr.bf16.mxu0 0
        %3148 = vmatmul.mubr.bf16.gmra.mrb[0].mxu0 %v3105
        %v3149 = vpop.f32.mrb[0].mxu0
        %v3150 = vadd.f32 %v3087, %v3149
        %v3151 = vpop.f32.mrb[0].mxu0
        %v3152 = vpop.f32.mrb[0].mxu0
        %v3153 = vadd.f32 %v3087, %v3152
        %v3154 = vpop.f32.mrb[0].mxu0
        %3155 = vdwg.mxu0
        %v3156 = vmul.f32 %v3142, 0.5
        %v3157 = vmul.f32 %v3145, 0.5
        %v3158 = vmul.f32 %v3150, 0.5
        %v3159 = vmul.f32 %v3153, 0.5
        %v3160 = vmul.f32 %v3142, 0.70710677
        %v3161 = vmul.f32 %v3145, 0.70710677
        %v3162 = vmul.f32 %v3150, 0.70710677
        %v3163 = vmul.f32 %v3153, 0.70710677
        %vm3164 = vcmp.ge.f32.partialorder %v3160, 0.0
        %vm3165 = vcmp.ge.f32.partialorder %v3161, 0.0
        %vm3166 = vcmp.ge.f32.partialorder %v3162, 0.0
        %vm3167 = vcmp.ge.f32.partialorder %v3163, 0.0
        %v3168 = vsel %vm3164, 1.0, -1.0
        %v3169 = vsel %vm3165, 1.0, -1.0
        %v3170 = vsel %vm3166, 1.0, -1.0
        %v3171 = vsel %vm3167, 1.0, -1.0
        %v3172 = vand.u32 2147483647, %v3160
        %v3173 = vand.u32 2147483647, %v3161
        %v3174 = vand.u32 2147483647, %v3162
        %v3175 = vand.u32 2147483647, %v3163
        %v3176 = vmul.f32 %v3172, 0.3275911
        %v3177 = vmul.f32 %v3173, 0.3275911
        %v3178 = vmul.f32 %v3174, 0.3275911
        %v3179 = vmul.f32 %v3175, 0.3275911
        %v3180 = vadd.f32 %v3176, 1.0
        %v3181 = vadd.f32 %v3177, 1.0
        %v3182 = vadd.f32 %v3178, 1.0
        %v3183 = vadd.f32 %v3179, 1.0
        %v3184 = vrcp.pop %v3180
        %v3185 = vmul.f32 1.0, %v3184
        %v3186 = vrcp.pop %v3181
        %v3187 = vmul.f32 1.0, %v3186
        %v3188 = vrcp.pop %v3182
        %v3189 = vmul.f32 1.0, %v3188
        %v3190 = vrcp.pop %v3183
        %v3191 = vmul.f32 1.0, %v3190
        %v3192 = vmul.f32 %v3185, 1.0614054
        %v3193 = vmul.f32 %v3187, 1.0614054
        %v3194 = vmul.f32 %v3189, 1.0614054
        %v3195 = vmul.f32 %v3191, 1.0614054
        %v3196 = vadd.f32 %v3192, -1.4531521
        %v3197 = vadd.f32 %v3193, -1.4531521
        %v3198 = vadd.f32 %v3194, -1.4531521
        %v3199 = vadd.f32 %v3195, -1.4531521
        %v3200 = vmul.f32 %v3196, %v3185
        %v3201 = vmul.f32 %v3197, %v3187
        %v3202 = vmul.f32 %v3198, %v3189
        %v3203 = vmul.f32 %v3199, %v3191
        %v3204 = vadd.f32 %v3200, 1.4214138
        %v3205 = vadd.f32 %v3201, 1.4214138
        %v3206 = vadd.f32 %v3202, 1.4214138
        %v3207 = vadd.f32 %v3203, 1.4214138
        %v3208 = vmul.f32 %v3204, %v3185
        %v3209 = vmul.f32 %v3205, %v3187
        %v3210 = vmul.f32 %v3206, %v3189
        %v3211 = vmul.f32 %v3207, %v3191
        %v3212 = vadd.f32 %v3208, -0.28449672
        %v3213 = vadd.f32 %v3209, -0.28449672
        %v3214 = vadd.f32 %v3210, -0.28449672
        %v3215 = vadd.f32 %v3211, -0.28449672
        %v3216 = vmul.f32 %v3212, %v3185
        %v3217 = vmul.f32 %v3213, %v3187
        %v3218 = vmul.f32 %v3214, %v3189
        %v3219 = vmul.f32 %v3215, %v3191
        %v3220 = vadd.f32 %v3216, 0.2548296
        %v3221 = vadd.f32 %v3217, 0.2548296
        %v3222 = vadd.f32 %v3218, 0.2548296
        %v3223 = vadd.f32 %v3219, 0.2548296
        %v3224 = vmul.f32 %v3220, %v3185
        %v3225 = vmul.f32 %v3221, %v3187
        %v3226 = vmul.f32 %v3222, %v3189
        %v3227 = vmul.f32 %v3223, %v3191
        %v3228 = vsub.f32 0.0, %v3172
        %v3229 = vsub.f32 0.0, %v3173
        %v3230 = vsub.f32 0.0, %v3174
        %v3231 = vsub.f32 0.0, %v3175
        %v3232 = vmul.f32 %v3228, %v3172
        %v3233 = vmul.f32 %v3229, %v3173
        %v3234 = vmul.f32 %v3230, %v3174
        %v3235 = vmul.f32 %v3231, %v3175
        %v3236 = vmul.f32 %v3232, 1.442695
        %v3237 = vpow.pop %v3236
        %v3238 = vmul.f32 %v3233, 1.442695
        %v3239 = vpow.pop %v3238
        %v3240 = vmul.f32 %v3234, 1.442695
        %v3241 = vpow.pop %v3240
        %v3242 = vmul.f32 %v3235, 1.442695
        %v3243 = vpow.pop %v3242
        %v3244 = vmul.f32 %v3224, %v3237
        %v3245 = vmul.f32 %v3225, %v3239
        %v3246 = vmul.f32 %v3226, %v3241
        %v3247 = vmul.f32 %v3227, %v3243
        %v3248 = vsub.f32 1.0, %v3244
        %v3249 = vsub.f32 1.0, %v3245
        %v3250 = vsub.f32 1.0, %v3246
        %v3251 = vsub.f32 1.0, %v3247
        %v3252 = vmul.f32 %v3168, %v3248
        %v3253 = vmul.f32 %v3169, %v3249
        %v3254 = vmul.f32 %v3170, %v3250
        %v3255 = vmul.f32 %v3171, %v3251
        %v3256 = vadd.f32 %v3252, 1.0
        %v3257 = vadd.f32 %v3253, 1.0
        %v3258 = vadd.f32 %v3254, 1.0
        %v3259 = vadd.f32 %v3255, 1.0
        %v3260 = vmul.f32 %v3156, %v3256
        %v3261 = vmul.f32 %v3157, %v3257
        %v3262 = vmul.f32 %v3158, %v3258
        %v3263 = vmul.f32 %v3159, %v3259
        %s3264 = scalar_lea.vmem %s20, 32
        %v3265 = vld [vmem:[%s3264] sm:$0xf]
        %v3266 = vld [vmem:[%s3264 + $0x4] sm:$0xf]
        %v3267 = vld [vmem:[%s3264 + $0x8] sm:$0xf]
        %v3268 = vld [vmem:[%s3264 + $0xc] sm:$0xf]
        %v3269 = vld [vmem:[%s3264 + $0x10] sm:$0xf]
        %v3270 = vld [vmem:[%s3264 + $0x14] sm:$0xf]
        %v3271 = vld [vmem:[%s3264 + $0x18] sm:$0xf]
        %v3272 = vld [vmem:[%s3264 + $0x1c] sm:$0xf]
        %v3273 = vpack.c.bf16 %v3261, %v3260
        %v3274 = vpack.c.bf16 %v3263, %v3262
        %s3275 = scalar_lea.vmem %s21, 1
        %v3276 = vld [vmem:[%s3275] sm:$0x1]
        %v3278 = vlaneseq
        %v3279 = vshrl.u32 %v3278, 7
        %v3280 = vsub.s32 0, %v3279
        %v3281 = vrot.slane %v3276, %v3280
        %v3291 = vunpack.c.l.b16 %v3265
        %v3292 = vunpack.c.l.b16 %v3266
        %v3293 = vunpack.c.l.b16 %v3267
        %v3294 = vunpack.c.l.b16 %v3268
        %v3295 = vunpack.c.l.b16 %v3269
        %v3296 = vunpack.c.l.b16 %v3270
        %v3297 = vunpack.c.l.b16 %v3271
        %v3298 = vunpack.c.l.b16 %v3272
        %v3299 = vpack.c.b16 %v3292, %v3291
        %v3300 = vpack.c.b16 %v3294, %v3293
        %v3301 = vpack.c.b16 %v3296, %v3295
        %v3302 = vpack.c.b16 %v3298, %v3297
        %v3308 = vsel %vm753, %v3273, 0
        %v3311 = vsel %vm753, %v3274, 0
        %3313 = vmatprep.subr.bf16.mxu0 0
        %3314 = vmatpush1.bf16.msra.mxu0 %v3299
        %3315 = vmatprep.subr.bf16.mxu0 0
        %3316 = vmatpush1.bf16.msra.mxu0 %v3300
        %3317 = vmatprep.subr.bf16.mxu0 0
        %3318 = vmatpush1.bf16.msra.mxu0 %v3301
        %3319 = vmatprep.subr.bf16.mxu0 0
        %3320 = vmatpush1.bf16.msra.mxu0 %v3302
        %3321 = vmatprep.subr.bf16.mxu0 0
        %3322 = vmatpush1.bf16.msra.mxu0 0
        %3323 = vmatprep.subr.bf16.mxu0 0
        %3324 = vmatpush1.bf16.msra.mxu0 0
        %3325 = vmatprep.subr.bf16.mxu0 0
        %3326 = vmatpush1.bf16.msra.mxu0 0
        %3327 = vmatprep.subr.bf16.mxu0 0
        %3328 = vmatpush1.bf16.msra.mxu0 0
        %3329 = vmatprep.subr.bf16.mxu0 0
        %3330 = vmatpush1.bf16.msra.mxu0 0
        %3331 = vmatprep.subr.bf16.mxu0 0
        %3332 = vmatpush1.bf16.msra.mxu0 0
        %3333 = vmatprep.subr.bf16.mxu0 0
        %3334 = vmatpush1.bf16.msra.mxu0 0
        %3335 = vmatprep.subr.bf16.mxu0 0
        %3336 = vmatpush1.bf16.msra.mxu0 0
        %3337 = vmatprep.subr.bf16.mxu0 0
        %3338 = vmatpush1.bf16.msra.mxu0 0
        %3339 = vmatprep.subr.bf16.mxu0 0
        %3340 = vmatpush1.bf16.msra.mxu0 0
        %3341 = vmatprep.subr.bf16.mxu0 0
        %3342 = vmatpush1.bf16.msra.mxu0 0
        %3343 = vmatprep.subr.bf16.mxu0 0
        %3344 = vmatpush1.bf16.msra.mxu0 0
        %3345 = vmatprep.mubr.bf16.mxu0 0
        %3346 = vmatmul.mubr.bf16.gmra.mrb[0].mxu0 %v3308
        %v3347 = vpop.f32.mrb[0].mxu0
        %v3348 = vadd.f32 %v3281, %v3347
        %v3349 = vpop.f32.mrb[0].mxu0
        %v3350 = vpop.f32.mrb[0].mxu0
        %v3351 = vadd.f32 %v3281, %v3350
        %v3352 = vpop.f32.mrb[0].mxu0
        %3353 = vmatprep.mubr.bf16.mxu0 0
        %3354 = vmatmul.mubr.bf16.gmra.mrb[0].mxu0 %v3311
        %v3355 = vpop.f32.mrb[0].mxu0
        %v3356 = vadd.f32 %v3281, %v3355
        %v3357 = vpop.f32.mrb[0].mxu0
        %v3358 = vpop.f32.mrb[0].mxu0
        %v3359 = vadd.f32 %v3281, %v3358
        %v3360 = vpop.f32.mrb[0].mxu0
        %3361 = vdwg.mxu0
        %v3362 = vadd.f32 %v3070, %v3348
        %v3363 = vadd.f32 %v3071, %v3351
        %v3364 = vadd.f32 %v3072, %v3356
        %v3365 = vadd.f32 %v3073, %v3359
        %s3366 = scalar_lea.vmem %s22, 1
        %v3367 = vld [vmem:[%s3366] sm:$0x1]
        %s3368 = scalar_lea.vmem %s23, 1
        %v3369 = vld [vmem:[%s3368] sm:$0x1]
        %v3370 = vsel %vm751, %v3362, 0.0
        %3371 = vadd.xlane.f32.xlu0 %v3370
        %v3372 = vpop.xlane.xlu0 %3371
        %v3373 = vsel %vm751, %v3363, 0.0
        %3374 = vadd.xlane.f32.xlu0 %v3373
        %v3375 = vpop.xlane.xlu0 %3374
        %v3376 = vsel %vm751, %v3364, 0.0
        %3377 = vadd.xlane.f32.xlu0 %v3376
        %v3378 = vpop.xlane.xlu0 %3377
        %v3379 = vsel %vm751, %v3365, 0.0
        %3380 = vadd.xlane.f32.xlu0 %v3379
        %v3381 = vpop.xlane.xlu0 %3380
        %v3382 = vmul.f32 %v3372, %v2011
        %v3383 = vmul.f32 %v3375, %v2011
        %v3384 = vmul.f32 %v3378, %v2011
        %v3385 = vmul.f32 %v3381, %v2011
        %v3386 = vsub.f32 %v3362, %v3382
        %v3387 = vsub.f32 %v3363, %v3383
        %v3388 = vsub.f32 %v3364, %v3384
        %v3389 = vsub.f32 %v3365, %v3385
        %v3390 = vmul.f32 %v3386, %v3386
        %v3391 = vmul.f32 %v3387, %v3387
        %v3392 = vmul.f32 %v3388, %v3388
        %v3393 = vmul.f32 %v3389, %v3389
        %v3394 = vsel %vm751, %v3390, 0.0
        %3395 = vadd.xlane.f32.xlu0 %v3394
        %v3396 = vpop.xlane.xlu0 %3395
        %v3397 = vsel %vm751, %v3391, 0.0
        %3398 = vadd.xlane.f32.xlu0 %v3397
        %v3399 = vpop.xlane.xlu0 %3398
        %v3400 = vsel %vm751, %v3392, 0.0
        %3401 = vadd.xlane.f32.xlu0 %v3400
        %v3402 = vpop.xlane.xlu0 %3401
        %v3403 = vsel %vm751, %v3393, 0.0
        %3404 = vadd.xlane.f32.xlu0 %v3403
        %v3405 = vpop.xlane.xlu0 %3404
        %v3406 = vmul.f32 %v3396, %v2011
        %v3407 = vmul.f32 %v3399, %v2011
        %v3408 = vmul.f32 %v3402, %v2011
        %v3409 = vmul.f32 %v3405, %v2011
        %v3410 = vadd.f32 %v3406, 1e-05
        %v3411 = vadd.f32 %v3407, 1e-05
        %v3412 = vadd.f32 %v3408, 1e-05
        %v3413 = vadd.f32 %v3409, 1e-05
        %v3414 = vrsqrt.pop %v3410
        %v3415 = vrsqrt.pop %v3411
        %v3416 = vrsqrt.pop %v3412
        %v3417 = vrsqrt.pop %v3413
        %v3418 = vmul.f32 %v3386, %v3414
        %v3419 = vmul.f32 %v3387, %v3415
        %v3420 = vmul.f32 %v3388, %v3416
        %v3421 = vmul.f32 %v3389, %v3417
        %v3423 = vlaneseq
        %v3424 = vshrl.u32 %v3423, 7
        %v3425 = vsub.s32 0, %v3424
        %v3426 = vrot.slane %v3367, %v3425
        %v3428 = vmul.f32 %v3418, %v3426
        %v3429 = vmul.f32 %v3419, %v3426
        %v3430 = vmul.f32 %v3420, %v3426
        %v3431 = vmul.f32 %v3421, %v3426
        %v3433 = vlaneseq
        %v3434 = vshrl.u32 %v3433, 7
        %v3435 = vsub.s32 0, %v3434
        %v3436 = vrot.slane %v3369, %v3435
        %v3438 = vadd.f32 %v3428, %v3436
        %v3439 = vadd.f32 %v3429, %v3436
        %v3440 = vadd.f32 %v3430, %v3436
        %v3441 = vadd.f32 %v3431, %v3436
        %3442 = vst.msk [vmem:[%s728] sm:$0xff] %vm751, %v3438
        %3443 = vst.msk [vmem:[%s728 + $0x8] sm:$0xff] %vm751, %v3439
        %3444 = vst.msk [vmem:[%s728 + $0x10] sm:$0xff] %vm751, %v3440
        %3445 = vst.msk [vmem:[%s728 + $0x18] sm:$0xff] %vm751, %v3441
        %s3446 = sand.u32 %s555, 1
        %s3447 = scalar_lea.sflag [#allocation3], %s3446
        %s3448 = sand.u32 %s555, 1
        %s3449 = smul.addr %s3448, 32
        %s3450 = scalar_lea.vmem [#allocation2], %s3449
        // Predicated region
        $region117: #{vqvae2_decoder_forward.1} parent=115 // pred_check
          %p3451 = pneg %p565
        $region118: #{vqvae2_decoder_forward.1} parent=115 // pred_check_branch
          %3453 = sbr.rel (%p3451) target = $region120
        $region119: #{vqvae2_decoder_forward.1} parent=115 // pred_region
          %s3455 = ssub.s32 512, 512
          %3456 = vsyncadd %s3447, %s3455
          %s3457 = smul.addr %s38, 4
          %s3458 = smul.addr %s3457, 128
          %s3459 = scalar_lea.hbm %s24, %s3458
          %s3460 = sshll.u32 %s3450, 4
          %s3461 = int_to_ptr.vmem [resolvable:$true] %s3460
          %3466 = dma.vmem_to_hbm [thread:$0]  %s3461, 512, %s3459, %s3447, 128, 128, 8
        $region120: #{vqvae2_decoder_forward.1} parent=115 // pred_fallthru
          _
      $region116: #{vqvae2_decoder_forward.1} parent=5 // pred_fallthru
        _
      %p3467 = scmp.le.s32.totalorder 2, %s33
      // Predicated region
      $region121: #{vqvae2_decoder_forward.1} parent=5 // pred_check
        %p3468 = pneg %p3467
      $region122: #{vqvae2_decoder_forward.1} parent=5 // pred_check_branch
        %3470 = sbr.rel (%p3468) target = $region124
      $region123: #{vqvae2_decoder_forward.1} parent=5 // pred_region
        %s3471 = ssub.s32 %s33, 2
        // Predicated region
        $region125: #{vqvae2_decoder_forward.1} parent=123 // pred_check
          %p3472 = pneg %p571
        $region126: #{vqvae2_decoder_forward.1} parent=123 // pred_check_branch
          %3474 = sbr.rel (%p3472) target = $region128
        $region127: #{vqvae2_decoder_forward.1} parent=123 // pred_region
          %s3475 = sand.u32 %s556, 1
          %s3476 = scalar_lea.sflag [#allocation3], %s3475
          %s3477 = sand.u32 %s556, 1
          %s3478 = smul.addr %s3477, 32
          %s3479 = scalar_lea.vmem [#allocation2], %s3478
          %3480 = dma.done %s3476, 512
        $region128: #{vqvae2_decoder_forward.1} parent=123 // pred_fallthru
          _
      $region124: #{vqvae2_decoder_forward.1} parent=5 // pred_fallthru
        _
    $region6: #{vqvae2_decoder_forward.1} parent=1 // loop_footer
      %s37 = sadd.s32 1, %s33
    $region7: #{vqvae2_decoder_forward.1} parent=1 // loop_footer_branch
      %32 = sbr.rel target = $region3
    $region8: #{vqvae2_decoder_forward.1} parent=1 // loop_exit
      _
    %3481 = vsyncpa [#allocation3], 1
    %s3482 = scalar_lea.sflag [#allocation3], 1
    %3483 = vsyncpa %s3482, 1

</llo_original>
